<compile_context>
chip_gen: v7x
topology: tpu7x:2x2x1
jax: 0.10.0
libtpu: 0.0.40
codegen_flags: <defaults>
</compile_context>

<pallas_src>
import functools

import jax
import jax.numpy as jnp
from jax.experimental import pallas as pl
from jax.experimental.pallas import tpu as pltpu


def _round_up(x, m):
    return (x + m - 1) // m * m


def _vmem_estimate(tile_t, D, C, K, halo_rows):
    """Rough VMEM footprint (bytes) for one grid step, incl. live values."""
    ext_rows = _round_up(tile_t + K - 1, 8)
    n_rows = tile_t + K - 1
    # x tile + out tile + halo, double-buffered by the pipeline.
    pipelined = 2 * (2 * tile_t * D * 4 + halo_rows * D * 4)
    # single-buffered constants (w1/w2 in bf16, rest f32)
    consts = (2 * D * 4 + D * 2 * C * 2 + 2 * C * 4
              + K * C * 4 + C * 4 + C * D * 2 + D * 4)
    scratch = ext_rows * C * 2                       # bf16 GLU scratch
    # live intermediates: y (n_rows,2C) f32, g (n_rows,C), acc/d, LN temps
    live = (n_rows * 2 * C * 4 + n_rows * C * 4
            + 3 * tile_t * C * 4 + 2 * n_rows * D * 4)
    return pipelined + consts + scratch + live


def _conv_module_kernel(x_ref, halo_ref, lng_ref, lnb_ref,
                        w1_ref, b1_ref, wd_ref, bd_ref, w2_ref, b2_ref,
                        o_ref, gext_ref, *,
                        kernel_size, pad_l, pad_r, tile_t, seq_len):
    TT = tile_t
    K = kernel_size
    n_rows = TT + K - 1
    C = wd_ref.shape[1]
    r0 = pl.program_id(1) * TT                       # first global row of tile

    xm = x_ref[0]                                    # (TT, D) f32, residual src

    # ---- assemble main + halo rows into one contiguous slab ---------------
    if K > 1:
        halo = halo_ref[0, 0]                        # (K-1, D)
        parts = []
        if pad_l > 0:
            parts.append(halo[:pad_l])
        parts.append(xm)
        if pad_r > 0:
            parts.append(halo[pad_l:pad_l + pad_r])
        rows = jnp.concatenate(parts, axis=0)        # (n_rows, D)
    else:
        rows = xm

    # ---- LayerNorm -> pointwise conv #1 (single (D, 2C) matmul) -> GLU ----
    mu = jnp.mean(rows, axis=-1, keepdims=True)
    var = jnp.mean(jnp.square(rows - mu), axis=-1, keepdims=True)
    xn = ((rows - mu) * jax.lax.rsqrt(var + 1e-5) * lng_ref[...] + lnb_ref[...]
          ).astype(jnp.bfloat16)
    y = jnp.dot(xn, w1_ref[...], preferred_element_type=jnp.float32) + b1_ref[...]
    g = y[:, :C] * jax.nn.sigmoid(y[:, C:])          # (n_rows, C) f32

    # ---- write GLU rows to the bf16 scratch (mask only boundary tiles) ----
    # Rows with global position outside [0, seq_len) must be zero so they act
    # exactly like the zero padding F.pad applies to the GLU output.
    needs_mask = jnp.logical_or(r0 < pad_l, r0 + TT + pad_r > seq_len)

    @pl.when(needs_mask)
    def _():
        pos = (r0 - pad_l) + jax.lax.broadcasted_iota(jnp.int32, (n_rows, 1), 0)
        valid = jnp.logical_and(pos >= 0, pos < seq_len)
        gext_ref[pl.ds(0, n_rows), :] = jnp.where(valid, g, 0.0).astype(gext_ref.dtype)

    @pl.when(jnp.logical_not(needs_mask))
    def _():
        gext_ref[pl.ds(0, n_rows), :] = g.astype(gext_ref.dtype)

    # ---- depthwise conv (groups == channels), BatchNorm pre-folded --------
    # Scratch rows beyond n_rows are stale but never read (max index K-1+TT-1).
    wd = wd_ref[...]                                 # (K, C) f32, loaded once
    acc = jnp.zeros((TT, C), jnp.float32)
    for j in range(K):                               # static, fully unrolled
        acc = acc + gext_ref[pl.ds(j, TT), :].astype(jnp.float32) * wd[j:j + 1, :]
    d = acc + bd_ref[...]

    # ---- SiLU --------------------------------------------------------------
    d = d * jax.nn.sigmoid(d)

    # ---- pointwise conv #2, dropout = identity, residual add --------------
    out = jnp.dot(d.astype(jnp.bfloat16), w2_ref[...],
                  preferred_element_type=jnp.float32) + b2_ref[...]
    o_ref[0] = (xm + out).astype(o_ref.dtype)


def conv_module_forward(x, params, kernel_size, tile_t=None):
    """Fused ConvModule forward.  x: (B, T, D) float32."""
    B, T, D = x.shape
    pad_l = kernel_size // 2
    pad_r = pad_l - (kernel_size + 1) % 2
    C = params["wd"].shape[1]                        # dim * expansion_factor
    halo_rows = max(kernel_size - 1, 1)

    try:
        vmem_cap = int(pltpu.get_tpu_info().vmem_capacity_bytes)
    except Exception:
        vmem_cap = 64 << 20                          # conservative (v7x-sized)

    # Time tile: multiple of 8 (sublane), as large as the VMEM budget allows
    # (amortizes per-grid-step overhead and the halo recompute).
    if tile_t is None:
        tile_t = min(512, _round_up(T, 8))
        budget = min(int(vmem_cap * 0.6), 80 << 20)
        while tile_t > 64 and _vmem_estimate(tile_t, D, C, kernel_size,
                                             halo_rows) > budget:
            tile_t = _round_up(tile_t // 2, 8)
    tile_t = max(8, _round_up(tile_t, 8))
    t_pad = _round_up(T, tile_t)
    nt = t_pad // tile_t

    # Pad time so it divides into tiles; padded rows are masked in-kernel and
    # sliced off below.
    x_main = jnp.pad(x, ((0, 0), (0, t_pad - T), (0, 0))) if t_pad != T else x

    # Per-tile halo (pad_l rows before + pad_r rows after each tile), built
    # with a single vectorized gather.  Out-of-range indices are clamped; the
    # kernel re-masks those rows by global position (only boundary tiles).
    if kernel_size > 1:
        r0s = jnp.arange(nt, dtype=jnp.int32) * tile_t
        parts = [r0s[:, None] - pad_l + jnp.arange(pad_l, dtype=jnp.int32)[None, :]]
        if pad_r > 0:
            parts.append(r0s[:, None] + tile_t
                         + jnp.arange(pad_r, dtype=jnp.int32)[None, :])
        idx = jnp.clip(jnp.concatenate(parts, axis=1), 0, T - 1).reshape(-1)
        halo = jnp.take(x, idx, axis=1).reshape(B, nt, kernel_size - 1, D)
    else:
        halo = jnp.zeros((B, nt, 1, D), x.dtype)

    # Weight prep: bf16 matmul operands; BatchNorm folded into the depthwise
    # conv (exact in f32 up to rounding).
    w1 = params["w1"].astype(jnp.bfloat16)           # (D, 2C)
    b1 = params["b1"]                                 # (1, 2C)
    wd = params["wd"] * params["bn_s"]                # (K, C)
    bd = params["bd"] * params["bn_s"] + params["bn_h"]
    w2 = params["w2"].astype(jnp.bfloat16)            # (C, D)
    b2 = params["b2"]

    ext_rows = _round_up(tile_t + kernel_size - 1, 8)
    kernel = functools.partial(
        _conv_module_kernel, kernel_size=kernel_size, pad_l=pad_l,
        pad_r=pad_r, tile_t=tile_t, seq_len=T)

    est = _vmem_estimate(tile_t, D, C, kernel_size, halo_rows)
    vmem_limit = min(max(int(est * 1.25) + (4 << 20), 32 << 20),
                     max(vmem_cap - (8 << 20), 32 << 20))

    weight_bytes = (w1.size * 2 + w2.size * 2
                    + (b1.size + wd.size + bd.size + b2.size + 2 * D) * 4)
    cost = pl.CostEstimate(
        flops=int(B * t_pad * (4 * D * C + 2 * C * D + 2 * kernel_size * C + 10 * D)),
        transcendentals=int(B * t_pad * (2 * C + 1)),
        bytes_accessed=int(2 * B * t_pad * D * 4 + B * nt * halo_rows * D * 4
                           + weight_bytes),
    )

    def run(single_buffer_consts, gext_dtype):
        const_kw = ({"pipeline_mode": pl.Buffered(1)}
                    if single_buffer_consts else {})

        def const(shape):
            return pl.BlockSpec(shape, lambda b, t: (0,) * len(shape), **const_kw)

        grid_spec = pltpu.PrefetchScalarGridSpec(
            num_scalar_prefetch=0,
            grid=(B, nt),
            in_specs=[
                pl.BlockSpec((1, tile_t, D), lambda b, t: (b, t, 0)),           # x tile
                pl.BlockSpec((1, 1, halo_rows, D), lambda b, t: (b, t, 0, 0)),  # halo
                const((1, D)), const((1, D)),            # LayerNorm gamma / beta
                const((D, 2 * C)), const((1, 2 * C)),    # pw1 weight / bias (bf16/f32)
                const((kernel_size, C)), const((1, C)),  # depthwise (BN folded)
                const((C, D)), const((1, D)),            # pw2 weight (bf16) / bias
            ],
            out_specs=pl.BlockSpec((1, tile_t, D), lambda b, t: (b, t, 0)),
            scratch_shapes=[pltpu.VMEM((ext_rows, C), gext_dtype)],
        )
        return pl.pallas_call(
            kernel,
            grid_spec=grid_spec,
            out_shape=jax.ShapeDtypeStruct((B, t_pad, D), x.dtype),
            compiler_params=pltpu.CompilerParams(
                dimension_semantics=("parallel", "parallel"),
                vmem_limit_bytes=int(vmem_limit)),
            cost_estimate=cost,
        )(x_main, halo, params["ln_g"], params["ln_b"],
          w1, b1, wd, bd, w2, b2)

    # Preferred config first; degrade gracefully if a knob is unsupported on
    # this jax/Mosaic build (a kernel that does not run is worth nothing).
    out = None
    last_err = None
    for cfg in ((True, jnp.bfloat16), (True, jnp.float32), (False, jnp.float32)):
        try:
            out = run(*cfg)
            break
        except Exception as e:                       # pragma: no cover
            last_err = e
    if out is None:
        raise last_err

    return out[:, :T] if t_pad != T else out


def make_params(key, dim, kernel_size, expansion_factor=2):
    C = dim * expansion_factor
    CC = C * 2
    ks = jax.random.split(key, 8)
    ln_g = jnp.ones((1, dim), jnp.float32)
    ln_b = jnp.zeros((1, dim), jnp.float32)
    w1 = jax.random.normal(ks[0], (dim, CC), jnp.float32) * 0.1     # (in, out) of 1x1 conv
    b1 = jax.random.normal(ks[1], (1, CC), jnp.float32) * 0.1
    wd = jax.random.normal(ks[2], (kernel_size, C), jnp.float32) * 0.1  # wd[j, c] = torch_w[c, 0, j]
    bd = jax.random.normal(ks[3], (1, C), jnp.float32) * 0.1
    bn_gamma = 1.0 + 0.1 * jax.random.normal(ks[4], (1, C), jnp.float32)
    bn_beta = 0.1 * jax.random.normal(ks[5], (1, C), jnp.float32)
    bn_mean = jnp.zeros((1, C), jnp.float32)     # fresh running stats
    bn_var = jnp.ones((1, C), jnp.float32)
    bn_s = bn_gamma / jnp.sqrt(bn_var + 1e-5)
    bn_h = bn_beta - bn_mean * bn_s
    w2 = jax.random.normal(ks[6], (C, dim), jnp.float32) * 0.1
    b2 = jax.random.normal(ks[7], (1, dim), jnp.float32) * 0.1
    return dict(ln_g=ln_g, ln_b=ln_b, w1=w1, b1=b1, wd=wd, bd=bd,
                bn_s=bn_s, bn_h=bn_h, w2=w2, b2=b2)


def reference_forward(x, p, kernel_size):
    """Pure-JAX replica of the PyTorch forward (eval mode) with the same
    bf16-operand / f32-accumulation matmul precision as the kernel."""
    pad_l = kernel_size // 2
    pad_r = pad_l - (kernel_size + 1) % 2
    mu = x.mean(-1, keepdims=True)
    var = ((x - mu) ** 2).mean(-1, keepdims=True)
    xn = (x - mu) / jnp.sqrt(var + 1e-5) * p["ln_g"][0] + p["ln_b"][0]
    y = jnp.dot(xn.astype(jnp.bfloat16), p["w1"].astype(jnp.bfloat16),
                preferred_element_type=jnp.float32) + p["b1"][0]
    C = y.shape[-1] // 2
    g = y[..., :C] * jax.nn.sigmoid(y[..., C:])
    gp = jnp.pad(g, ((0, 0), (pad_l, pad_r), (0, 0)))
    T = x.shape[1]
    d = sum(gp[:, j:j + T, :] * p["wd"][j] for j in range(kernel_size)) + p["bd"][0]
    d = d * p["bn_s"][0] + p["bn_h"][0]
    d = d * jax.nn.sigmoid(d)
    out = jnp.dot(d.astype(jnp.bfloat16), p["w2"].astype(jnp.bfloat16),
                  preferred_element_type=jnp.float32) + p["b2"][0]
    return x + out


if __name__ == "__main__":
    B, T, dim = 2, 40, 32
    kernel_size = 5
    key = jax.random.PRNGKey(0)
    kx, kp = jax.random.split(key)
    x = jax.random.normal(kx, (B, T, dim), jnp.float32)
    params = make_params(kp, dim, kernel_size, expansion_factor=2)

    # tile_t=16 forces 3 time tiles (with a padded tail) to exercise the
    # tiled/halo/masking paths even at these small demo shapes.
    out = conv_module_forward(x, params, kernel_size, tile_t=16)
    out = jax.block_until_ready(out)

    ref = reference_forward(x, params, kernel_size)
    assert out.shape == (B, T, dim)
    # Loose tolerance: kernel uses bf16 matmul operands (matched in the
    # reference) plus a bf16 depthwise scratch (kernel-only).
    assert jnp.allclose(out, ref, atol=2e-2, rtol=2e-2), "mismatch vs. reference"
    print("KERNEL_OK")
</pallas_src>

<mosaic_0001>
module attributes {stable_mosaic.version = 11 : i64} {
  func.func @_conv_module_kernel(%arg0: i32, %arg1: i32, %arg2: memref<1x16x32xf32, #tpu.memory_space<vmem>>, %arg3: memref<1x1x4x32xf32, #tpu.memory_space<vmem>>, %arg4: memref<1x32xf32, #tpu.memory_space<vmem>>, %arg5: memref<1x32xf32, #tpu.memory_space<vmem>>, %arg6: memref<32x128xbf16, #tpu.memory_space<vmem>>, %arg7: memref<1x128xf32, #tpu.memory_space<vmem>>, %arg8: memref<5x64xf32, #tpu.memory_space<vmem>>, %arg9: memref<1x64xf32, #tpu.memory_space<vmem>>, %arg10: memref<64x32xbf16, #tpu.memory_space<vmem>>, %arg11: memref<1x32xf32, #tpu.memory_space<vmem>>, %arg12: memref<1x16x32xf32, #tpu.memory_space<vmem>>, %arg13: memref<24x64xbf16, #tpu.memory_space<vmem>>) attributes {dimension_semantics = [#tpu.dimension_semantics<parallel>, #tpu.dimension_semantics<parallel>], iteration_bounds = array<i64: 2, 3>, scalar_prefetch = 0 : i64, scratch_operands = 1 : i64, tpu.core_type = #tpu.core_type<tc>, window_params = [{transform_indices = @transform_0, window_bounds = array<i64: 1, 16, 32>}, {transform_indices = @transform_1, window_bounds = array<i64: 1, 1, 4, 32>}, {pipeline_mode = #tpu.pipeline_mode<synchronous>, transform_indices = @transform_2, window_bounds = array<i64: 1, 32>}, {pipeline_mode = #tpu.pipeline_mode<synchronous>, transform_indices = @transform_3, window_bounds = array<i64: 1, 32>}, {pipeline_mode = #tpu.pipeline_mode<synchronous>, transform_indices = @transform_4, window_bounds = array<i64: 32, 128>}, {pipeline_mode = #tpu.pipeline_mode<synchronous>, transform_indices = @transform_5, window_bounds = array<i64: 1, 128>}, {pipeline_mode = #tpu.pipeline_mode<synchronous>, transform_indices = @transform_6, window_bounds = array<i64: 5, 64>}, {pipeline_mode = #tpu.pipeline_mode<synchronous>, transform_indices = @transform_7, window_bounds = array<i64: 1, 64>}, {pipeline_mode = #tpu.pipeline_mode<synchronous>, transform_indices = @transform_8, window_bounds = array<i64: 64, 32>}, {pipeline_mode = #tpu.pipeline_mode<synchronous>, transform_indices = @transform_9, window_bounds = array<i64: 1, 32>}, {transform_indices = @transform_10, window_bounds = array<i64: 1, 16, 32>}]} {
    %c16_i32 = arith.constant 16 : i32
    %0 = arith.muli %arg1, %c16_i32 : i32
    %c0 = arith.constant 0 : index
    %c0_0 = arith.constant 0 : index
    %c0_1 = arith.constant 0 : index
    %1 = vector.load %arg2[%c0, %c0_0, %c0_1] : memref<1x16x32xf32, #tpu.memory_space<vmem>>, vector<1x16x32xf32>
    %2 = vector.shape_cast %1 : vector<1x16x32xf32> to vector<16x32xf32>
    %c0_2 = arith.constant 0 : index
    %c0_3 = arith.constant 0 : index
    %c0_4 = arith.constant 0 : index
    %c0_5 = arith.constant 0 : index
    %3 = vector.load %arg3[%c0_2, %c0_3, %c0_4, %c0_5] : memref<1x1x4x32xf32, #tpu.memory_space<vmem>>, vector<1x1x4x32xf32>
    %4 = vector.shape_cast %3 : vector<1x1x4x32xf32> to vector<4x32xf32>
    %5 = vector.extract_strided_slice %4 {offsets = [0, 0], sizes = [2, 32], strides = [1, 1]} : vector<4x32xf32> to vector<2x32xf32>
    %6 = vector.extract_strided_slice %4 {offsets = [2, 0], sizes = [2, 32], strides = [1, 1]} : vector<4x32xf32> to vector<2x32xf32>
    %7 = tpu.concatenate %5, %2, %6 in 0 : vector<2x32xf32>, vector<16x32xf32>, vector<2x32xf32> -> vector<20x32xf32>
    %cst = arith.constant dense<0.000000e+00> : vector<20xf32>
    %8 = vector.multi_reduction <add>, %7, %cst [1] : vector<20x32xf32> to vector<20xf32>
    %9 = vector.shape_cast %8 : vector<20xf32> to vector<20x1xf32>
    %cst_6 = arith.constant 3.200000e+01 : f32
    %10 = vector.broadcast %cst_6 : f32 to vector<20x1xf32>
    %11 = arith.divf %9, %10 : vector<20x1xf32>
    %12 = vector.broadcast %11 : vector<20x1xf32> to vector<20x32xf32>
    %13 = arith.subf %7, %12 : vector<20x32xf32>
    %14 = arith.mulf %13, %13 : vector<20x32xf32>
    %cst_7 = arith.constant dense<0.000000e+00> : vector<20xf32>
    %15 = vector.multi_reduction <add>, %14, %cst_7 [1] : vector<20x32xf32> to vector<20xf32>
    %16 = vector.shape_cast %15 : vector<20xf32> to vector<20x1xf32>
    %cst_8 = arith.constant 3.200000e+01 : f32
    %17 = vector.broadcast %cst_8 : f32 to vector<20x1xf32>
    %18 = arith.divf %16, %17 : vector<20x1xf32>
    %19 = vector.broadcast %11 : vector<20x1xf32> to vector<20x32xf32>
    %20 = arith.subf %7, %19 : vector<20x32xf32>
    %cst_9 = arith.constant 9.99999974E-6 : f32
    %21 = vector.broadcast %cst_9 : f32 to vector<20x1xf32>
    %22 = arith.addf %18, %21 : vector<20x1xf32>
    %23 = math.rsqrt %22 : vector<20x1xf32>
    %24 = vector.broadcast %23 : vector<20x1xf32> to vector<20x32xf32>
    %25 = arith.mulf %20, %24 : vector<20x32xf32>
    %c0_10 = arith.constant 0 : index
    %c0_11 = arith.constant 0 : index
    %26 = vector.load %arg4[%c0_10, %c0_11] : memref<1x32xf32, #tpu.memory_space<vmem>>, vector<1x32xf32>
    %27 = vector.broadcast %26 : vector<1x32xf32> to vector<20x32xf32>
    %28 = arith.mulf %25, %27 : vector<20x32xf32>
    %c0_12 = arith.constant 0 : index
    %c0_13 = arith.constant 0 : index
    %29 = vector.load %arg5[%c0_12, %c0_13] : memref<1x32xf32, #tpu.memory_space<vmem>>, vector<1x32xf32>
    %30 = vector.broadcast %29 : vector<1x32xf32> to vector<20x32xf32>
    %31 = arith.addf %28, %30 : vector<20x32xf32>
    %32 = arith.truncf %31 : vector<20x32xf32> to vector<20x32xbf16>
    %c0_14 = arith.constant 0 : index
    %c0_15 = arith.constant 0 : index
    %33 = vector.load %arg6[%c0_14, %c0_15] : memref<32x128xbf16, #tpu.memory_space<vmem>>, vector<32x128xbf16>
    %cst_16 = arith.constant dense<0.000000e+00> : vector<20x128xf32>
    %34 = tpu.matmul %32, %33, %cst_16 {dimension_numbers = #tpu.dot_dimension_numbers<[1], [0], [0], [1], [0, 0, 1, 1], [], []>} : vector<20x32xbf16>, vector<32x128xbf16>, vector<20x128xf32> -> vector<20x128xf32>
    %c0_17 = arith.constant 0 : index
    %c0_18 = arith.constant 0 : index
    %35 = vector.load %arg7[%c0_17, %c0_18] : memref<1x128xf32, #tpu.memory_space<vmem>>, vector<1x128xf32>
    %36 = vector.broadcast %35 : vector<1x128xf32> to vector<20x128xf32>
    %37 = arith.addf %34, %36 : vector<20x128xf32>
    %38 = vector.extract_strided_slice %37 {offsets = [0, 0], sizes = [20, 64], strides = [1, 1]} : vector<20x128xf32> to vector<20x64xf32>
    %39 = vector.extract_strided_slice %37 {offsets = [0, 64], sizes = [20, 64], strides = [1, 1]} : vector<20x128xf32> to vector<20x64xf32>
    %40 = arith.negf %39 : vector<20x64xf32>
    %41 = math.exp %40 : vector<20x64xf32>
    %cst_19 = arith.constant 1.000000e+00 : f32
    %42 = vector.broadcast %cst_19 : f32 to vector<20x64xf32>
    %43 = arith.addf %42, %41 : vector<20x64xf32>
    %44 = arith.divf %42, %43 : vector<20x64xf32>
    %45 = arith.mulf %38, %44 : vector<20x64xf32>
    %c2_i32 = arith.constant 2 : i32
    %46 = arith.cmpi slt, %0, %c2_i32 : i32
    %c16_i32_20 = arith.constant 16 : i32
    %47 = arith.addi %0, %c16_i32_20 : i32
    %c2_i32_21 = arith.constant 2 : i32
    %48 = arith.addi %47, %c2_i32_21 : i32
    %c40_i32 = arith.constant 40 : i32
    %49 = arith.cmpi sgt, %48, %c40_i32 : i32
    %50 = arith.ori %46, %49 : i1
    %51 = arith.extui %50 : i1 to i32
    %c0_i32 = arith.constant 0 : i32
    %52 = arith.cmpi ne, %51, %c0_i32 : i32
    scf.if %52 {
      %c2_i32_43 = arith.constant 2 : i32
      %107 = arith.subi %0, %c2_i32_43 : i32
      %108 = tpu.iota {dimensions = array<i32: 0>} : vector<20x1xi32>
      %109 = vector.broadcast %107 : i32 to vector<20x1xi32>
      %110 = arith.addi %109, %108 : vector<20x1xi32>
      %c0_i32_44 = arith.constant 0 : i32
      %111 = vector.broadcast %c0_i32_44 : i32 to vector<20x1xi32>
      %112 = arith.cmpi sge, %110, %111 : vector<20x1xi32>
      %c40_i32_45 = arith.constant 40 : i32
      %113 = vector.broadcast %c40_i32_45 : i32 to vector<20x1xi32>
      %114 = arith.cmpi slt, %110, %113 : vector<20x1xi32>
      %115 = arith.andi %112, %114 : vector<20x1xi1>
      %cst_46 = arith.constant 0.000000e+00 : f32
      %116 = vector.shape_cast %115 : vector<20x1xi1> to vector<20x1xi1>
      %117 = vector.broadcast %116 : vector<20x1xi1> to vector<20x64xi1>
      %118 = vector.broadcast %cst_46 : f32 to vector<20x64xf32>
      %119 = arith.select %117, %45, %118 : vector<20x64xi1>, vector<20x64xf32>
      %120 = arith.truncf %119 : vector<20x64xf32> to vector<20x64xbf16>
      %c0_47 = arith.constant 0 : index
      %c0_48 = arith.constant 0 : index
      %121 = vector.load %arg13[%c0_47, %c0_48] : memref<24x64xbf16, #tpu.memory_space<vmem>>, vector<20x64xbf16>
      tpu.vector_store %arg13[%c0_47, %c0_48], %120 {strides = array<i32>} : memref<24x64xbf16, #tpu.memory_space<vmem>>, vector<20x64xbf16>,
    } else {
    }
    %true = arith.constant true
    %53 = arith.xori %50, %true : i1
    %54 = arith.extui %53 : i1 to i32
    %c0_i32_22 = arith.constant 0 : i32
    %55 = arith.cmpi ne, %54, %c0_i32_22 : i32
    scf.if %55 {
      %107 = arith.truncf %45 : vector<20x64xf32> to vector<20x64xbf16>
      %c0_43 = arith.constant 0 : index
      %c0_44 = arith.constant 0 : index
      %108 = vector.load %arg13[%c0_43, %c0_44] : memref<24x64xbf16, #tpu.memory_space<vmem>>, vector<20x64xbf16>
      tpu.vector_store %arg13[%c0_43, %c0_44], %107 {strides = array<i32>} : memref<24x64xbf16, #tpu.memory_space<vmem>>, vector<20x64xbf16>,
    } else {
    }
    %c0_23 = arith.constant 0 : index
    %c0_24 = arith.constant 0 : index
    %56 = vector.load %arg8[%c0_23, %c0_24] : memref<5x64xf32, #tpu.memory_space<vmem>>, vector<5x64xf32>
    %cst_25 = arith.constant 0.000000e+00 : f32
    %57 = vector.broadcast %cst_25 : f32 to vector<16x64xf32>
    %c0_26 = arith.constant 0 : index
    %c0_27 = arith.constant 0 : index
    %58 = vector.load %arg13[%c0_26, %c0_27] : memref<24x64xbf16, #tpu.memory_space<vmem>>, vector<16x64xbf16>
    %59 = arith.extf %58 : vector<16x64xbf16> to vector<16x64xf32>
    %60 = vector.extract_strided_slice %56 {offsets = [0, 0], sizes = [1, 64], strides = [1, 1]} : vector<5x64xf32> to vector<1x64xf32>
    %61 = vector.broadcast %60 : vector<1x64xf32> to vector<16x64xf32>
    %62 = arith.mulf %59, %61 : vector<16x64xf32>
    %63 = arith.addf %57, %62 : vector<16x64xf32>
    %c1 = arith.constant 1 : index
    %c0_28 = arith.constant 0 : index
    %64 = vector.load %arg13[%c1, %c0_28] : memref<24x64xbf16, #tpu.memory_space<vmem>>, vector<16x64xbf16>
    %65 = arith.extf %64 : vector<16x64xbf16> to vector<16x64xf32>
    %66 = vector.extract_strided_slice %56 {offsets = [1, 0], sizes = [1, 64], strides = [1, 1]} : vector<5x64xf32> to vector<1x64xf32>
    %67 = vector.broadcast %66 : vector<1x64xf32> to vector<16x64xf32>
    %68 = arith.mulf %65, %67 : vector<16x64xf32>
    %69 = arith.addf %63, %68 : vector<16x64xf32>
    %c2 = arith.constant 2 : index
    %c0_29 = arith.constant 0 : index
    %70 = vector.load %arg13[%c2, %c0_29] : memref<24x64xbf16, #tpu.memory_space<vmem>>, vector<16x64xbf16>
    %71 = arith.extf %70 : vector<16x64xbf16> to vector<16x64xf32>
    %72 = vector.extract_strided_slice %56 {offsets = [2, 0], sizes = [1, 64], strides = [1, 1]} : vector<5x64xf32> to vector<1x64xf32>
    %73 = vector.broadcast %72 : vector<1x64xf32> to vector<16x64xf32>
    %74 = arith.mulf %71, %73 : vector<16x64xf32>
    %75 = arith.addf %69, %74 : vector<16x64xf32>
    %c3 = arith.constant 3 : index
    %c0_30 = arith.constant 0 : index
    %76 = vector.load %arg13[%c3, %c0_30] : memref<24x64xbf16, #tpu.memory_space<vmem>>, vector<16x64xbf16>
    %77 = arith.extf %76 : vector<16x64xbf16> to vector<16x64xf32>
    %78 = vector.extract_strided_slice %56 {offsets = [3, 0], sizes = [1, 64], strides = [1, 1]} : vector<5x64xf32> to vector<1x64xf32>
    %79 = vector.broadcast %78 : vector<1x64xf32> to vector<16x64xf32>
    %80 = arith.mulf %77, %79 : vector<16x64xf32>
    %81 = arith.addf %75, %80 : vector<16x64xf32>
    %c4 = arith.constant 4 : index
    %c0_31 = arith.constant 0 : index
    %82 = vector.load %arg13[%c4, %c0_31] : memref<24x64xbf16, #tpu.memory_space<vmem>>, vector<16x64xbf16>
    %83 = arith.extf %82 : vector<16x64xbf16> to vector<16x64xf32>
    %84 = vector.extract_strided_slice %56 {offsets = [4, 0], sizes = [1, 64], strides = [1, 1]} : vector<5x64xf32> to vector<1x64xf32>
    %85 = vector.broadcast %84 : vector<1x64xf32> to vector<16x64xf32>
    %86 = arith.mulf %83, %85 : vector<16x64xf32>
    %87 = arith.addf %81, %86 : vector<16x64xf32>
    %c0_32 = arith.constant 0 : index
    %c0_33 = arith.constant 0 : index
    %88 = vector.load %arg9[%c0_32, %c0_33] : memref<1x64xf32, #tpu.memory_space<vmem>>, vector<1x64xf32>
    %89 = vector.broadcast %88 : vector<1x64xf32> to vector<16x64xf32>
    %90 = arith.addf %87, %89 : vector<16x64xf32>
    %91 = arith.negf %90 : vector<16x64xf32>
    %92 = math.exp %91 : vector<16x64xf32>
    %cst_34 = arith.constant 1.000000e+00 : f32
    %93 = vector.broadcast %cst_34 : f32 to vector<16x64xf32>
    %94 = arith.addf %93, %92 : vector<16x64xf32>
    %95 = arith.divf %93, %94 : vector<16x64xf32>
    %96 = arith.mulf %90, %95 : vector<16x64xf32>
    %97 = arith.truncf %96 : vector<16x64xf32> to vector<16x64xbf16>
    %c0_35 = arith.constant 0 : index
    %c0_36 = arith.constant 0 : index
    %98 = vector.load %arg10[%c0_35, %c0_36] : memref<64x32xbf16, #tpu.memory_space<vmem>>, vector<64x32xbf16>
    %cst_37 = arith.constant dense<0.000000e+00> : vector<16x32xf32>
    %99 = tpu.matmul %97, %98, %cst_37 {dimension_numbers = #tpu.dot_dimension_numbers<[1], [0], [0], [1], [0, 0, 1, 1], [], []>} : vector<16x64xbf16>, vector<64x32xbf16>, vector<16x32xf32> -> vector<16x32xf32>
    %c0_38 = arith.constant 0 : index
    %c0_39 = arith.constant 0 : index
    %100 = vector.load %arg11[%c0_38, %c0_39] : memref<1x32xf32, #tpu.memory_space<vmem>>, vector<1x32xf32>
    %101 = vector.broadcast %100 : vector<1x32xf32> to vector<16x32xf32>
    %102 = arith.addf %99, %101 : vector<16x32xf32>
    %103 = arith.addf %2, %102 : vector<16x32xf32>
    %c0_40 = arith.constant 0 : index
    %c0_41 = arith.constant 0 : index
    %c0_42 = arith.constant 0 : index
    %104 = vector.load %arg12[%c0_40, %c0_41, %c0_42] : memref<1x16x32xf32, #tpu.memory_space<vmem>>, vector<1x16x32xf32>
    %105 = vector.shape_cast %104 : vector<1x16x32xf32> to vector<16x32xf32>
    %106 = vector.shape_cast %103 : vector<16x32xf32> to vector<1x16x32xf32>
    tpu.vector_store %arg12[%c0_40, %c0_41, %c0_42], %106 {strides = array<i32>} : memref<1x16x32xf32, #tpu.memory_space<vmem>>, vector<1x16x32xf32>,
    return
  }
  func.func @transform_0(%arg0: i32, %arg1: i32) -> (i32, i32, i32) {
    %c0_i32 = arith.constant 0 : i32
    %c0_i32_0 = arith.constant 0 : i32
    return %arg0, %arg1, %c0_i32 : i32, i32, i32
  }
  func.func @transform_1(%arg0: i32, %arg1: i32) -> (i32, i32, i32, i32) {
    %c0_i32 = arith.constant 0 : i32
    %c0_i32_0 = arith.constant 0 : i32
    %c0_i32_1 = arith.constant 0 : i32
    return %arg0, %arg1, %c0_i32, %c0_i32_0 : i32, i32, i32, i32
  }
  func.func @transform_2(%arg0: i32, %arg1: i32) -> (i32, i32) {
    %c0_i32 = arith.constant 0 : i32
    %c0_i32_0 = arith.constant 0 : i32
    %c0_i32_1 = arith.constant 0 : i32
    return %c0_i32, %c0_i32_0 : i32, i32
  }
  func.func @transform_3(%arg0: i32, %arg1: i32) -> (i32, i32) {
    %c0_i32 = arith.constant 0 : i32
    %c0_i32_0 = arith.constant 0 : i32
    %c0_i32_1 = arith.constant 0 : i32
    return %c0_i32, %c0_i32_0 : i32, i32
  }
  func.func @transform_4(%arg0: i32, %arg1: i32) -> (i32, i32) {
    %c0_i32 = arith.constant 0 : i32
    %c0_i32_0 = arith.constant 0 : i32
    %c0_i32_1 = arith.constant 0 : i32
    return %c0_i32, %c0_i32_0 : i32, i32
  }
  func.func @transform_5(%arg0: i32, %arg1: i32) -> (i32, i32) {
    %c0_i32 = arith.constant 0 : i32
    %c0_i32_0 = arith.constant 0 : i32
    %c0_i32_1 = arith.constant 0 : i32
    return %c0_i32, %c0_i32_0 : i32, i32
  }
  func.func @transform_6(%arg0: i32, %arg1: i32) -> (i32, i32) {
    %c0_i32 = arith.constant 0 : i32
    %c0_i32_0 = arith.constant 0 : i32
    %c0_i32_1 = arith.constant 0 : i32
    return %c0_i32, %c0_i32_0 : i32, i32
  }
  func.func @transform_7(%arg0: i32, %arg1: i32) -> (i32, i32) {
    %c0_i32 = arith.constant 0 : i32
    %c0_i32_0 = arith.constant 0 : i32
    %c0_i32_1 = arith.constant 0 : i32
    return %c0_i32, %c0_i32_0 : i32, i32
  }
  func.func @transform_8(%arg0: i32, %arg1: i32) -> (i32, i32) {
    %c0_i32 = arith.constant 0 : i32
    %c0_i32_0 = arith.constant 0 : i32
    %c0_i32_1 = arith.constant 0 : i32
    return %c0_i32, %c0_i32_0 : i32, i32
  }
  func.func @transform_9(%arg0: i32, %arg1: i32) -> (i32, i32) {
    %c0_i32 = arith.constant 0 : i32
    %c0_i32_0 = arith.constant 0 : i32
    %c0_i32_1 = arith.constant 0 : i32
    return %c0_i32, %c0_i32_0 : i32, i32
  }
  func.func @transform_10(%arg0: i32, %arg1: i32) -> (i32, i32, i32) {
    %c0_i32 = arith.constant 0 : i32
    %c0_i32_0 = arith.constant 0 : i32
    return %arg0, %arg1, %c0_i32 : i32, i32, i32
  }
}

module attributes {stable_mosaic.version = 11 : i64} {
  func.func @_conv_module_kernel(%arg0: i32, %arg1: i32, %arg2: memref<1x16x32xf32, #tpu.memory_space<vmem>>, %arg3: memref<1x1x4x32xf32, #tpu.memory_space<vmem>>, %arg4: memref<1x32xf32, #tpu.memory_space<vmem>>, %arg5: memref<1x32xf32, #tpu.memory_space<vmem>>, %arg6: memref<32x128xbf16, #tpu.memory_space<vmem>>, %arg7: memref<1x128xf32, #tpu.memory_space<vmem>>, %arg8: memref<5x64xf32, #tpu.memory_space<vmem>>, %arg9: memref<1x64xf32, #tpu.memory_space<vmem>>, %arg10: memref<64x32xbf16, #tpu.memory_space<vmem>>, %arg11: memref<1x32xf32, #tpu.memory_space<vmem>>, %arg12: memref<1x16x32xf32, #tpu.memory_space<vmem>>, %arg13: memref<24x64xf32, #tpu.memory_space<vmem>>) attributes {dimension_semantics = [#tpu.dimension_semantics<parallel>, #tpu.dimension_semantics<parallel>], iteration_bounds = array<i64: 2, 3>, scalar_prefetch = 0 : i64, scratch_operands = 1 : i64, tpu.core_type = #tpu.core_type<tc>, window_params = [{transform_indices = @transform_0, window_bounds = array<i64: 1, 16, 32>}, {transform_indices = @transform_1, window_bounds = array<i64: 1, 1, 4, 32>}, {pipeline_mode = #tpu.pipeline_mode<synchronous>, transform_indices = @transform_2, window_bounds = array<i64: 1, 32>}, {pipeline_mode = #tpu.pipeline_mode<synchronous>, transform_indices = @transform_3, window_bounds = array<i64: 1, 32>}, {pipeline_mode = #tpu.pipeline_mode<synchronous>, transform_indices = @transform_4, window_bounds = array<i64: 32, 128>}, {pipeline_mode = #tpu.pipeline_mode<synchronous>, transform_indices = @transform_5, window_bounds = array<i64: 1, 128>}, {pipeline_mode = #tpu.pipeline_mode<synchronous>, transform_indices = @transform_6, window_bounds = array<i64: 5, 64>}, {pipeline_mode = #tpu.pipeline_mode<synchronous>, transform_indices = @transform_7, window_bounds = array<i64: 1, 64>}, {pipeline_mode = #tpu.pipeline_mode<synchronous>, transform_indices = @transform_8, window_bounds = array<i64: 64, 32>}, {pipeline_mode = #tpu.pipeline_mode<synchronous>, transform_indices = @transform_9, window_bounds = array<i64: 1, 32>}, {transform_indices = @transform_10, window_bounds = array<i64: 1, 16, 32>}]} {
    %c16_i32 = arith.constant 16 : i32
    %0 = arith.muli %arg1, %c16_i32 : i32
    %c0 = arith.constant 0 : index
    %c0_0 = arith.constant 0 : index
    %c0_1 = arith.constant 0 : index
    %1 = vector.load %arg2[%c0, %c0_0, %c0_1] : memref<1x16x32xf32, #tpu.memory_space<vmem>>, vector<1x16x32xf32>
    %2 = vector.shape_cast %1 : vector<1x16x32xf32> to vector<16x32xf32>
    %c0_2 = arith.constant 0 : index
    %c0_3 = arith.constant 0 : index
    %c0_4 = arith.constant 0 : index
    %c0_5 = arith.constant 0 : index
    %3 = vector.load %arg3[%c0_2, %c0_3, %c0_4, %c0_5] : memref<1x1x4x32xf32, #tpu.memory_space<vmem>>, vector<1x1x4x32xf32>
    %4 = vector.shape_cast %3 : vector<1x1x4x32xf32> to vector<4x32xf32>
    %5 = vector.extract_strided_slice %4 {offsets = [0, 0], sizes = [2, 32], strides = [1, 1]} : vector<4x32xf32> to vector<2x32xf32>
    %6 = vector.extract_strided_slice %4 {offsets = [2, 0], sizes = [2, 32], strides = [1, 1]} : vector<4x32xf32> to vector<2x32xf32>
    %7 = tpu.concatenate %5, %2, %6 in 0 : vector<2x32xf32>, vector<16x32xf32>, vector<2x32xf32> -> vector<20x32xf32>
    %cst = arith.constant dense<0.000000e+00> : vector<20xf32>
    %8 = vector.multi_reduction <add>, %7, %cst [1] : vector<20x32xf32> to vector<20xf32>
    %9 = vector.shape_cast %8 : vector<20xf32> to vector<20x1xf32>
    %cst_6 = arith.constant 3.200000e+01 : f32
    %10 = vector.broadcast %cst_6 : f32 to vector<20x1xf32>
    %11 = arith.divf %9, %10 : vector<20x1xf32>
    %12 = vector.broadcast %11 : vector<20x1xf32> to vector<20x32xf32>
    %13 = arith.subf %7, %12 : vector<20x32xf32>
    %14 = arith.mulf %13, %13 : vector<20x32xf32>
    %cst_7 = arith.constant dense<0.000000e+00> : vector<20xf32>
    %15 = vector.multi_reduction <add>, %14, %cst_7 [1] : vector<20x32xf32> to vector<20xf32>
    %16 = vector.shape_cast %15 : vector<20xf32> to vector<20x1xf32>
    %cst_8 = arith.constant 3.200000e+01 : f32
    %17 = vector.broadcast %cst_8 : f32 to vector<20x1xf32>
    %18 = arith.divf %16, %17 : vector<20x1xf32>
    %19 = vector.broadcast %11 : vector<20x1xf32> to vector<20x32xf32>
    %20 = arith.subf %7, %19 : vector<20x32xf32>
    %cst_9 = arith.constant 9.99999974E-6 : f32
    %21 = vector.broadcast %cst_9 : f32 to vector<20x1xf32>
    %22 = arith.addf %18, %21 : vector<20x1xf32>
    %23 = math.rsqrt %22 : vector<20x1xf32>
    %24 = vector.broadcast %23 : vector<20x1xf32> to vector<20x32xf32>
    %25 = arith.mulf %20, %24 : vector<20x32xf32>
    %c0_10 = arith.constant 0 : index
    %c0_11 = arith.constant 0 : index
    %26 = vector.load %arg4[%c0_10, %c0_11] : memref<1x32xf32, #tpu.memory_space<vmem>>, vector<1x32xf32>
    %27 = vector.broadcast %26 : vector<1x32xf32> to vector<20x32xf32>
    %28 = arith.mulf %25, %27 : vector<20x32xf32>
    %c0_12 = arith.constant 0 : index
    %c0_13 = arith.constant 0 : index
    %29 = vector.load %arg5[%c0_12, %c0_13] : memref<1x32xf32, #tpu.memory_space<vmem>>, vector<1x32xf32>
    %30 = vector.broadcast %29 : vector<1x32xf32> to vector<20x32xf32>
    %31 = arith.addf %28, %30 : vector<20x32xf32>
    %32 = arith.truncf %31 : vector<20x32xf32> to vector<20x32xbf16>
    %c0_14 = arith.constant 0 : index
    %c0_15 = arith.constant 0 : index
    %33 = vector.load %arg6[%c0_14, %c0_15] : memref<32x128xbf16, #tpu.memory_space<vmem>>, vector<32x128xbf16>
    %cst_16 = arith.constant dense<0.000000e+00> : vector<20x128xf32>
    %34 = tpu.matmul %32, %33, %cst_16 {dimension_numbers = #tpu.dot_dimension_numbers<[1], [0], [0], [1], [0, 0, 1, 1], [], []>} : vector<20x32xbf16>, vector<32x128xbf16>, vector<20x128xf32> -> vector<20x128xf32>
    %c0_17 = arith.constant 0 : index
    %c0_18 = arith.constant 0 : index
    %35 = vector.load %arg7[%c0_17, %c0_18] : memref<1x128xf32, #tpu.memory_space<vmem>>, vector<1x128xf32>
    %36 = vector.broadcast %35 : vector<1x128xf32> to vector<20x128xf32>
    %37 = arith.addf %34, %36 : vector<20x128xf32>
    %38 = vector.extract_strided_slice %37 {offsets = [0, 0], sizes = [20, 64], strides = [1, 1]} : vector<20x128xf32> to vector<20x64xf32>
    %39 = vector.extract_strided_slice %37 {offsets = [0, 64], sizes = [20, 64], strides = [1, 1]} : vector<20x128xf32> to vector<20x64xf32>
    %40 = arith.negf %39 : vector<20x64xf32>
    %41 = math.exp %40 : vector<20x64xf32>
    %cst_19 = arith.constant 1.000000e+00 : f32
    %42 = vector.broadcast %cst_19 : f32 to vector<20x64xf32>
    %43 = arith.addf %42, %41 : vector<20x64xf32>
    %44 = arith.divf %42, %43 : vector<20x64xf32>
    %45 = arith.mulf %38, %44 : vector<20x64xf32>
    %c2_i32 = arith.constant 2 : i32
    %46 = arith.cmpi slt, %0, %c2_i32 : i32
    %c16_i32_20 = arith.constant 16 : i32
    %47 = arith.addi %0, %c16_i32_20 : i32
    %c2_i32_21 = arith.constant 2 : i32
    %48 = arith.addi %47, %c2_i32_21 : i32
    %c40_i32 = arith.constant 40 : i32
    %49 = arith.cmpi sgt, %48, %c40_i32 : i32
    %50 = arith.ori %46, %49 : i1
    %51 = arith.extui %50 : i1 to i32
    %c0_i32 = arith.constant 0 : i32
    %52 = arith.cmpi ne, %51, %c0_i32 : i32
    scf.if %52 {
      %c2_i32_43 = arith.constant 2 : i32
      %102 = arith.subi %0, %c2_i32_43 : i32
      %103 = tpu.iota {dimensions = array<i32: 0>} : vector<20x1xi32>
      %104 = vector.broadcast %102 : i32 to vector<20x1xi32>
      %105 = arith.addi %104, %103 : vector<20x1xi32>
      %c0_i32_44 = arith.constant 0 : i32
      %106 = vector.broadcast %c0_i32_44 : i32 to vector<20x1xi32>
      %107 = arith.cmpi sge, %105, %106 : vector<20x1xi32>
      %c40_i32_45 = arith.constant 40 : i32
      %108 = vector.broadcast %c40_i32_45 : i32 to vector<20x1xi32>
      %109 = arith.cmpi slt, %105, %108 : vector<20x1xi32>
      %110 = arith.andi %107, %109 : vector<20x1xi1>
      %cst_46 = arith.constant 0.000000e+00 : f32
      %111 = vector.shape_cast %110 : vector<20x1xi1> to vector<20x1xi1>
      %112 = vector.broadcast %111 : vector<20x1xi1> to vector<20x64xi1>
      %113 = vector.broadcast %cst_46 : f32 to vector<20x64xf32>
      %114 = arith.select %112, %45, %113 : vector<20x64xi1>, vector<20x64xf32>
      %c0_47 = arith.constant 0 : index
      %c0_48 = arith.constant 0 : index
      %115 = vector.load %arg13[%c0_47, %c0_48] : memref<24x64xf32, #tpu.memory_space<vmem>>, vector<20x64xf32>
      tpu.vector_store %arg13[%c0_47, %c0_48], %114 {strides = array<i32>} : memref<24x64xf32, #tpu.memory_space<vmem>>, vector<20x64xf32>,
    } else {
    }
    %true = arith.constant true
    %53 = arith.xori %50, %true : i1
    %54 = arith.extui %53 : i1 to i32
    %c0_i32_22 = arith.constant 0 : i32
    %55 = arith.cmpi ne, %54, %c0_i32_22 : i32
    scf.if %55 {
      %c0_43 = arith.constant 0 : index
      %c0_44 = arith.constant 0 : index
      %102 = vector.load %arg13[%c0_43, %c0_44] : memref<24x64xf32, #tpu.memory_space<vmem>>, vector<20x64xf32>
      tpu.vector_store %arg13[%c0_43, %c0_44], %45 {strides = array<i32>} : memref<24x64xf32, #tpu.memory_space<vmem>>, vector<20x64xf32>,
    } else {
    }
    %c0_23 = arith.constant 0 : index
    %c0_24 = arith.constant 0 : index
    %56 = vector.load %arg8[%c0_23, %c0_24] : memref<5x64xf32, #tpu.memory_space<vmem>>, vector<5x64xf32>
    %cst_25 = arith.constant 0.000000e+00 : f32
    %57 = vector.broadcast %cst_25 : f32 to vector<16x64xf32>
    %c0_26 = arith.constant 0 : index
    %c0_27 = arith.constant 0 : index
    %58 = vector.load %arg13[%c0_26, %c0_27] : memref<24x64xf32, #tpu.memory_space<vmem>>, vector<16x64xf32>
    %59 = vector.extract_strided_slice %56 {offsets = [0, 0], sizes = [1, 64], strides = [1, 1]} : vector<5x64xf32> to vector<1x64xf32>
    %60 = vector.broadcast %59 : vector<1x64xf32> to vector<16x64xf32>
    %61 = arith.mulf %58, %60 : vector<16x64xf32>
    %62 = arith.addf %57, %61 : vector<16x64xf32>
    %c1 = arith.constant 1 : index
    %c0_28 = arith.constant 0 : index
    %63 = vector.load %arg13[%c1, %c0_28] : memref<24x64xf32, #tpu.memory_space<vmem>>, vector<16x64xf32>
    %64 = vector.extract_strided_slice %56 {offsets = [1, 0], sizes = [1, 64], strides = [1, 1]} : vector<5x64xf32> to vector<1x64xf32>
    %65 = vector.broadcast %64 : vector<1x64xf32> to vector<16x64xf32>
    %66 = arith.mulf %63, %65 : vector<16x64xf32>
    %67 = arith.addf %62, %66 : vector<16x64xf32>
    %c2 = arith.constant 2 : index
    %c0_29 = arith.constant 0 : index
    %68 = vector.load %arg13[%c2, %c0_29] : memref<24x64xf32, #tpu.memory_space<vmem>>, vector<16x64xf32>
    %69 = vector.extract_strided_slice %56 {offsets = [2, 0], sizes = [1, 64], strides = [1, 1]} : vector<5x64xf32> to vector<1x64xf32>
    %70 = vector.broadcast %69 : vector<1x64xf32> to vector<16x64xf32>
    %71 = arith.mulf %68, %70 : vector<16x64xf32>
    %72 = arith.addf %67, %71 : vector<16x64xf32>
    %c3 = arith.constant 3 : index
    %c0_30 = arith.constant 0 : index
    %73 = vector.load %arg13[%c3, %c0_30] : memref<24x64xf32, #tpu.memory_space<vmem>>, vector<16x64xf32>
    %74 = vector.extract_strided_slice %56 {offsets = [3, 0], sizes = [1, 64], strides = [1, 1]} : vector<5x64xf32> to vector<1x64xf32>
    %75 = vector.broadcast %74 : vector<1x64xf32> to vector<16x64xf32>
    %76 = arith.mulf %73, %75 : vector<16x64xf32>
    %77 = arith.addf %72, %76 : vector<16x64xf32>
    %c4 = arith.constant 4 : index
    %c0_31 = arith.constant 0 : index
    %78 = vector.load %arg13[%c4, %c0_31] : memref<24x64xf32, #tpu.memory_space<vmem>>, vector<16x64xf32>
    %79 = vector.extract_strided_slice %56 {offsets = [4, 0], sizes = [1, 64], strides = [1, 1]} : vector<5x64xf32> to vector<1x64xf32>
    %80 = vector.broadcast %79 : vector<1x64xf32> to vector<16x64xf32>
    %81 = arith.mulf %78, %80 : vector<16x64xf32>
    %82 = arith.addf %77, %81 : vector<16x64xf32>
    %c0_32 = arith.constant 0 : index
    %c0_33 = arith.constant 0 : index
    %83 = vector.load %arg9[%c0_32, %c0_33] : memref<1x64xf32, #tpu.memory_space<vmem>>, vector<1x64xf32>
    %84 = vector.broadcast %83 : vector<1x64xf32> to vector<16x64xf32>
    %85 = arith.addf %82, %84 : vector<16x64xf32>
    %86 = arith.negf %85 : vector<16x64xf32>
    %87 = math.exp %86 : vector<16x64xf32>
    %cst_34 = arith.constant 1.000000e+00 : f32
    %88 = vector.broadcast %cst_34 : f32 to vector<16x64xf32>
    %89 = arith.addf %88, %87 : vector<16x64xf32>
    %90 = arith.divf %88, %89 : vector<16x64xf32>
    %91 = arith.mulf %85, %90 : vector<16x64xf32>
    %92 = arith.truncf %91 : vector<16x64xf32> to vector<16x64xbf16>
    %c0_35 = arith.constant 0 : index
    %c0_36 = arith.constant 0 : index
    %93 = vector.load %arg10[%c0_35, %c0_36] : memref<64x32xbf16, #tpu.memory_space<vmem>>, vector<64x32xbf16>
    %cst_37 = arith.constant dense<0.000000e+00> : vector<16x32xf32>
    %94 = tpu.matmul %92, %93, %cst_37 {dimension_numbers = #tpu.dot_dimension_numbers<[1], [0], [0], [1], [0, 0, 1, 1], [], []>} : vector<16x64xbf16>, vector<64x32xbf16>, vector<16x32xf32> -> vector<16x32xf32>
    %c0_38 = arith.constant 0 : index
    %c0_39 = arith.constant 0 : index
    %95 = vector.load %arg11[%c0_38, %c0_39] : memref<1x32xf32, #tpu.memory_space<vmem>>, vector<1x32xf32>
    %96 = vector.broadcast %95 : vector<1x32xf32> to vector<16x32xf32>
    %97 = arith.addf %94, %96 : vector<16x32xf32>
    %98 = arith.addf %2, %97 : vector<16x32xf32>
    %c0_40 = arith.constant 0 : index
    %c0_41 = arith.constant 0 : index
    %c0_42 = arith.constant 0 : index
    %99 = vector.load %arg12[%c0_40, %c0_41, %c0_42] : memref<1x16x32xf32, #tpu.memory_space<vmem>>, vector<1x16x32xf32>
    %100 = vector.shape_cast %99 : vector<1x16x32xf32> to vector<16x32xf32>
    %101 = vector.shape_cast %98 : vector<16x32xf32> to vector<1x16x32xf32>
    tpu.vector_store %arg12[%c0_40, %c0_41, %c0_42], %101 {strides = array<i32>} : memref<1x16x32xf32, #tpu.memory_space<vmem>>, vector<1x16x32xf32>,
    return
  }
  func.func @transform_0(%arg0: i32, %arg1: i32) -> (i32, i32, i32) {
    %c0_i32 = arith.constant 0 : i32
    %c0_i32_0 = arith.constant 0 : i32
    return %arg0, %arg1, %c0_i32 : i32, i32, i32
  }
  func.func @transform_1(%arg0: i32, %arg1: i32) -> (i32, i32, i32, i32) {
    %c0_i32 = arith.constant 0 : i32
    %c0_i32_0 = arith.constant 0 : i32
    %c0_i32_1 = arith.constant 0 : i32
    return %arg0, %arg1, %c0_i32, %c0_i32_0 : i32, i32, i32, i32
  }
  func.func @transform_2(%arg0: i32, %arg1: i32) -> (i32, i32) {
    %c0_i32 = arith.constant 0 : i32
    %c0_i32_0 = arith.constant 0 : i32
    %c0_i32_1 = arith.constant 0 : i32
    return %c0_i32, %c0_i32_0 : i32, i32
  }
  func.func @transform_3(%arg0: i32, %arg1: i32) -> (i32, i32) {
    %c0_i32 = arith.constant 0 : i32
    %c0_i32_0 = arith.constant 0 : i32
    %c0_i32_1 = arith.constant 0 : i32
    return %c0_i32, %c0_i32_0 : i32, i32
  }
  func.func @transform_4(%arg0: i32, %arg1: i32) -> (i32, i32) {
    %c0_i32 = arith.constant 0 : i32
    %c0_i32_0 = arith.constant 0 : i32
    %c0_i32_1 = arith.constant 0 : i32
    return %c0_i32, %c0_i32_0 : i32, i32
  }
  func.func @transform_5(%arg0: i32, %arg1: i32) -> (i32, i32) {
    %c0_i32 = arith.constant 0 : i32
    %c0_i32_0 = arith.constant 0 : i32
    %c0_i32_1 = arith.constant 0 : i32
    return %c0_i32, %c0_i32_0 : i32, i32
  }
  func.func @transform_6(%arg0: i32, %arg1: i32) -> (i32, i32) {
    %c0_i32 = arith.constant 0 : i32
    %c0_i32_0 = arith.constant 0 : i32
    %c0_i32_1 = arith.constant 0 : i32
    return %c0_i32, %c0_i32_0 : i32, i32
  }
  func.func @transform_7(%arg0: i32, %arg1: i32) -> (i32, i32) {
    %c0_i32 = arith.constant 0 : i32
    %c0_i32_0 = arith.constant 0 : i32
    %c0_i32_1 = arith.constant 0 : i32
    return %c0_i32, %c0_i32_0 : i32, i32
  }
  func.func @transform_8(%arg0: i32, %arg1: i32) -> (i32, i32) {
    %c0_i32 = arith.constant 0 : i32
    %c0_i32_0 = arith.constant 0 : i32
    %c0_i32_1 = arith.constant 0 : i32
    return %c0_i32, %c0_i32_0 : i32, i32
  }
  func.func @transform_9(%arg0: i32, %arg1: i32) -> (i32, i32) {
    %c0_i32 = arith.constant 0 : i32
    %c0_i32_0 = arith.constant 0 : i32
    %c0_i32_1 = arith.constant 0 : i32
    return %c0_i32, %c0_i32_0 : i32, i32
  }
  func.func @transform_10(%arg0: i32, %arg1: i32) -> (i32, i32, i32) {
    %c0_i32 = arith.constant 0 : i32
    %c0_i32_0 = arith.constant 0 : i32
    return %arg0, %arg1, %c0_i32 : i32, i32, i32
  }
}

module attributes {stable_mosaic.version = 11 : i64} {
  func.func @_conv_module_kernel(%arg0: i32, %arg1: i32, %arg2: memref<1x16x32xf32, #tpu.memory_space<vmem>>, %arg3: memref<1x1x4x32xf32, #tpu.memory_space<vmem>>, %arg4: memref<1x32xf32, #tpu.memory_space<vmem>>, %arg5: memref<1x32xf32, #tpu.memory_space<vmem>>, %arg6: memref<32x128xbf16, #tpu.memory_space<vmem>>, %arg7: memref<1x128xf32, #tpu.memory_space<vmem>>, %arg8: memref<5x64xf32, #tpu.memory_space<vmem>>, %arg9: memref<1x64xf32, #tpu.memory_space<vmem>>, %arg10: memref<64x32xbf16, #tpu.memory_space<vmem>>, %arg11: memref<1x32xf32, #tpu.memory_space<vmem>>, %arg12: memref<1x16x32xf32, #tpu.memory_space<vmem>>, %arg13: memref<24x64xf32, #tpu.memory_space<vmem>>) attributes {dimension_semantics = [#tpu.dimension_semantics<parallel>, #tpu.dimension_semantics<parallel>], iteration_bounds = array<i64: 2, 3>, scalar_prefetch = 0 : i64, scratch_operands = 1 : i64, tpu.core_type = #tpu.core_type<tc>, window_params = [{transform_indices = @transform_0, window_bounds = array<i64: 1, 16, 32>}, {transform_indices = @transform_1, window_bounds = array<i64: 1, 1, 4, 32>}, {pipeline_mode = #tpu.pipeline_mode<synchronous>, transform_indices = @transform_2, window_bounds = array<i64: 1, 32>}, {pipeline_mode = #tpu.pipeline_mode<synchronous>, transform_indices = @transform_3, window_bounds = array<i64: 1, 32>}, {pipeline_mode = #tpu.pipeline_mode<synchronous>, transform_indices = @transform_4, window_bounds = array<i64: 32, 128>}, {pipeline_mode = #tpu.pipeline_mode<synchronous>, transform_indices = @transform_5, window_bounds = array<i64: 1, 128>}, {pipeline_mode = #tpu.pipeline_mode<synchronous>, transform_indices = @transform_6, window_bounds = array<i64: 5, 64>}, {pipeline_mode = #tpu.pipeline_mode<synchronous>, transform_indices = @transform_7, window_bounds = array<i64: 1, 64>}, {pipeline_mode = #tpu.pipeline_mode<synchronous>, transform_indices = @transform_8, window_bounds = array<i64: 64, 32>}, {pipeline_mode = #tpu.pipeline_mode<synchronous>, transform_indices = @transform_9, window_bounds = array<i64: 1, 32>}, {transform_indices = @transform_10, window_bounds = array<i64: 1, 16, 32>}]} {
    %c16_i32 = arith.constant 16 : i32
    %0 = arith.muli %arg1, %c16_i32 : i32
    %c0 = arith.constant 0 : index
    %c0_0 = arith.constant 0 : index
    %c0_1 = arith.constant 0 : index
    %1 = vector.load %arg2[%c0, %c0_0, %c0_1] : memref<1x16x32xf32, #tpu.memory_space<vmem>>, vector<1x16x32xf32>
    %2 = vector.shape_cast %1 : vector<1x16x32xf32> to vector<16x32xf32>
    %c0_2 = arith.constant 0 : index
    %c0_3 = arith.constant 0 : index
    %c0_4 = arith.constant 0 : index
    %c0_5 = arith.constant 0 : index
    %3 = vector.load %arg3[%c0_2, %c0_3, %c0_4, %c0_5] : memref<1x1x4x32xf32, #tpu.memory_space<vmem>>, vector<1x1x4x32xf32>
    %4 = vector.shape_cast %3 : vector<1x1x4x32xf32> to vector<4x32xf32>
    %5 = vector.extract_strided_slice %4 {offsets = [0, 0], sizes = [2, 32], strides = [1, 1]} : vector<4x32xf32> to vector<2x32xf32>
    %6 = vector.extract_strided_slice %4 {offsets = [2, 0], sizes = [2, 32], strides = [1, 1]} : vector<4x32xf32> to vector<2x32xf32>
    %7 = tpu.concatenate %5, %2, %6 in 0 : vector<2x32xf32>, vector<16x32xf32>, vector<2x32xf32> -> vector<20x32xf32>
    %cst = arith.constant dense<0.000000e+00> : vector<20xf32>
    %8 = vector.multi_reduction <add>, %7, %cst [1] : vector<20x32xf32> to vector<20xf32>
    %9 = vector.shape_cast %8 : vector<20xf32> to vector<20x1xf32>
    %cst_6 = arith.constant 3.200000e+01 : f32
    %10 = vector.broadcast %cst_6 : f32 to vector<20x1xf32>
    %11 = arith.divf %9, %10 : vector<20x1xf32>
    %12 = vector.broadcast %11 : vector<20x1xf32> to vector<20x32xf32>
    %13 = arith.subf %7, %12 : vector<20x32xf32>
    %14 = arith.mulf %13, %13 : vector<20x32xf32>
    %cst_7 = arith.constant dense<0.000000e+00> : vector<20xf32>
    %15 = vector.multi_reduction <add>, %14, %cst_7 [1] : vector<20x32xf32> to vector<20xf32>
    %16 = vector.shape_cast %15 : vector<20xf32> to vector<20x1xf32>
    %cst_8 = arith.constant 3.200000e+01 : f32
    %17 = vector.broadcast %cst_8 : f32 to vector<20x1xf32>
    %18 = arith.divf %16, %17 : vector<20x1xf32>
    %19 = vector.broadcast %11 : vector<20x1xf32> to vector<20x32xf32>
    %20 = arith.subf %7, %19 : vector<20x32xf32>
    %cst_9 = arith.constant 9.99999974E-6 : f32
    %21 = vector.broadcast %cst_9 : f32 to vector<20x1xf32>
    %22 = arith.addf %18, %21 : vector<20x1xf32>
    %23 = math.rsqrt %22 : vector<20x1xf32>
    %24 = vector.broadcast %23 : vector<20x1xf32> to vector<20x32xf32>
    %25 = arith.mulf %20, %24 : vector<20x32xf32>
    %c0_10 = arith.constant 0 : index
    %c0_11 = arith.constant 0 : index
    %26 = vector.load %arg4[%c0_10, %c0_11] : memref<1x32xf32, #tpu.memory_space<vmem>>, vector<1x32xf32>
    %27 = vector.broadcast %26 : vector<1x32xf32> to vector<20x32xf32>
    %28 = arith.mulf %25, %27 : vector<20x32xf32>
    %c0_12 = arith.constant 0 : index
    %c0_13 = arith.constant 0 : index
    %29 = vector.load %arg5[%c0_12, %c0_13] : memref<1x32xf32, #tpu.memory_space<vmem>>, vector<1x32xf32>
    %30 = vector.broadcast %29 : vector<1x32xf32> to vector<20x32xf32>
    %31 = arith.addf %28, %30 : vector<20x32xf32>
    %32 = arith.truncf %31 : vector<20x32xf32> to vector<20x32xbf16>
    %c0_14 = arith.constant 0 : index
    %c0_15 = arith.constant 0 : index
    %33 = vector.load %arg6[%c0_14, %c0_15] : memref<32x128xbf16, #tpu.memory_space<vmem>>, vector<32x128xbf16>
    %cst_16 = arith.constant dense<0.000000e+00> : vector<20x128xf32>
    %34 = tpu.matmul %32, %33, %cst_16 {dimension_numbers = #tpu.dot_dimension_numbers<[1], [0], [0], [1], [0, 0, 1, 1], [], []>} : vector<20x32xbf16>, vector<32x128xbf16>, vector<20x128xf32> -> vector<20x128xf32>
    %c0_17 = arith.constant 0 : index
    %c0_18 = arith.constant 0 : index
    %35 = vector.load %arg7[%c0_17, %c0_18] : memref<1x128xf32, #tpu.memory_space<vmem>>, vector<1x128xf32>
    %36 = vector.broadcast %35 : vector<1x128xf32> to vector<20x128xf32>
    %37 = arith.addf %34, %36 : vector<20x128xf32>
    %38 = vector.extract_strided_slice %37 {offsets = [0, 0], sizes = [20, 64], strides = [1, 1]} : vector<20x128xf32> to vector<20x64xf32>
    %39 = vector.extract_strided_slice %37 {offsets = [0, 64], sizes = [20, 64], strides = [1, 1]} : vector<20x128xf32> to vector<20x64xf32>
    %40 = arith.negf %39 : vector<20x64xf32>
    %41 = math.exp %40 : vector<20x64xf32>
    %cst_19 = arith.constant 1.000000e+00 : f32
    %42 = vector.broadcast %cst_19 : f32 to vector<20x64xf32>
    %43 = arith.addf %42, %41 : vector<20x64xf32>
    %44 = arith.divf %42, %43 : vector<20x64xf32>
    %45 = arith.mulf %38, %44 : vector<20x64xf32>
    %c2_i32 = arith.constant 2 : i32
    %46 = arith.cmpi slt, %0, %c2_i32 : i32
    %c16_i32_20 = arith.constant 16 : i32
    %47 = arith.addi %0, %c16_i32_20 : i32
    %c2_i32_21 = arith.constant 2 : i32
    %48 = arith.addi %47, %c2_i32_21 : i32
    %c40_i32 = arith.constant 40 : i32
    %49 = arith.cmpi sgt, %48, %c40_i32 : i32
    %50 = arith.ori %46, %49 : i1
    %51 = arith.extui %50 : i1 to i32
    %c0_i32 = arith.constant 0 : i32
    %52 = arith.cmpi ne, %51, %c0_i32 : i32
    scf.if %52 {
      %c2_i32_43 = arith.constant 2 : i32
      %102 = arith.subi %0, %c2_i32_43 : i32
      %103 = tpu.iota {dimensions = array<i32: 0>} : vector<20x1xi32>
      %104 = vector.broadcast %102 : i32 to vector<20x1xi32>
      %105 = arith.addi %104, %103 : vector<20x1xi32>
      %c0_i32_44 = arith.constant 0 : i32
      %106 = vector.broadcast %c0_i32_44 : i32 to vector<20x1xi32>
      %107 = arith.cmpi sge, %105, %106 : vector<20x1xi32>
      %c40_i32_45 = arith.constant 40 : i32
      %108 = vector.broadcast %c40_i32_45 : i32 to vector<20x1xi32>
      %109 = arith.cmpi slt, %105, %108 : vector<20x1xi32>
      %110 = arith.andi %107, %109 : vector<20x1xi1>
      %cst_46 = arith.constant 0.000000e+00 : f32
      %111 = vector.shape_cast %110 : vector<20x1xi1> to vector<20x1xi1>
      %112 = vector.broadcast %111 : vector<20x1xi1> to vector<20x64xi1>
      %113 = vector.broadcast %cst_46 : f32 to vector<20x64xf32>
      %114 = arith.select %112, %45, %113 : vector<20x64xi1>, vector<20x64xf32>
      %c0_47 = arith.constant 0 : index
      %c0_48 = arith.constant 0 : index
      %115 = vector.load %arg13[%c0_47, %c0_48] : memref<24x64xf32, #tpu.memory_space<vmem>>, vector<20x64xf32>
      tpu.vector_store %arg13[%c0_47, %c0_48], %114 {strides = array<i32>} : memref<24x64xf32, #tpu.memory_space<vmem>>, vector<20x64xf32>,
    } else {
    }
    %true = arith.constant true
    %53 = arith.xori %50, %true : i1
    %54 = arith.extui %53 : i1 to i32
    %c0_i32_22 = arith.constant 0 : i32
    %55 = arith.cmpi ne, %54, %c0_i32_22 : i32
    scf.if %55 {
      %c0_43 = arith.constant 0 : index
      %c0_44 = arith.constant 0 : index
      %102 = vector.load %arg13[%c0_43, %c0_44] : memref<24x64xf32, #tpu.memory_space<vmem>>, vector<20x64xf32>
      tpu.vector_store %arg13[%c0_43, %c0_44], %45 {strides = array<i32>} : memref<24x64xf32, #tpu.memory_space<vmem>>, vector<20x64xf32>,
    } else {
    }
    %c0_23 = arith.constant 0 : index
    %c0_24 = arith.constant 0 : index
    %56 = vector.load %arg8[%c0_23, %c0_24] : memref<5x64xf32, #tpu.memory_space<vmem>>, vector<5x64xf32>
    %cst_25 = arith.constant 0.000000e+00 : f32
    %57 = vector.broadcast %cst_25 : f32 to vector<16x64xf32>
    %c0_26 = arith.constant 0 : index
    %c0_27 = arith.constant 0 : index
    %58 = vector.load %arg13[%c0_26, %c0_27] : memref<24x64xf32, #tpu.memory_space<vmem>>, vector<16x64xf32>
    %59 = vector.extract_strided_slice %56 {offsets = [0, 0], sizes = [1, 64], strides = [1, 1]} : vector<5x64xf32> to vector<1x64xf32>
    %60 = vector.broadcast %59 : vector<1x64xf32> to vector<16x64xf32>
    %61 = arith.mulf %58, %60 : vector<16x64xf32>
    %62 = arith.addf %57, %61 : vector<16x64xf32>
    %c1 = arith.constant 1 : index
    %c0_28 = arith.constant 0 : index
    %63 = vector.load %arg13[%c1, %c0_28] : memref<24x64xf32, #tpu.memory_space<vmem>>, vector<16x64xf32>
    %64 = vector.extract_strided_slice %56 {offsets = [1, 0], sizes = [1, 64], strides = [1, 1]} : vector<5x64xf32> to vector<1x64xf32>
    %65 = vector.broadcast %64 : vector<1x64xf32> to vector<16x64xf32>
    %66 = arith.mulf %63, %65 : vector<16x64xf32>
    %67 = arith.addf %62, %66 : vector<16x64xf32>
    %c2 = arith.constant 2 : index
    %c0_29 = arith.constant 0 : index
    %68 = vector.load %arg13[%c2, %c0_29] : memref<24x64xf32, #tpu.memory_space<vmem>>, vector<16x64xf32>
    %69 = vector.extract_strided_slice %56 {offsets = [2, 0], sizes = [1, 64], strides = [1, 1]} : vector<5x64xf32> to vector<1x64xf32>
    %70 = vector.broadcast %69 : vector<1x64xf32> to vector<16x64xf32>
    %71 = arith.mulf %68, %70 : vector<16x64xf32>
    %72 = arith.addf %67, %71 : vector<16x64xf32>
    %c3 = arith.constant 3 : index
    %c0_30 = arith.constant 0 : index
    %73 = vector.load %arg13[%c3, %c0_30] : memref<24x64xf32, #tpu.memory_space<vmem>>, vector<16x64xf32>
    %74 = vector.extract_strided_slice %56 {offsets = [3, 0], sizes = [1, 64], strides = [1, 1]} : vector<5x64xf32> to vector<1x64xf32>
    %75 = vector.broadcast %74 : vector<1x64xf32> to vector<16x64xf32>
    %76 = arith.mulf %73, %75 : vector<16x64xf32>
    %77 = arith.addf %72, %76 : vector<16x64xf32>
    %c4 = arith.constant 4 : index
    %c0_31 = arith.constant 0 : index
    %78 = vector.load %arg13[%c4, %c0_31] : memref<24x64xf32, #tpu.memory_space<vmem>>, vector<16x64xf32>
    %79 = vector.extract_strided_slice %56 {offsets = [4, 0], sizes = [1, 64], strides = [1, 1]} : vector<5x64xf32> to vector<1x64xf32>
    %80 = vector.broadcast %79 : vector<1x64xf32> to vector<16x64xf32>
    %81 = arith.mulf %78, %80 : vector<16x64xf32>
    %82 = arith.addf %77, %81 : vector<16x64xf32>
    %c0_32 = arith.constant 0 : index
    %c0_33 = arith.constant 0 : index
    %83 = vector.load %arg9[%c0_32, %c0_33] : memref<1x64xf32, #tpu.memory_space<vmem>>, vector<1x64xf32>
    %84 = vector.broadcast %83 : vector<1x64xf32> to vector<16x64xf32>
    %85 = arith.addf %82, %84 : vector<16x64xf32>
    %86 = arith.negf %85 : vector<16x64xf32>
    %87 = math.exp %86 : vector<16x64xf32>
    %cst_34 = arith.constant 1.000000e+00 : f32
    %88 = vector.broadcast %cst_34 : f32 to vector<16x64xf32>
    %89 = arith.addf %88, %87 : vector<16x64xf32>
    %90 = arith.divf %88, %89 : vector<16x64xf32>
    %91 = arith.mulf %85, %90 : vector<16x64xf32>
    %92 = arith.truncf %91 : vector<16x64xf32> to vector<16x64xbf16>
    %c0_35 = arith.constant 0 : index
    %c0_36 = arith.constant 0 : index
    %93 = vector.load %arg10[%c0_35, %c0_36] : memref<64x32xbf16, #tpu.memory_space<vmem>>, vector<64x32xbf16>
    %cst_37 = arith.constant dense<0.000000e+00> : vector<16x32xf32>
    %94 = tpu.matmul %92, %93, %cst_37 {dimension_numbers = #tpu.dot_dimension_numbers<[1], [0], [0], [1], [0, 0, 1, 1], [], []>} : vector<16x64xbf16>, vector<64x32xbf16>, vector<16x32xf32> -> vector<16x32xf32>
    %c0_38 = arith.constant 0 : index
    %c0_39 = arith.constant 0 : index
    %95 = vector.load %arg11[%c0_38, %c0_39] : memref<1x32xf32, #tpu.memory_space<vmem>>, vector<1x32xf32>
    %96 = vector.broadcast %95 : vector<1x32xf32> to vector<16x32xf32>
    %97 = arith.addf %94, %96 : vector<16x32xf32>
    %98 = arith.addf %2, %97 : vector<16x32xf32>
    %c0_40 = arith.constant 0 : index
    %c0_41 = arith.constant 0 : index
    %c0_42 = arith.constant 0 : index
    %99 = vector.load %arg12[%c0_40, %c0_41, %c0_42] : memref<1x16x32xf32, #tpu.memory_space<vmem>>, vector<1x16x32xf32>
    %100 = vector.shape_cast %99 : vector<1x16x32xf32> to vector<16x32xf32>
    %101 = vector.shape_cast %98 : vector<16x32xf32> to vector<1x16x32xf32>
    tpu.vector_store %arg12[%c0_40, %c0_41, %c0_42], %101 {strides = array<i32>} : memref<1x16x32xf32, #tpu.memory_space<vmem>>, vector<1x16x32xf32>,
    return
  }
  func.func @transform_0(%arg0: i32, %arg1: i32) -> (i32, i32, i32) {
    %c0_i32 = arith.constant 0 : i32
    %c0_i32_0 = arith.constant 0 : i32
    return %arg0, %arg1, %c0_i32 : i32, i32, i32
  }
  func.func @transform_1(%arg0: i32, %arg1: i32) -> (i32, i32, i32, i32) {
    %c0_i32 = arith.constant 0 : i32
    %c0_i32_0 = arith.constant 0 : i32
    %c0_i32_1 = arith.constant 0 : i32
    return %arg0, %arg1, %c0_i32, %c0_i32_0 : i32, i32, i32, i32
  }
  func.func @transform_2(%arg0: i32, %arg1: i32) -> (i32, i32) {
    %c0_i32 = arith.constant 0 : i32
    %c0_i32_0 = arith.constant 0 : i32
    %c0_i32_1 = arith.constant 0 : i32
    return %c0_i32, %c0_i32_0 : i32, i32
  }
  func.func @transform_3(%arg0: i32, %arg1: i32) -> (i32, i32) {
    %c0_i32 = arith.constant 0 : i32
    %c0_i32_0 = arith.constant 0 : i32
    %c0_i32_1 = arith.constant 0 : i32
    return %c0_i32, %c0_i32_0 : i32, i32
  }
  func.func @transform_4(%arg0: i32, %arg1: i32) -> (i32, i32) {
    %c0_i32 = arith.constant 0 : i32
    %c0_i32_0 = arith.constant 0 : i32
    %c0_i32_1 = arith.constant 0 : i32
    return %c0_i32, %c0_i32_0 : i32, i32
  }
  func.func @transform_5(%arg0: i32, %arg1: i32) -> (i32, i32) {
    %c0_i32 = arith.constant 0 : i32
    %c0_i32_0 = arith.constant 0 : i32
    %c0_i32_1 = arith.constant 0 : i32
    return %c0_i32, %c0_i32_0 : i32, i32
  }
  func.func @transform_6(%arg0: i32, %arg1: i32) -> (i32, i32) {
    %c0_i32 = arith.constant 0 : i32
    %c0_i32_0 = arith.constant 0 : i32
    %c0_i32_1 = arith.constant 0 : i32
    return %c0_i32, %c0_i32_0 : i32, i32
  }
  func.func @transform_7(%arg0: i32, %arg1: i32) -> (i32, i32) {
    %c0_i32 = arith.constant 0 : i32
    %c0_i32_0 = arith.constant 0 : i32
    %c0_i32_1 = arith.constant 0 : i32
    return %c0_i32, %c0_i32_0 : i32, i32
  }
  func.func @transform_8(%arg0: i32, %arg1: i32) -> (i32, i32) {
    %c0_i32 = arith.constant 0 : i32
    %c0_i32_0 = arith.constant 0 : i32
    %c0_i32_1 = arith.constant 0 : i32
    return %c0_i32, %c0_i32_0 : i32, i32
  }
  func.func @transform_9(%arg0: i32, %arg1: i32) -> (i32, i32) {
    %c0_i32 = arith.constant 0 : i32
    %c0_i32_0 = arith.constant 0 : i32
    %c0_i32_1 = arith.constant 0 : i32
    return %c0_i32, %c0_i32_0 : i32, i32
  }
  func.func @transform_10(%arg0: i32, %arg1: i32) -> (i32, i32, i32) {
    %c0_i32 = arith.constant 0 : i32
    %c0_i32_0 = arith.constant 0 : i32
    return %arg0, %arg1, %c0_i32 : i32, i32, i32
  }
}

</mosaic_0001>

<llo_original>
// kernel: tpu_custom_call.1
$region0: #{tpu_custom_call.1}
  #allocation0 [shape = 'u32[]', space=smem, size = 0x4, offset = 0x4, fixed_abs, tag = 'smem constant byte address 0x4 - core index']
  #allocation1 [shape = 'u32[144,128]{1,0:T(1,128)}', space=vmem, size = 0x12000, scoped, tag = 'internal scratch']
  #allocation2 [shape = 'bf16[24,64]{1,0:T(8,128)(2,1)}', space=vmem, size = 0x1800, scoped, tag = 'scratch operand']
  %s0 = inlined_call_operand.vmem [shape: f32[2,48,32], index: 0, kind: input, shape index: {}]
  %s1 = inlined_call_operand.vmem [shape: f32[2,3,4,32], index: 1, kind: input, shape index: {}]
  %s2 = inlined_call_operand.vmem [shape: f32[1,32], index: 2, kind: input, shape index: {}]
  %s3 = inlined_call_operand.vmem [shape: f32[1,32], index: 3, kind: input, shape index: {}]
  %s4 = inlined_call_operand.vmem [shape: bf16[32,128], index: 4, kind: input, shape index: {}]
  %s5 = inlined_call_operand.vmem [shape: f32[1,128], index: 5, kind: input, shape index: {}]
  %s6 = inlined_call_operand.vmem [shape: f32[5,64], index: 6, kind: input, shape index: {}]
  %s7 = inlined_call_operand.vmem [shape: f32[1,64], index: 7, kind: input, shape index: {}]
  %s8 = inlined_call_operand.vmem [shape: bf16[64,32], index: 8, kind: input, shape index: {}]
  %s9 = inlined_call_operand.vmem [shape: f32[1,32], index: 9, kind: input, shape index: {}]
  %s10 = inlined_call_operand.vmem [shape: f32[2,48,32], index: 10, kind: output, shape index: {}]
  %s11 = sld [smem:[#allocation0]]
  $region81: #{tpu_custom_call.1} parent=0
    _
  %s13 = ssub.s32 1, %s11
  %s14 = scalar_select 0, %s13, %s11
  loop: start=0, step=1, limit=8
  $region2: #{tpu_custom_call.1} parent=0 // loop_pre_header
    _
  $region3: #{tpu_custom_call.1} parent=0 // loop_header
    %s16 = sphi 0, %s20
    %p17 = scmp.ge.s32.totalorder %s16, 8
    %s23 = sphi 0, %s35
    %s24 = sphi 0, %s31
    %s25 = sphi 0, %s23
    %s26 = sphi 0, %s24
    %s27 = sphi 0, %s25
    %s28 = sphi 0, %s26
    %s40 = sphi 0, %s42
    %s43 = sphi 0, %s40
    %s44 = sphi 0, %s43
    %s60 = sphi 0, %s44
    %s68 = sphi 0, %s70
    %s71 = sphi 0, %s68
    %s72 = sphi 0, %s71
    %s88 = sphi 0, %s72
    %s92 = sphi 0, %s92
    %s94 = sphi 0, %s92
    %s95 = sphi 0, %s94
    %s109 = sphi 0, %s95
    %s113 = sphi 0, %s113
    %s115 = sphi 0, %s113
    %s116 = sphi 0, %s115
    %s130 = sphi 0, %s116
    %s134 = sphi 0, %s134
    %s136 = sphi 0, %s134
    %s137 = sphi 0, %s136
    %s151 = sphi 0, %s137
    %s155 = sphi 0, %s155
    %s157 = sphi 0, %s155
    %s158 = sphi 0, %s157
    %s172 = sphi 0, %s158
    %s176 = sphi 0, %s176
    %s178 = sphi 0, %s176
    %s179 = sphi 0, %s178
    %s193 = sphi 0, %s179
    %s197 = sphi 0, %s197
    %s199 = sphi 0, %s197
    %s200 = sphi 0, %s199
    %s214 = sphi 0, %s200
    %s218 = sphi 0, %s218
    %s220 = sphi 0, %s218
    %s221 = sphi 0, %s220
    %s235 = sphi 0, %s221
    %s239 = sphi 0, %s239
    %s241 = sphi 0, %s239
    %s242 = sphi 0, %s241
    %s256 = sphi 0, %s242
    %s264 = sphi 0, %s266
    %s267 = sphi 0, %s264
    %s268 = sphi 0, %s267
    %s284 = sphi 0, %s268
  $region4: #{tpu_custom_call.1} parent=0 // loop_header_branch
    %19 = sbr.rel (%p17) target = $region8
  $region5: #{tpu_custom_call.1} parent=0 // loop_body
    %s21 = ssub.s32 %s16, 1
    %s22 = ssub.s32 %s16, 2
    %s29 = sadd.s32 1, %s24
    %p30 = scmp.ge.s32.totalorder %s29, 3
    %s31 = scalar_select %p30, 0, %s29
    %s32 = sadd.s32 1, %s23
    %s33 = scalar_select %p30, %s32, %s23
    %p34 = scmp.ge.s32.totalorder %s33, 2
    %s35 = scalar_select %p34, 0, %s33
    %s36 = ssub.s32 %s23, %s35
    %s37 = ssub.s32 %s24, %s31
    %s38 = sor.u32 %s36, %s37
    %p39 = scmp.eq.s32.totalorder %s38, 0
    %s41 = sadd.s32 %s40, 1
    %s42 = scalar_select %p39, %s40, %s41
    %p45 = pneg %p39
    %p46 = scmp.eq.s32.totalorder %s16, 5
    %p47 = por %p45, %p46
    %p48 = scmp.ne.s32.totalorder %s40, %s43
    %p49 = scmp.eq.s32.totalorder %s16, 0
    %p50 = por %p48, %p49
    %p51 = scmp.ne.s32.totalorder %s40, %s43
    %p52 = scmp.eq.s32.totalorder %s21, 5
    %p53 = por %p51, %p52
    %p54 = scmp.ne.s32.totalorder %s43, %s44
    %p55 = scmp.eq.s32.totalorder %s21, 0
    %p56 = por %p54, %p55
    %p57 = scmp.ne.s32.totalorder %s43, %s44
    %p58 = scmp.eq.s32.totalorder %s22, 5
    %p59 = por %p57, %p58
    %p61 = scmp.ne.s32.totalorder %s44, %s60
    %p62 = scmp.eq.s32.totalorder %s22, 0
    %p63 = por %p61, %p62
    %s64 = ssub.s32 %s23, %s35
    %s65 = ssub.s32 %s24, %s31
    %s66 = sor.u32 %s64, %s65
    %p67 = scmp.eq.s32.totalorder %s66, 0
    %s69 = sadd.s32 %s68, 1
    %s70 = scalar_select %p67, %s68, %s69
    %p73 = pneg %p67
    %p74 = scmp.eq.s32.totalorder %s16, 5
    %p75 = por %p73, %p74
    %p76 = scmp.ne.s32.totalorder %s68, %s71
    %p77 = scmp.eq.s32.totalorder %s16, 0
    %p78 = por %p76, %p77
    %p79 = scmp.ne.s32.totalorder %s68, %s71
    %p80 = scmp.eq.s32.totalorder %s21, 5
    %p81 = por %p79, %p80
    %p82 = scmp.ne.s32.totalorder %s71, %s72
    %p83 = scmp.eq.s32.totalorder %s21, 0
    %p84 = por %p82, %p83
    %p85 = scmp.ne.s32.totalorder %s71, %s72
    %p86 = scmp.eq.s32.totalorder %s22, 5
    %p87 = por %p85, %p86
    %p89 = scmp.ne.s32.totalorder %s72, %s88
    %p90 = scmp.eq.s32.totalorder %s22, 0
    %p91 = por %p89, %p90
    %s93 = sadd.s32 %s92, 1
    %p96 = scmp.eq.s32.totalorder %s16, 5
    %p97 = scmp.ne.s32.totalorder %s92, %s94
    %p98 = scmp.eq.s32.totalorder %s16, 0
    %p99 = por %p97, %p98
    %p100 = scmp.ne.s32.totalorder %s92, %s94
    %p101 = scmp.eq.s32.totalorder %s21, 5
    %p102 = por %p100, %p101
    %p103 = scmp.ne.s32.totalorder %s94, %s95
    %p104 = scmp.eq.s32.totalorder %s21, 0
    %p105 = por %p103, %p104
    %p106 = scmp.ne.s32.totalorder %s94, %s95
    %p107 = scmp.eq.s32.totalorder %s22, 5
    %p108 = por %p106, %p107
    %p110 = scmp.ne.s32.totalorder %s95, %s109
    %p111 = scmp.eq.s32.totalorder %s22, 0
    %p112 = por %p110, %p111
    %s114 = sadd.s32 %s113, 1
    %p117 = scmp.eq.s32.totalorder %s16, 5
    %p118 = scmp.ne.s32.totalorder %s113, %s115
    %p119 = scmp.eq.s32.totalorder %s16, 0
    %p120 = por %p118, %p119
    %p121 = scmp.ne.s32.totalorder %s113, %s115
    %p122 = scmp.eq.s32.totalorder %s21, 5
    %p123 = por %p121, %p122
    %p124 = scmp.ne.s32.totalorder %s115, %s116
    %p125 = scmp.eq.s32.totalorder %s21, 0
    %p126 = por %p124, %p125
    %p127 = scmp.ne.s32.totalorder %s115, %s116
    %p128 = scmp.eq.s32.totalorder %s22, 5
    %p129 = por %p127, %p128
    %p131 = scmp.ne.s32.totalorder %s116, %s130
    %p132 = scmp.eq.s32.totalorder %s22, 0
    %p133 = por %p131, %p132
    %s135 = sadd.s32 %s134, 1
    %p138 = scmp.eq.s32.totalorder %s16, 5
    %p139 = scmp.ne.s32.totalorder %s134, %s136
    %p140 = scmp.eq.s32.totalorder %s16, 0
    %p141 = por %p139, %p140
    %p142 = scmp.ne.s32.totalorder %s134, %s136
    %p143 = scmp.eq.s32.totalorder %s21, 5
    %p144 = por %p142, %p143
    %p145 = scmp.ne.s32.totalorder %s136, %s137
    %p146 = scmp.eq.s32.totalorder %s21, 0
    %p147 = por %p145, %p146
    %p148 = scmp.ne.s32.totalorder %s136, %s137
    %p149 = scmp.eq.s32.totalorder %s22, 5
    %p150 = por %p148, %p149
    %p152 = scmp.ne.s32.totalorder %s137, %s151
    %p153 = scmp.eq.s32.totalorder %s22, 0
    %p154 = por %p152, %p153
    %s156 = sadd.s32 %s155, 1
    %p159 = scmp.eq.s32.totalorder %s16, 5
    %p160 = scmp.ne.s32.totalorder %s155, %s157
    %p161 = scmp.eq.s32.totalorder %s16, 0
    %p162 = por %p160, %p161
    %p163 = scmp.ne.s32.totalorder %s155, %s157
    %p164 = scmp.eq.s32.totalorder %s21, 5
    %p165 = por %p163, %p164
    %p166 = scmp.ne.s32.totalorder %s157, %s158
    %p167 = scmp.eq.s32.totalorder %s21, 0
    %p168 = por %p166, %p167
    %p169 = scmp.ne.s32.totalorder %s157, %s158
    %p170 = scmp.eq.s32.totalorder %s22, 5
    %p171 = por %p169, %p170
    %p173 = scmp.ne.s32.totalorder %s158, %s172
    %p174 = scmp.eq.s32.totalorder %s22, 0
    %p175 = por %p173, %p174
    %s177 = sadd.s32 %s176, 1
    %p180 = scmp.eq.s32.totalorder %s16, 5
    %p181 = scmp.ne.s32.totalorder %s176, %s178
    %p182 = scmp.eq.s32.totalorder %s16, 0
    %p183 = por %p181, %p182
    %p184 = scmp.ne.s32.totalorder %s176, %s178
    %p185 = scmp.eq.s32.totalorder %s21, 5
    %p186 = por %p184, %p185
    %p187 = scmp.ne.s32.totalorder %s178, %s179
    %p188 = scmp.eq.s32.totalorder %s21, 0
    %p189 = por %p187, %p188
    %p190 = scmp.ne.s32.totalorder %s178, %s179
    %p191 = scmp.eq.s32.totalorder %s22, 5
    %p192 = por %p190, %p191
    %p194 = scmp.ne.s32.totalorder %s179, %s193
    %p195 = scmp.eq.s32.totalorder %s22, 0
    %p196 = por %p194, %p195
    %s198 = sadd.s32 %s197, 1
    %p201 = scmp.eq.s32.totalorder %s16, 5
    %p202 = scmp.ne.s32.totalorder %s197, %s199
    %p203 = scmp.eq.s32.totalorder %s16, 0
    %p204 = por %p202, %p203
    %p205 = scmp.ne.s32.totalorder %s197, %s199
    %p206 = scmp.eq.s32.totalorder %s21, 5
    %p207 = por %p205, %p206
    %p208 = scmp.ne.s32.totalorder %s199, %s200
    %p209 = scmp.eq.s32.totalorder %s21, 0
    %p210 = por %p208, %p209
    %p211 = scmp.ne.s32.totalorder %s199, %s200
    %p212 = scmp.eq.s32.totalorder %s22, 5
    %p213 = por %p211, %p212
    %p215 = scmp.ne.s32.totalorder %s200, %s214
    %p216 = scmp.eq.s32.totalorder %s22, 0
    %p217 = por %p215, %p216
    %s219 = sadd.s32 %s218, 1
    %p222 = scmp.eq.s32.totalorder %s16, 5
    %p223 = scmp.ne.s32.totalorder %s218, %s220
    %p224 = scmp.eq.s32.totalorder %s16, 0
    %p225 = por %p223, %p224
    %p226 = scmp.ne.s32.totalorder %s218, %s220
    %p227 = scmp.eq.s32.totalorder %s21, 5
    %p228 = por %p226, %p227
    %p229 = scmp.ne.s32.totalorder %s220, %s221
    %p230 = scmp.eq.s32.totalorder %s21, 0
    %p231 = por %p229, %p230
    %p232 = scmp.ne.s32.totalorder %s220, %s221
    %p233 = scmp.eq.s32.totalorder %s22, 5
    %p234 = por %p232, %p233
    %p236 = scmp.ne.s32.totalorder %s221, %s235
    %p237 = scmp.eq.s32.totalorder %s22, 0
    %p238 = por %p236, %p237
    %s240 = sadd.s32 %s239, 1
    %p243 = scmp.eq.s32.totalorder %s16, 5
    %p244 = scmp.ne.s32.totalorder %s239, %s241
    %p245 = scmp.eq.s32.totalorder %s16, 0
    %p246 = por %p244, %p245
    %p247 = scmp.ne.s32.totalorder %s239, %s241
    %p248 = scmp.eq.s32.totalorder %s21, 5
    %p249 = por %p247, %p248
    %p250 = scmp.ne.s32.totalorder %s241, %s242
    %p251 = scmp.eq.s32.totalorder %s21, 0
    %p252 = por %p250, %p251
    %p253 = scmp.ne.s32.totalorder %s241, %s242
    %p254 = scmp.eq.s32.totalorder %s22, 5
    %p255 = por %p253, %p254
    %p257 = scmp.ne.s32.totalorder %s242, %s256
    %p258 = scmp.eq.s32.totalorder %s22, 0
    %p259 = por %p257, %p258
    %s260 = ssub.s32 %s23, %s35
    %s261 = ssub.s32 %s24, %s31
    %s262 = sor.u32 %s260, %s261
    %p263 = scmp.eq.s32.totalorder %s262, 0
    %s265 = sadd.s32 %s264, 1
    %s266 = scalar_select %p263, %s264, %s265
    %p269 = pneg %p263
    %p270 = scmp.eq.s32.totalorder %s16, 5
    %p271 = por %p269, %p270
    %p272 = scmp.ne.s32.totalorder %s264, %s267
    %p273 = scmp.eq.s32.totalorder %s16, 0
    %p274 = por %p272, %p273
    %p275 = scmp.ne.s32.totalorder %s264, %s267
    %p276 = scmp.eq.s32.totalorder %s21, 5
    %p277 = por %p275, %p276
    %p278 = scmp.ne.s32.totalorder %s267, %s268
    %p279 = scmp.eq.s32.totalorder %s21, 0
    %p280 = por %p278, %p279
    %p281 = scmp.ne.s32.totalorder %s267, %s268
    %p282 = scmp.eq.s32.totalorder %s22, 5
    %p283 = por %p281, %p282
    %p285 = scmp.ne.s32.totalorder %s268, %s284
    %p286 = scmp.eq.s32.totalorder %s22, 0
    %p287 = por %p285, %p286
    %p288 = scmp.le.s32.totalorder 1, %s16
    %p289 = scmp.lt.s32.totalorder %s16, 7
    %p290 = pnand %p288, %p289
    %p291 = pneg %p290
    // Predicated region
    $region9: #{tpu_custom_call.1} parent=5 // pred_check
      _
    $region10: #{tpu_custom_call.1} parent=5 // pred_check_branch
      %293 = sbr.rel (%p290) target = $region12
    $region11: #{tpu_custom_call.1} parent=5 // pred_region
      %s294 = ssub.s32 %s16, 1
      // Predicated region
      $region13: #{tpu_custom_call.1} parent=11 // pred_check
        %p295 = pneg %p105
      $region14: #{tpu_custom_call.1} parent=11 // pred_check_branch
        %297 = sbr.rel (%p295) target = $region16
      $region15: #{tpu_custom_call.1} parent=11 // pred_region
        _
      $region16: #{tpu_custom_call.1} parent=11 // pred_fallthru
        _
      // Predicated region
      $region17: #{tpu_custom_call.1} parent=11 // pred_check
        %p298 = pneg %p126
      $region18: #{tpu_custom_call.1} parent=11 // pred_check_branch
        %300 = sbr.rel (%p298) target = $region20
      $region19: #{tpu_custom_call.1} parent=11 // pred_region
        _
      $region20: #{tpu_custom_call.1} parent=11 // pred_fallthru
        _
      // Predicated region
      $region21: #{tpu_custom_call.1} parent=11 // pred_check
        %p301 = pneg %p147
      $region22: #{tpu_custom_call.1} parent=11 // pred_check_branch
        %303 = sbr.rel (%p301) target = $region24
      $region23: #{tpu_custom_call.1} parent=11 // pred_region
        _
      $region24: #{tpu_custom_call.1} parent=11 // pred_fallthru
        _
      // Predicated region
      $region25: #{tpu_custom_call.1} parent=11 // pred_check
        %p304 = pneg %p168
      $region26: #{tpu_custom_call.1} parent=11 // pred_check_branch
        %306 = sbr.rel (%p304) target = $region28
      $region27: #{tpu_custom_call.1} parent=11 // pred_region
        _
      $region28: #{tpu_custom_call.1} parent=11 // pred_fallthru
        _
      // Predicated region
      $region29: #{tpu_custom_call.1} parent=11 // pred_check
        %p307 = pneg %p189
      $region30: #{tpu_custom_call.1} parent=11 // pred_check_branch
        %309 = sbr.rel (%p307) target = $region32
      $region31: #{tpu_custom_call.1} parent=11 // pred_region
        _
      $region32: #{tpu_custom_call.1} parent=11 // pred_fallthru
        _
      // Predicated region
      $region33: #{tpu_custom_call.1} parent=11 // pred_check
        %p310 = pneg %p210
      $region34: #{tpu_custom_call.1} parent=11 // pred_check_branch
        %312 = sbr.rel (%p310) target = $region36
      $region35: #{tpu_custom_call.1} parent=11 // pred_region
        _
      $region36: #{tpu_custom_call.1} parent=11 // pred_fallthru
        _
      // Predicated region
      $region37: #{tpu_custom_call.1} parent=11 // pred_check
        %p313 = pneg %p231
      $region38: #{tpu_custom_call.1} parent=11 // pred_check_branch
        %315 = sbr.rel (%p313) target = $region40
      $region39: #{tpu_custom_call.1} parent=11 // pred_region
        _
      $region40: #{tpu_custom_call.1} parent=11 // pred_fallthru
        _
      // Predicated region
      $region41: #{tpu_custom_call.1} parent=11 // pred_check
        %p316 = pneg %p252
      $region42: #{tpu_custom_call.1} parent=11 // pred_check_branch
        %318 = sbr.rel (%p316) target = $region44
      $region43: #{tpu_custom_call.1} parent=11 // pred_region
        _
      $region44: #{tpu_custom_call.1} parent=11 // pred_fallthru
        _
    $region12: #{tpu_custom_call.1} parent=5 // pred_fallthru
      _
    %p319 = scmp.lt.s32.totalorder %s16, 6
    // Predicated region
    $region45: #{tpu_custom_call.1} parent=5 // pred_check
      %p320 = pneg %p319
    $region46: #{tpu_custom_call.1} parent=5 // pred_check_branch
      %322 = sbr.rel (%p320) target = $region48
    $region47: #{tpu_custom_call.1} parent=5 // pred_region
      // Predicated region
      $region49: #{tpu_custom_call.1} parent=47 // pred_check
        %p323 = pneg %p50
      $region50: #{tpu_custom_call.1} parent=47 // pred_check_branch
        %325 = sbr.rel (%p323) target = $region52
      $region51: #{tpu_custom_call.1} parent=47 // pred_region
        %s326 = smul.u32 2, %s24
        %p327 = scmp.lt.s32.totalorder %s23, 1
        %s328 = scalar_select %p327, %s23, 1
        %p329 = scmp.lt.s32.totalorder %s326, 5
        %s330 = scalar_select %p329, %s326, 5
        %s331 = smul.addr %s328, 6
        %s332 = sadd.s32 %s330, %s331
        %s333 = smul.addr %s332, 8
        %s334 = scalar_lea.vmem %s0, %s333
        %s335 = smul.u32 2, %s24
      $region52: #{tpu_custom_call.1} parent=47 // pred_fallthru
        _
      // Predicated region
      $region53: #{tpu_custom_call.1} parent=47 // pred_check
        %p336 = pneg %p78
      $region54: #{tpu_custom_call.1} parent=47 // pred_check_branch
        %338 = sbr.rel (%p336) target = $region56
      $region55: #{tpu_custom_call.1} parent=47 // pred_region
        %p339 = scmp.lt.s32.totalorder %s23, 1
        %s340 = scalar_select %p339, %s23, 1
        %p341 = scmp.lt.s32.totalorder %s24, 2
        %s342 = scalar_select %p341, %s24, 2
        %s343 = smul.addr %s340, 3
        %s344 = sadd.s32 %s342, %s343
        %s345 = smul.addr %s344, 4
        %s346 = scalar_lea.vmem %s1, %s345
      $region56: #{tpu_custom_call.1} parent=47 // pred_fallthru
        _
    $region48: #{tpu_custom_call.1} parent=5 // pred_fallthru
      _
    %p347 = scmp.le.s32.totalorder 1, %s16
    %p348 = scmp.lt.s32.totalorder %s16, 7
    %p349 = pnand %p347, %p348
    %p350 = pneg %p349
    // Predicated region
    $region57: #{tpu_custom_call.1} parent=5 // pred_check
      _
    $region58: #{tpu_custom_call.1} parent=5 // pred_check_branch
      %352 = sbr.rel (%p349) target = $region60
    $region59: #{tpu_custom_call.1} parent=5 // pred_region
      %s353 = ssub.s32 %s16, 1
      %s354 = smul.u32 2, %s26
      %p355 = scmp.lt.s32.totalorder %s25, 1
      %s356 = scalar_select %p355, %s25, 1
      %p357 = scmp.lt.s32.totalorder %s354, 5
      %s358 = scalar_select %p357, %s354, 5
      %s359 = smul.addr %s356, 6
      %s360 = sadd.s32 %s358, %s359
      %s361 = smul.addr %s360, 8
      %s362 = scalar_lea.vmem %s0, %s361
      %p363 = pneg %p56
      %p364 = pneg %p53
      %p365 = scmp.lt.s32.totalorder %s25, 1
      %s366 = scalar_select %p365, %s25, 1
      %p367 = scmp.lt.s32.totalorder %s26, 2
      %s368 = scalar_select %p367, %s26, 2
      %s369 = smul.addr %s366, 3
      %s370 = sadd.s32 %s368, %s369
      %s371 = smul.addr %s370, 4
      %s372 = scalar_lea.vmem %s1, %s371
      %p373 = pneg %p84
      %p374 = pneg %p81
      %p375 = pneg %p105
      %p376 = pneg %p102
      %p377 = pneg %p126
      %p378 = pneg %p123
      %p379 = pneg %p147
      %p380 = pneg %p144
      %p381 = pneg %p168
      %p382 = pneg %p165
      %p383 = pneg %p189
      %p384 = pneg %p186
      %p385 = pneg %p210
      %p386 = pneg %p207
      %p387 = pneg %p231
      %p388 = pneg %p228
      %p389 = pneg %p252
      %p390 = pneg %p249
      %p391 = pneg %p280
      %p392 = pneg %p277
      %s393 = smul.u32 2, %s26
      %p394 = scmp.lt.s32.totalorder %s25, 1
      %s395 = scalar_select %p394, %s25, 1
      %p396 = scmp.lt.s32.totalorder %s393, 5
      %s397 = scalar_select %p396, %s393, 5
      %s398 = smul.addr %s395, 6
      %s399 = sadd.s32 %s397, %s398
      %s400 = smul.addr %s399, 8
      %s401 = scalar_lea.vmem %s10, %s400
      %s402 = smul.u32 2, %s26
      %p403 = scmp.lt.s32.totalorder %s25, 1
      %s404 = scalar_select %p403, %s25, 1
      %p405 = scmp.lt.s32.totalorder %s402, 5
      %s406 = scalar_select %p405, %s402, 5
      %s407 = smul.addr %s404, 6
      %s408 = sadd.s32 %s406, %s407
      %s409 = smul.addr %s408, 8
      %s410 = scalar_lea.vmem %s0, %s409
      %s411 = smul.u32 2, %s26
      %p412 = scmp.lt.s32.totalorder %s25, 1
      %s413 = scalar_select %p412, %s25, 1
      %p414 = scmp.lt.s32.totalorder %s26, 2
      %s415 = scalar_select %p414, %s26, 2
      %s416 = smul.addr %s413, 3
      %s417 = sadd.s32 %s415, %s416
      %s418 = smul.addr %s417, 4
      %s419 = scalar_lea.vmem %s1, %s418
      %s420 = smul.u32 2, %s26
      %p421 = scmp.lt.s32.totalorder %s25, 1
      %s422 = scalar_select %p421, %s25, 1
      %p423 = scmp.lt.s32.totalorder %s420, 5
      %s424 = scalar_select %p423, %s420, 5
      %s425 = smul.addr %s422, 6
      %s426 = sadd.s32 %s424, %s425
      %s427 = smul.addr %s426, 8
      %s428 = scalar_lea.vmem %s10, %s427
      %s429 = smul.u32 2, %s26
      %s431 = smul.u32 %s26, 16
      %v432 = vld [vmem:[%s410] sm:$0xff]
      %v433 = vld [vmem:[%s410 + $0x8] sm:$0xff]
      %v434 = vld [vmem:[%s419] sm:$0xf]
      %vm437 = vcmask 1041408
      %v438 = vrot.slane %v432, 6
      %v439 = vrot.slane %v433, 6
      %v440 = vsel %vm437, %v438, %v439
      %v444 = vsel %vm437, %v434, %v438
      %v445 = vsel %vm437, %v439, %v434
      %vm446 = vcmask 261120
      %v447 = vsel %vm446, %v444, 0.0
      %448 = vadd.xlane.f32.xlu0 %v447
      %v449 = vpop.xlane.xlu0 %448
      %v450 = vsel %vm446, %v440, 0.0
      %451 = vadd.xlane.f32.xlu0 %v450
      %v452 = vpop.xlane.xlu0 %451
      %vm453 = vcmask 257024
      %v454 = vsel %vm453, %v445, 0.0
      %455 = vadd.xlane.f32.xlu0 %v454
      %v456 = vpop.xlane.xlu0 %455
      %v457 = vrcp.pop 32.0
      %v458 = vmul.f32 %v449, %v457
      %v459 = vmul.f32 %v452, %v457
      %v460 = vmul.f32 %v456, %v457
      %v461 = vsub.f32 %v444, %v458
      %v462 = vsub.f32 %v440, %v459
      %v463 = vsub.f32 %v445, %v460
      %v464 = vmul.f32 %v461, %v461
      %v465 = vmul.f32 %v462, %v462
      %v466 = vmul.f32 %v463, %v463
      %v467 = vsel %vm446, %v464, 0.0
      %468 = vadd.xlane.f32.xlu0 %v467
      %v469 = vpop.xlane.xlu0 %468
      %v470 = vsel %vm446, %v465, 0.0
      %471 = vadd.xlane.f32.xlu0 %v470
      %v472 = vpop.xlane.xlu0 %471
      %v473 = vsel %vm453, %v466, 0.0
      %474 = vadd.xlane.f32.xlu0 %v473
      %v475 = vpop.xlane.xlu0 %474
      %v476 = vmul.f32 %v469, %v457
      %v477 = vmul.f32 %v472, %v457
      %v478 = vmul.f32 %v475, %v457
      %v479 = vadd.f32 %v476, 1e-05
      %v480 = vadd.f32 %v477, 1e-05
      %v481 = vadd.f32 %v478, 1e-05
      %v482 = vrsqrt.pop %v479
      %v483 = vrsqrt.pop %v480
      %v484 = vrsqrt.pop %v481
      %v485 = vmul.f32 %v461, %v482
      %v486 = vmul.f32 %v462, %v483
      %v487 = vmul.f32 %v463, %v484
      %v488 = vld [vmem:[%s2] sm:$0x1]
      %v490 = vlaneseq
      %v491 = vshrl.u32 %v490, 7
      %v492 = vsub.s32 0, %v491
      %v493 = vrot.slane %v488, %v492
      %v495 = vmul.f32 %v485, %v493
      %v496 = vmul.f32 %v486, %v493
      %v497 = vmul.f32 %v487, %v493
      %v498 = vld [vmem:[%s3] sm:$0x1]
      %v500 = vlaneseq
      %v501 = vshrl.u32 %v500, 7
      %v502 = vsub.s32 0, %v501
      %v503 = vrot.slane %v498, %v502
      %v505 = vadd.f32 %v495, %v503
      %v506 = vadd.f32 %v496, %v503
      %v507 = vadd.f32 %v497, %v503
      %v508 = vpack.c.bf16 %v506, %v505
      %v509 = vpack.c.bf16 %v507, %v507
      %v510 = vld [vmem:[%s4] sm:$0xf]
      %v511 = vld [vmem:[%s4 + $0x4] sm:$0xf]
      %v512 = vld [vmem:[%s4 + $0x8] sm:$0xf]
      %v513 = vld [vmem:[%s4 + $0xc] sm:$0xf]
      %v514 = vld [vmem:[%s5] sm:$0x1]
      %v516 = vlaneseq
      %v517 = vshrl.u32 %v516, 7
      %v518 = vsub.s32 0, %v517
      %v519 = vrot.slane %v514, %v518
      %v525 = vunpack.c.l.b16 %v510
      %v526 = vunpack.c.l.b16 %v511
      %v527 = vunpack.c.l.b16 %v512
      %v528 = vunpack.c.l.b16 %v513
      %v529 = vpack.c.b16 %v526, %v525
      %v530 = vpack.c.b16 %v528, %v527
      %v534 = vsel %vm446, %v508, 0
      %v537 = vsel %vm446, %v509, 0
      %539 = vmatprep.subr.bf16.mxu0 0
      %540 = vmatpush1.bf16.msra.mxu0 %v529
      %541 = vmatprep.subr.bf16.mxu0 0
      %542 = vmatpush1.bf16.msra.mxu0 %v530
      %543 = vmatprep.subr.bf16.mxu0 0
      %544 = vmatpush1.bf16.msra.mxu0 0
      %545 = vmatprep.subr.bf16.mxu0 0
      %546 = vmatpush1.bf16.msra.mxu0 0
      %547 = vmatprep.subr.bf16.mxu0 0
      %548 = vmatpush1.bf16.msra.mxu0 0
      %549 = vmatprep.subr.bf16.mxu0 0
      %550 = vmatpush1.bf16.msra.mxu0 0
      %551 = vmatprep.subr.bf16.mxu0 0
      %552 = vmatpush1.bf16.msra.mxu0 0
      %553 = vmatprep.subr.bf16.mxu0 0
      %554 = vmatpush1.bf16.msra.mxu0 0
      %555 = vmatprep.subr.bf16.mxu0 0
      %556 = vmatpush1.bf16.msra.mxu0 0
      %557 = vmatprep.subr.bf16.mxu0 0
      %558 = vmatpush1.bf16.msra.mxu0 0
      %559 = vmatprep.subr.bf16.mxu0 0
      %560 = vmatpush1.bf16.msra.mxu0 0
      %561 = vmatprep.subr.bf16.mxu0 0
      %562 = vmatpush1.bf16.msra.mxu0 0
      %563 = vmatprep.subr.bf16.mxu0 0
      %564 = vmatpush1.bf16.msra.mxu0 0
      %565 = vmatprep.subr.bf16.mxu0 0
      %566 = vmatpush1.bf16.msra.mxu0 0
      %567 = vmatprep.subr.bf16.mxu0 0
      %568 = vmatpush1.bf16.msra.mxu0 0
      %569 = vmatprep.subr.bf16.mxu0 0
      %570 = vmatpush1.bf16.msra.mxu0 0
      %571 = vmatprep.mubr.bf16.mxu0 0
      %572 = vmatmul.mubr.bf16.gmra.mrb[0].mxu0 %v534
      %v573 = vpop.f32.mrb[0].mxu0
      %v574 = vadd.f32 %v519, %v573
      %v575 = vpop.f32.mrb[0].mxu0
      %v576 = vpop.f32.mrb[0].mxu0
      %v577 = vadd.f32 %v519, %v576
      %v578 = vpop.f32.mrb[0].mxu0
      %579 = vmatprep.mubr.bf16.mxu0 0
      %580 = vmatmul.mubr.bf16.gmra.mrb[0].mxu0 %v537
      %v581 = vpop.f32.mrb[0].mxu0
      %v582 = vadd.f32 %v519, %v581
      %v583 = vpop.f32.mrb[0].mxu0
      %v584 = vpop.f32.mrb[0].mxu0
      %v585 = vpop.f32.mrb[0].mxu0
      %586 = vdwg.mxu0
      %v587 = vxor.u32 %v574, 2147483648
      %v588 = vxor.u32 %v577, 2147483648
      %v589 = vxor.u32 %v582, 2147483648
      %v590 = vmul.f32 %v587, 1.442695
      %v591 = vpow.pop %v590
      %v592 = vmul.f32 %v588, 1.442695
      %v593 = vpow.pop %v592
      %v594 = vmul.f32 %v589, 1.442695
      %v595 = vpow.pop %v594
      %v596 = vadd.f32 %v591, 1.0
      %v597 = vadd.f32 %v593, 1.0
      %v598 = vadd.f32 %v595, 1.0
      %v599 = vrcp.pop %v596
      %v600 = vmul.f32 1.0, %v599
      %v601 = vrcp.pop %v597
      %v602 = vmul.f32 1.0, %v601
      %v603 = vrcp.pop %v598
      %v604 = vmul.f32 1.0, %v603
      %608 = vrot.lane.b32.xlu0 %v600, 64
      %v609 = vpop.permute.xlu0 %608
      %610 = vrot.lane.b32.xlu0 %v602, 64
      %v611 = vpop.permute.xlu0 %610
      %612 = vrot.lane.b32.xlu0 %v604, 64
      %v613 = vpop.permute.xlu0 %612
      %v617 = vmul.f32 %v574, %v609
      %v618 = vmul.f32 %v577, %v611
      %v619 = vmul.f32 %v582, %v613
      %p620 = scmp.lt.s32.totalorder %s431, 2
      %s621 = sadd.s32 %s431, 18
      %p622 = scmp.gt.s32.totalorder %s621, 40
      %p623 = por %p620, %p622
      // Predicated region
      $region61: #{tpu_custom_call.1} parent=59 // pred_check
        %p624 = pneg %p623
      $region62: #{tpu_custom_call.1} parent=59 // pred_check_branch
        %626 = sbr.rel (%p624) target = $region64
      $region63: #{tpu_custom_call.1} parent=59 // pred_region
        %s627 = ssub.s32 %s431, 2
        %v628 = vlaneseq
        %v629 = vshrl.u32 %v628, 7
        %v630 = vadd.s32 %v629, 8
        %v631 = vadd.s32 %v629, 16
        %v632 = vstv %s627
        %v633 = vadd.s32 %v632, %v629
        %v634 = vadd.s32 %v632, %v630
        %v635 = vadd.s32 %v632, %v631
        %vm636 = vcmp.ge.s32.totalorder %v633, 0
        %vm637 = vcmp.ge.s32.totalorder %v634, 0
        %vm638 = vcmp.ge.s32.totalorder %v635, 0
        %vm639 = vcmp.lt.s32.totalorder %v633, 40
        %vm640 = vcmp.lt.s32.totalorder %v634, 40
        %vm641 = vcmp.lt.s32.totalorder %v635, 40
        %vm642 = vmand %vm636, %vm639
        %vm643 = vmand %vm637, %vm640
        %vm644 = vmand %vm638, %vm641
        %v645 = vsel %vm642, 1, 0
        %v646 = vsel %vm643, 1, 0
        %v647 = vsel %vm644, 1, 0
        %vm648 = vcmp.eq.s32.totalorder %v645, 1
        %vm649 = vcmp.eq.s32.totalorder %v646, 1
        %vm650 = vcmp.eq.s32.totalorder %v647, 1
        %v651 = vsel %vm648, %v617, 0.0
        %v652 = vsel %vm649, %v618, 0.0
        %v653 = vsel %vm650, %v619, 0.0
        %v654 = vpack.c.bf16 %v652, %v651
        %v655 = vpack.c.bf16 %v653, %v653
        %v658 = vunpack.c.l.b16 %v654
        %v659 = vunpack.c.h.b16 %v654
        %v660 = vunpack.c.l.b16 %v655
        %v661 = vpack.c.b16 %v658, %v658
        %v662 = vpack.c.b16 %v659, %v659
        %v663 = vpack.c.b16 %v660, %v660
        %vm667 = vcmask 519168
        %668 = vst.msk [vmem:[#allocation2] sm:$0xf] %vm667, %v661
        %669 = vst.msk [vmem:[#allocation2 + $0x4] sm:$0xf] %vm667, %v662
        %vm670 = vcmask 517120
        %671 = vst.msk [vmem:[#allocation2 + $0x8] sm:$0x3] %vm670, %v663
      $region64: #{tpu_custom_call.1} parent=59 // pred_fallthru
        _
      %p672 = pneg %p623
      // Predicated region
      $region65: #{tpu_custom_call.1} parent=59 // pred_check
        _
      $region66: #{tpu_custom_call.1} parent=59 // pred_check_branch
        %674 = sbr.rel (%p623) target = $region68
      $region67: #{tpu_custom_call.1} parent=59 // pred_region
        %v675 = vpack.c.bf16 %v618, %v617
        %v676 = vpack.c.bf16 %v619, %v619
        %v679 = vunpack.c.l.b16 %v675
        %v680 = vunpack.c.h.b16 %v675
        %v681 = vunpack.c.l.b16 %v676
        %v682 = vpack.c.b16 %v679, %v679
        %v683 = vpack.c.b16 %v680, %v680
        %v684 = vpack.c.b16 %v681, %v681
        %vm688 = vcmask 519168
        %689 = vst.msk [vmem:[#allocation2] sm:$0xf] %vm688, %v682
        %690 = vst.msk [vmem:[#allocation2 + $0x4] sm:$0xf] %vm688, %v683
        %vm691 = vcmask 517120
        %692 = vst.msk [vmem:[#allocation2 + $0x8] sm:$0x3] %vm691, %v684
      $region68: #{tpu_custom_call.1} parent=59 // pred_fallthru
        _
      %v693 = vld [vmem:[%s6] sm:$0x1f]
      %v694 = vld [vmem:[#allocation2] sm:$0xf]
      %v695 = vld [vmem:[#allocation2 + $0x4] sm:$0xf]
      %v696 = vunpack.c.l.bf16 %v694
      %v697 = vunpack.c.l.bf16 %v695
      %v698 = vlaneseq
      %v699 = vshrl.u32 %v698, 7
      %v700 = vsub.s32 0, %v699
      %v701 = vrot.slane %v693, %v700
      %v702 = vmul.f32 %v696, %v701
      %v703 = vmul.f32 %v697, %v701
      %v704 = vadd.f32 %v702, 0.0
      %v705 = vadd.f32 %v703, 0.0
      %v706 = vld [vmem:[#allocation2 + $0x8] sm:$0x1]
      %v707 = vunpack.c.l.bf16 %v706
      %v708 = vlaneseq
      %v709 = vshrl.u32 %v708, 7
      %v710 = vsub.s32 1, %v709
      %v711 = vrot.slane %v693, %v710
      %v712 = vmul.f32 %v696, %v711
      %v713 = vmul.f32 %v697, %v711
      %v714 = vmul.f32 %v707, %v711
      %vm718 = vcmask 1046528
      %v719 = vrot.slane %v712, 1
      %v720 = vrot.slane %v713, 1
      %v721 = vsel %vm718, %v719, %v720
      %v722 = vrot.slane %v714, 1
      %v723 = vsel %vm718, %v720, %v722
      %v726 = vadd.f32 %v704, %v721
      %v727 = vadd.f32 %v705, %v723
      %v728 = vld [vmem:[#allocation2] sm:$0xe]
      %v729 = vunpack.c.l.bf16 %v728
      %v730 = vlaneseq
      %v731 = vshrl.u32 %v730, 7
      %v732 = vsub.s32 2, %v731
      %v733 = vrot.slane %v693, %v732
      %v734 = vmul.f32 %v729, %v733
      %v735 = vmul.f32 %v697, %v733
      %v736 = vmul.f32 %v707, %v733
      %vm740 = vcmask 1045504
      %v741 = vrot.slane %v734, 2
      %v742 = vrot.slane %v735, 2
      %v743 = vsel %vm740, %v741, %v742
      %v744 = vrot.slane %v736, 2
      %v745 = vsel %vm740, %v742, %v744
      %v748 = vadd.f32 %v726, %v743
      %v749 = vadd.f32 %v727, %v745
      %v750 = vld [vmem:[#allocation2 + $0x8] sm:$0x3]
      %v751 = vunpack.c.l.bf16 %v750
      %v752 = vlaneseq
      %v753 = vshrl.u32 %v752, 7
      %v754 = vsub.s32 3, %v753
      %v755 = vrot.slane %v693, %v754
      %v756 = vmul.f32 %v729, %v755
      %v757 = vmul.f32 %v697, %v755
      %v758 = vmul.f32 %v751, %v755
      %vm762 = vcmask 1044480
      %v763 = vrot.slane %v756, 3
      %v764 = vrot.slane %v757, 3
      %v765 = vsel %vm762, %v763, %v764
      %v766 = vrot.slane %v758, 3
      %v767 = vsel %vm762, %v764, %v766
      %v770 = vadd.f32 %v748, %v765
      %v771 = vadd.f32 %v749, %v767
      %v772 = vld [vmem:[#allocation2] sm:$0xc]
      %v773 = vunpack.c.l.bf16 %v772
      %v774 = vlaneseq
      %v775 = vshrl.u32 %v774, 7
      %v776 = vsub.s32 4, %v775
      %v777 = vrot.slane %v693, %v776
      %v778 = vmul.f32 %v773, %v777
      %v779 = vmul.f32 %v697, %v777
      %v780 = vmul.f32 %v751, %v777
      %vm784 = vcmask 1043456
      %v785 = vrot.slane %v778, 4
      %v786 = vrot.slane %v779, 4
      %v787 = vsel %vm784, %v785, %v786
      %v788 = vrot.slane %v780, 4
      %v789 = vsel %vm784, %v786, %v788
      %v792 = vadd.f32 %v770, %v787
      %v793 = vadd.f32 %v771, %v789
      %v794 = vld [vmem:[%s7] sm:$0x1]
      %v796 = vlaneseq
      %v797 = vshrl.u32 %v796, 7
      %v798 = vsub.s32 0, %v797
      %v799 = vrot.slane %v794, %v798
      %v801 = vadd.f32 %v792, %v799
      %v802 = vadd.f32 %v793, %v799
      %v803 = vxor.u32 %v801, 2147483648
      %v804 = vxor.u32 %v802, 2147483648
      %v805 = vmul.f32 %v803, 1.442695
      %v806 = vpow.pop %v805
      %v807 = vmul.f32 %v804, 1.442695
      %v808 = vpow.pop %v807
      %v809 = vadd.f32 %v806, 1.0
      %v810 = vadd.f32 %v808, 1.0
      %v811 = vrcp.pop %v809
      %v812 = vmul.f32 1.0, %v811
      %v813 = vrcp.pop %v810
      %v814 = vmul.f32 1.0, %v813
      %v815 = vmul.f32 %v801, %v812
      %v816 = vmul.f32 %v802, %v814
      %v817 = vpack.c.bf16 %v816, %v815
      %v818 = vld [vmem:[%s8] sm:$0xf]
      %v819 = vld [vmem:[%s8 + $0x4] sm:$0xf]
      %v820 = vld [vmem:[%s8 + $0x8] sm:$0xf]
      %v821 = vld [vmem:[%s8 + $0xc] sm:$0xf]
      %v822 = vld [vmem:[%s8 + $0x10] sm:$0xf]
      %v823 = vld [vmem:[%s8 + $0x14] sm:$0xf]
      %v824 = vld [vmem:[%s8 + $0x18] sm:$0xf]
      %v825 = vld [vmem:[%s8 + $0x1c] sm:$0xf]
      %v826 = vld [vmem:[%s9] sm:$0x1]
      %v828 = vlaneseq
      %v829 = vshrl.u32 %v828, 7
      %v830 = vsub.s32 0, %v829
      %v831 = vrot.slane %v826, %v830
      %v841 = vunpack.c.l.b16 %v818
      %v842 = vunpack.c.l.b16 %v819
      %v843 = vunpack.c.l.b16 %v820
      %v844 = vunpack.c.l.b16 %v821
      %v845 = vunpack.c.l.b16 %v822
      %v846 = vunpack.c.l.b16 %v823
      %v847 = vunpack.c.l.b16 %v824
      %v848 = vunpack.c.l.b16 %v825
      %v849 = vpack.c.b16 %v842, %v841
      %v850 = vpack.c.b16 %v844, %v843
      %v851 = vpack.c.b16 %v846, %v845
      %v852 = vpack.c.b16 %v848, %v847
      %vm857 = vcmask 523264
      %v859 = vsel %vm857, %v817, 0
      %861 = vmatprep.subr.bf16.mxu0 0
      %862 = vmatpush1.bf16.msra.mxu0 %v849
      %863 = vmatprep.subr.bf16.mxu0 0
      %864 = vmatpush1.bf16.msra.mxu0 %v850
      %865 = vmatprep.subr.bf16.mxu0 0
      %866 = vmatpush1.bf16.msra.mxu0 %v851
      %867 = vmatprep.subr.bf16.mxu0 0
      %868 = vmatpush1.bf16.msra.mxu0 %v852
      %869 = vmatprep.subr.bf16.mxu0 0
      %870 = vmatpush1.bf16.msra.mxu0 0
      %871 = vmatprep.subr.bf16.mxu0 0
      %872 = vmatpush1.bf16.msra.mxu0 0
      %873 = vmatprep.subr.bf16.mxu0 0
      %874 = vmatpush1.bf16.msra.mxu0 0
      %875 = vmatprep.subr.bf16.mxu0 0
      %876 = vmatpush1.bf16.msra.mxu0 0
      %877 = vmatprep.subr.bf16.mxu0 0
      %878 = vmatpush1.bf16.msra.mxu0 0
      %879 = vmatprep.subr.bf16.mxu0 0
      %880 = vmatpush1.bf16.msra.mxu0 0
      %881 = vmatprep.subr.bf16.mxu0 0
      %882 = vmatpush1.bf16.msra.mxu0 0
      %883 = vmatprep.subr.bf16.mxu0 0
      %884 = vmatpush1.bf16.msra.mxu0 0
      %885 = vmatprep.subr.bf16.mxu0 0
      %886 = vmatpush1.bf16.msra.mxu0 0
      %887 = vmatprep.subr.bf16.mxu0 0
      %888 = vmatpush1.bf16.msra.mxu0 0
      %889 = vmatprep.subr.bf16.mxu0 0
      %890 = vmatpush1.bf16.msra.mxu0 0
      %891 = vmatprep.subr.bf16.mxu0 0
      %892 = vmatpush1.bf16.msra.mxu0 0
      %893 = vmatprep.mubr.bf16.mxu0 0
      %894 = vmatmul.mubr.bf16.gmra.mrb[0].mxu0 %v859
      %v895 = vpop.f32.mrb[0].mxu0
      %v896 = vadd.f32 %v831, %v895
      %v897 = vpop.f32.mrb[0].mxu0
      %v898 = vpop.f32.mrb[0].mxu0
      %v899 = vadd.f32 %v831, %v898
      %v900 = vpop.f32.mrb[0].mxu0
      %901 = vdwg.mxu0
      %v902 = vadd.f32 %v432, %v896
      %v903 = vadd.f32 %v433, %v899
      %904 = vst.msk [vmem:[%s428] sm:$0xff] %vm446, %v902
      %905 = vst.msk [vmem:[%s428 + $0x8] sm:$0xff] %vm446, %v903
      %s906 = smul.u32 2, %s26
      %p907 = scmp.lt.s32.totalorder %s25, 1
      %s908 = scalar_select %p907, %s25, 1
      %p909 = scmp.lt.s32.totalorder %s906, 5
      %s910 = scalar_select %p909, %s906, 5
      %s911 = smul.addr %s908, 6
      %s912 = sadd.s32 %s910, %s911
      %s913 = smul.addr %s912, 8
      %s914 = scalar_lea.vmem %s10, %s913
      // Predicated region
      $region69: #{tpu_custom_call.1} parent=59 // pred_check
        %p915 = pneg %p277
      $region70: #{tpu_custom_call.1} parent=59 // pred_check_branch
        %917 = sbr.rel (%p915) target = $region72
      $region71: #{tpu_custom_call.1} parent=59 // pred_region
        %s918 = smul.u32 2, %s26
      $region72: #{tpu_custom_call.1} parent=59 // pred_fallthru
        _
    $region60: #{tpu_custom_call.1} parent=5 // pred_fallthru
      _
    %p919 = scmp.le.s32.totalorder 2, %s16
    // Predicated region
    $region73: #{tpu_custom_call.1} parent=5 // pred_check
      %p920 = pneg %p919
    $region74: #{tpu_custom_call.1} parent=5 // pred_check_branch
      %922 = sbr.rel (%p920) target = $region76
    $region75: #{tpu_custom_call.1} parent=5 // pred_region
      %s923 = ssub.s32 %s16, 2
      // Predicated region
      $region77: #{tpu_custom_call.1} parent=75 // pred_check
        %p924 = pneg %p283
      $region78: #{tpu_custom_call.1} parent=75 // pred_check_branch
        %926 = sbr.rel (%p924) target = $region80
      $region79: #{tpu_custom_call.1} parent=75 // pred_region
        %s927 = smul.u32 2, %s28
        %p928 = scmp.lt.s32.totalorder %s27, 1
        %s929 = scalar_select %p928, %s27, 1
        %p930 = scmp.lt.s32.totalorder %s927, 5
        %s931 = scalar_select %p930, %s927, 5
        %s932 = smul.addr %s929, 6
        %s933 = sadd.s32 %s931, %s932
        %s934 = smul.addr %s933, 8
        %s935 = scalar_lea.vmem %s10, %s934
      $region80: #{tpu_custom_call.1} parent=75 // pred_fallthru
        _
    $region76: #{tpu_custom_call.1} parent=5 // pred_fallthru
      _
  $region6: #{tpu_custom_call.1} parent=0 // loop_footer
    %s20 = sadd.s32 1, %s16
  $region7: #{tpu_custom_call.1} parent=0 // loop_footer_branch
    %15 = sbr.rel target = $region3
  $region8: #{tpu_custom_call.1} parent=0 // loop_exit
    _

// kernel: tpu_custom_call.1
$region0: #{tpu_custom_call.1}
  #allocation0 [shape = 'u32[]', space=smem, size = 0x4, offset = 0x4, fixed_abs, tag = 'smem constant byte address 0x4 - core index']
  #allocation1 [shape = 'u32[144,128]{1,0:T(1,128)}', space=vmem, size = 0x12000, scoped, tag = 'internal scratch']
  #allocation2 [shape = 'f32[24,64]{1,0:T(8,128)}', space=vmem, size = 0x3000, scoped, tag = 'scratch operand']
  %s0 = inlined_call_operand.vmem [shape: f32[2,48,32], index: 0, kind: input, shape index: {}]
  %s1 = inlined_call_operand.vmem [shape: f32[2,3,4,32], index: 1, kind: input, shape index: {}]
  %s2 = inlined_call_operand.vmem [shape: f32[1,32], index: 2, kind: input, shape index: {}]
  %s3 = inlined_call_operand.vmem [shape: f32[1,32], index: 3, kind: input, shape index: {}]
  %s4 = inlined_call_operand.vmem [shape: bf16[32,128], index: 4, kind: input, shape index: {}]
  %s5 = inlined_call_operand.vmem [shape: f32[1,128], index: 5, kind: input, shape index: {}]
  %s6 = inlined_call_operand.vmem [shape: f32[5,64], index: 6, kind: input, shape index: {}]
  %s7 = inlined_call_operand.vmem [shape: f32[1,64], index: 7, kind: input, shape index: {}]
  %s8 = inlined_call_operand.vmem [shape: bf16[64,32], index: 8, kind: input, shape index: {}]
  %s9 = inlined_call_operand.vmem [shape: f32[1,32], index: 9, kind: input, shape index: {}]
  %s10 = inlined_call_operand.vmem [shape: f32[2,48,32], index: 10, kind: output, shape index: {}]
  %s11 = sld [smem:[#allocation0]]
  $region81: #{tpu_custom_call.1} parent=0
    _
  %s13 = ssub.s32 1, %s11
  %s14 = scalar_select 0, %s13, %s11
  loop: start=0, step=1, limit=8
  $region2: #{tpu_custom_call.1} parent=0 // loop_pre_header
    _
  $region3: #{tpu_custom_call.1} parent=0 // loop_header
    %s16 = sphi 0, %s20
    %p17 = scmp.ge.s32.totalorder %s16, 8
    %s23 = sphi 0, %s35
    %s24 = sphi 0, %s31
    %s25 = sphi 0, %s23
    %s26 = sphi 0, %s24
    %s27 = sphi 0, %s25
    %s28 = sphi 0, %s26
    %s40 = sphi 0, %s42
    %s43 = sphi 0, %s40
    %s44 = sphi 0, %s43
    %s60 = sphi 0, %s44
    %s68 = sphi 0, %s70
    %s71 = sphi 0, %s68
    %s72 = sphi 0, %s71
    %s88 = sphi 0, %s72
    %s92 = sphi 0, %s92
    %s94 = sphi 0, %s92
    %s95 = sphi 0, %s94
    %s109 = sphi 0, %s95
    %s113 = sphi 0, %s113
    %s115 = sphi 0, %s113
    %s116 = sphi 0, %s115
    %s130 = sphi 0, %s116
    %s134 = sphi 0, %s134
    %s136 = sphi 0, %s134
    %s137 = sphi 0, %s136
    %s151 = sphi 0, %s137
    %s155 = sphi 0, %s155
    %s157 = sphi 0, %s155
    %s158 = sphi 0, %s157
    %s172 = sphi 0, %s158
    %s176 = sphi 0, %s176
    %s178 = sphi 0, %s176
    %s179 = sphi 0, %s178
    %s193 = sphi 0, %s179
    %s197 = sphi 0, %s197
    %s199 = sphi 0, %s197
    %s200 = sphi 0, %s199
    %s214 = sphi 0, %s200
    %s218 = sphi 0, %s218
    %s220 = sphi 0, %s218
    %s221 = sphi 0, %s220
    %s235 = sphi 0, %s221
    %s239 = sphi 0, %s239
    %s241 = sphi 0, %s239
    %s242 = sphi 0, %s241
    %s256 = sphi 0, %s242
    %s264 = sphi 0, %s266
    %s267 = sphi 0, %s264
    %s268 = sphi 0, %s267
    %s284 = sphi 0, %s268
  $region4: #{tpu_custom_call.1} parent=0 // loop_header_branch
    %19 = sbr.rel (%p17) target = $region8
  $region5: #{tpu_custom_call.1} parent=0 // loop_body
    %s21 = ssub.s32 %s16, 1
    %s22 = ssub.s32 %s16, 2
    %s29 = sadd.s32 1, %s24
    %p30 = scmp.ge.s32.totalorder %s29, 3
    %s31 = scalar_select %p30, 0, %s29
    %s32 = sadd.s32 1, %s23
    %s33 = scalar_select %p30, %s32, %s23
    %p34 = scmp.ge.s32.totalorder %s33, 2
    %s35 = scalar_select %p34, 0, %s33
    %s36 = ssub.s32 %s23, %s35
    %s37 = ssub.s32 %s24, %s31
    %s38 = sor.u32 %s36, %s37
    %p39 = scmp.eq.s32.totalorder %s38, 0
    %s41 = sadd.s32 %s40, 1
    %s42 = scalar_select %p39, %s40, %s41
    %p45 = pneg %p39
    %p46 = scmp.eq.s32.totalorder %s16, 5
    %p47 = por %p45, %p46
    %p48 = scmp.ne.s32.totalorder %s40, %s43
    %p49 = scmp.eq.s32.totalorder %s16, 0
    %p50 = por %p48, %p49
    %p51 = scmp.ne.s32.totalorder %s40, %s43
    %p52 = scmp.eq.s32.totalorder %s21, 5
    %p53 = por %p51, %p52
    %p54 = scmp.ne.s32.totalorder %s43, %s44
    %p55 = scmp.eq.s32.totalorder %s21, 0
    %p56 = por %p54, %p55
    %p57 = scmp.ne.s32.totalorder %s43, %s44
    %p58 = scmp.eq.s32.totalorder %s22, 5
    %p59 = por %p57, %p58
    %p61 = scmp.ne.s32.totalorder %s44, %s60
    %p62 = scmp.eq.s32.totalorder %s22, 0
    %p63 = por %p61, %p62
    %s64 = ssub.s32 %s23, %s35
    %s65 = ssub.s32 %s24, %s31
    %s66 = sor.u32 %s64, %s65
    %p67 = scmp.eq.s32.totalorder %s66, 0
    %s69 = sadd.s32 %s68, 1
    %s70 = scalar_select %p67, %s68, %s69
    %p73 = pneg %p67
    %p74 = scmp.eq.s32.totalorder %s16, 5
    %p75 = por %p73, %p74
    %p76 = scmp.ne.s32.totalorder %s68, %s71
    %p77 = scmp.eq.s32.totalorder %s16, 0
    %p78 = por %p76, %p77
    %p79 = scmp.ne.s32.totalorder %s68, %s71
    %p80 = scmp.eq.s32.totalorder %s21, 5
    %p81 = por %p79, %p80
    %p82 = scmp.ne.s32.totalorder %s71, %s72
    %p83 = scmp.eq.s32.totalorder %s21, 0
    %p84 = por %p82, %p83
    %p85 = scmp.ne.s32.totalorder %s71, %s72
    %p86 = scmp.eq.s32.totalorder %s22, 5
    %p87 = por %p85, %p86
    %p89 = scmp.ne.s32.totalorder %s72, %s88
    %p90 = scmp.eq.s32.totalorder %s22, 0
    %p91 = por %p89, %p90
    %s93 = sadd.s32 %s92, 1
    %p96 = scmp.eq.s32.totalorder %s16, 5
    %p97 = scmp.ne.s32.totalorder %s92, %s94
    %p98 = scmp.eq.s32.totalorder %s16, 0
    %p99 = por %p97, %p98
    %p100 = scmp.ne.s32.totalorder %s92, %s94
    %p101 = scmp.eq.s32.totalorder %s21, 5
    %p102 = por %p100, %p101
    %p103 = scmp.ne.s32.totalorder %s94, %s95
    %p104 = scmp.eq.s32.totalorder %s21, 0
    %p105 = por %p103, %p104
    %p106 = scmp.ne.s32.totalorder %s94, %s95
    %p107 = scmp.eq.s32.totalorder %s22, 5
    %p108 = por %p106, %p107
    %p110 = scmp.ne.s32.totalorder %s95, %s109
    %p111 = scmp.eq.s32.totalorder %s22, 0
    %p112 = por %p110, %p111
    %s114 = sadd.s32 %s113, 1
    %p117 = scmp.eq.s32.totalorder %s16, 5
    %p118 = scmp.ne.s32.totalorder %s113, %s115
    %p119 = scmp.eq.s32.totalorder %s16, 0
    %p120 = por %p118, %p119
    %p121 = scmp.ne.s32.totalorder %s113, %s115
    %p122 = scmp.eq.s32.totalorder %s21, 5
    %p123 = por %p121, %p122
    %p124 = scmp.ne.s32.totalorder %s115, %s116
    %p125 = scmp.eq.s32.totalorder %s21, 0
    %p126 = por %p124, %p125
    %p127 = scmp.ne.s32.totalorder %s115, %s116
    %p128 = scmp.eq.s32.totalorder %s22, 5
    %p129 = por %p127, %p128
    %p131 = scmp.ne.s32.totalorder %s116, %s130
    %p132 = scmp.eq.s32.totalorder %s22, 0
    %p133 = por %p131, %p132
    %s135 = sadd.s32 %s134, 1
    %p138 = scmp.eq.s32.totalorder %s16, 5
    %p139 = scmp.ne.s32.totalorder %s134, %s136
    %p140 = scmp.eq.s32.totalorder %s16, 0
    %p141 = por %p139, %p140
    %p142 = scmp.ne.s32.totalorder %s134, %s136
    %p143 = scmp.eq.s32.totalorder %s21, 5
    %p144 = por %p142, %p143
    %p145 = scmp.ne.s32.totalorder %s136, %s137
    %p146 = scmp.eq.s32.totalorder %s21, 0
    %p147 = por %p145, %p146
    %p148 = scmp.ne.s32.totalorder %s136, %s137
    %p149 = scmp.eq.s32.totalorder %s22, 5
    %p150 = por %p148, %p149
    %p152 = scmp.ne.s32.totalorder %s137, %s151
    %p153 = scmp.eq.s32.totalorder %s22, 0
    %p154 = por %p152, %p153
    %s156 = sadd.s32 %s155, 1
    %p159 = scmp.eq.s32.totalorder %s16, 5
    %p160 = scmp.ne.s32.totalorder %s155, %s157
    %p161 = scmp.eq.s32.totalorder %s16, 0
    %p162 = por %p160, %p161
    %p163 = scmp.ne.s32.totalorder %s155, %s157
    %p164 = scmp.eq.s32.totalorder %s21, 5
    %p165 = por %p163, %p164
    %p166 = scmp.ne.s32.totalorder %s157, %s158
    %p167 = scmp.eq.s32.totalorder %s21, 0
    %p168 = por %p166, %p167
    %p169 = scmp.ne.s32.totalorder %s157, %s158
    %p170 = scmp.eq.s32.totalorder %s22, 5
    %p171 = por %p169, %p170
    %p173 = scmp.ne.s32.totalorder %s158, %s172
    %p174 = scmp.eq.s32.totalorder %s22, 0
    %p175 = por %p173, %p174
    %s177 = sadd.s32 %s176, 1
    %p180 = scmp.eq.s32.totalorder %s16, 5
    %p181 = scmp.ne.s32.totalorder %s176, %s178
    %p182 = scmp.eq.s32.totalorder %s16, 0
    %p183 = por %p181, %p182
    %p184 = scmp.ne.s32.totalorder %s176, %s178
    %p185 = scmp.eq.s32.totalorder %s21, 5
    %p186 = por %p184, %p185
    %p187 = scmp.ne.s32.totalorder %s178, %s179
    %p188 = scmp.eq.s32.totalorder %s21, 0
    %p189 = por %p187, %p188
    %p190 = scmp.ne.s32.totalorder %s178, %s179
    %p191 = scmp.eq.s32.totalorder %s22, 5
    %p192 = por %p190, %p191
    %p194 = scmp.ne.s32.totalorder %s179, %s193
    %p195 = scmp.eq.s32.totalorder %s22, 0
    %p196 = por %p194, %p195
    %s198 = sadd.s32 %s197, 1
    %p201 = scmp.eq.s32.totalorder %s16, 5
    %p202 = scmp.ne.s32.totalorder %s197, %s199
    %p203 = scmp.eq.s32.totalorder %s16, 0
    %p204 = por %p202, %p203
    %p205 = scmp.ne.s32.totalorder %s197, %s199
    %p206 = scmp.eq.s32.totalorder %s21, 5
    %p207 = por %p205, %p206
    %p208 = scmp.ne.s32.totalorder %s199, %s200
    %p209 = scmp.eq.s32.totalorder %s21, 0
    %p210 = por %p208, %p209
    %p211 = scmp.ne.s32.totalorder %s199, %s200
    %p212 = scmp.eq.s32.totalorder %s22, 5
    %p213 = por %p211, %p212
    %p215 = scmp.ne.s32.totalorder %s200, %s214
    %p216 = scmp.eq.s32.totalorder %s22, 0
    %p217 = por %p215, %p216
    %s219 = sadd.s32 %s218, 1
    %p222 = scmp.eq.s32.totalorder %s16, 5
    %p223 = scmp.ne.s32.totalorder %s218, %s220
    %p224 = scmp.eq.s32.totalorder %s16, 0
    %p225 = por %p223, %p224
    %p226 = scmp.ne.s32.totalorder %s218, %s220
    %p227 = scmp.eq.s32.totalorder %s21, 5
    %p228 = por %p226, %p227
    %p229 = scmp.ne.s32.totalorder %s220, %s221
    %p230 = scmp.eq.s32.totalorder %s21, 0
    %p231 = por %p229, %p230
    %p232 = scmp.ne.s32.totalorder %s220, %s221
    %p233 = scmp.eq.s32.totalorder %s22, 5
    %p234 = por %p232, %p233
    %p236 = scmp.ne.s32.totalorder %s221, %s235
    %p237 = scmp.eq.s32.totalorder %s22, 0
    %p238 = por %p236, %p237
    %s240 = sadd.s32 %s239, 1
    %p243 = scmp.eq.s32.totalorder %s16, 5
    %p244 = scmp.ne.s32.totalorder %s239, %s241
    %p245 = scmp.eq.s32.totalorder %s16, 0
    %p246 = por %p244, %p245
    %p247 = scmp.ne.s32.totalorder %s239, %s241
    %p248 = scmp.eq.s32.totalorder %s21, 5
    %p249 = por %p247, %p248
    %p250 = scmp.ne.s32.totalorder %s241, %s242
    %p251 = scmp.eq.s32.totalorder %s21, 0
    %p252 = por %p250, %p251
    %p253 = scmp.ne.s32.totalorder %s241, %s242
    %p254 = scmp.eq.s32.totalorder %s22, 5
    %p255 = por %p253, %p254
    %p257 = scmp.ne.s32.totalorder %s242, %s256
    %p258 = scmp.eq.s32.totalorder %s22, 0
    %p259 = por %p257, %p258
    %s260 = ssub.s32 %s23, %s35
    %s261 = ssub.s32 %s24, %s31
    %s262 = sor.u32 %s260, %s261
    %p263 = scmp.eq.s32.totalorder %s262, 0
    %s265 = sadd.s32 %s264, 1
    %s266 = scalar_select %p263, %s264, %s265
    %p269 = pneg %p263
    %p270 = scmp.eq.s32.totalorder %s16, 5
    %p271 = por %p269, %p270
    %p272 = scmp.ne.s32.totalorder %s264, %s267
    %p273 = scmp.eq.s32.totalorder %s16, 0
    %p274 = por %p272, %p273
    %p275 = scmp.ne.s32.totalorder %s264, %s267
    %p276 = scmp.eq.s32.totalorder %s21, 5
    %p277 = por %p275, %p276
    %p278 = scmp.ne.s32.totalorder %s267, %s268
    %p279 = scmp.eq.s32.totalorder %s21, 0
    %p280 = por %p278, %p279
    %p281 = scmp.ne.s32.totalorder %s267, %s268
    %p282 = scmp.eq.s32.totalorder %s22, 5
    %p283 = por %p281, %p282
    %p285 = scmp.ne.s32.totalorder %s268, %s284
    %p286 = scmp.eq.s32.totalorder %s22, 0
    %p287 = por %p285, %p286
    %p288 = scmp.le.s32.totalorder 1, %s16
    %p289 = scmp.lt.s32.totalorder %s16, 7
    %p290 = pnand %p288, %p289
    %p291 = pneg %p290
    // Predicated region
    $region9: #{tpu_custom_call.1} parent=5 // pred_check
      _
    $region10: #{tpu_custom_call.1} parent=5 // pred_check_branch
      %293 = sbr.rel (%p290) target = $region12
    $region11: #{tpu_custom_call.1} parent=5 // pred_region
      %s294 = ssub.s32 %s16, 1
      // Predicated region
      $region13: #{tpu_custom_call.1} parent=11 // pred_check
        %p295 = pneg %p105
      $region14: #{tpu_custom_call.1} parent=11 // pred_check_branch
        %297 = sbr.rel (%p295) target = $region16
      $region15: #{tpu_custom_call.1} parent=11 // pred_region
        _
      $region16: #{tpu_custom_call.1} parent=11 // pred_fallthru
        _
      // Predicated region
      $region17: #{tpu_custom_call.1} parent=11 // pred_check
        %p298 = pneg %p126
      $region18: #{tpu_custom_call.1} parent=11 // pred_check_branch
        %300 = sbr.rel (%p298) target = $region20
      $region19: #{tpu_custom_call.1} parent=11 // pred_region
        _
      $region20: #{tpu_custom_call.1} parent=11 // pred_fallthru
        _
      // Predicated region
      $region21: #{tpu_custom_call.1} parent=11 // pred_check
        %p301 = pneg %p147
      $region22: #{tpu_custom_call.1} parent=11 // pred_check_branch
        %303 = sbr.rel (%p301) target = $region24
      $region23: #{tpu_custom_call.1} parent=11 // pred_region
        _
      $region24: #{tpu_custom_call.1} parent=11 // pred_fallthru
        _
      // Predicated region
      $region25: #{tpu_custom_call.1} parent=11 // pred_check
        %p304 = pneg %p168
      $region26: #{tpu_custom_call.1} parent=11 // pred_check_branch
        %306 = sbr.rel (%p304) target = $region28
      $region27: #{tpu_custom_call.1} parent=11 // pred_region
        _
      $region28: #{tpu_custom_call.1} parent=11 // pred_fallthru
        _
      // Predicated region
      $region29: #{tpu_custom_call.1} parent=11 // pred_check
        %p307 = pneg %p189
      $region30: #{tpu_custom_call.1} parent=11 // pred_check_branch
        %309 = sbr.rel (%p307) target = $region32
      $region31: #{tpu_custom_call.1} parent=11 // pred_region
        _
      $region32: #{tpu_custom_call.1} parent=11 // pred_fallthru
        _
      // Predicated region
      $region33: #{tpu_custom_call.1} parent=11 // pred_check
        %p310 = pneg %p210
      $region34: #{tpu_custom_call.1} parent=11 // pred_check_branch
        %312 = sbr.rel (%p310) target = $region36
      $region35: #{tpu_custom_call.1} parent=11 // pred_region
        _
      $region36: #{tpu_custom_call.1} parent=11 // pred_fallthru
        _
      // Predicated region
      $region37: #{tpu_custom_call.1} parent=11 // pred_check
        %p313 = pneg %p231
      $region38: #{tpu_custom_call.1} parent=11 // pred_check_branch
        %315 = sbr.rel (%p313) target = $region40
      $region39: #{tpu_custom_call.1} parent=11 // pred_region
        _
      $region40: #{tpu_custom_call.1} parent=11 // pred_fallthru
        _
      // Predicated region
      $region41: #{tpu_custom_call.1} parent=11 // pred_check
        %p316 = pneg %p252
      $region42: #{tpu_custom_call.1} parent=11 // pred_check_branch
        %318 = sbr.rel (%p316) target = $region44
      $region43: #{tpu_custom_call.1} parent=11 // pred_region
        _
      $region44: #{tpu_custom_call.1} parent=11 // pred_fallthru
        _
    $region12: #{tpu_custom_call.1} parent=5 // pred_fallthru
      _
    %p319 = scmp.lt.s32.totalorder %s16, 6
    // Predicated region
    $region45: #{tpu_custom_call.1} parent=5 // pred_check
      %p320 = pneg %p319
    $region46: #{tpu_custom_call.1} parent=5 // pred_check_branch
      %322 = sbr.rel (%p320) target = $region48
    $region47: #{tpu_custom_call.1} parent=5 // pred_region
      // Predicated region
      $region49: #{tpu_custom_call.1} parent=47 // pred_check
        %p323 = pneg %p50
      $region50: #{tpu_custom_call.1} parent=47 // pred_check_branch
        %325 = sbr.rel (%p323) target = $region52
      $region51: #{tpu_custom_call.1} parent=47 // pred_region
        %s326 = smul.u32 2, %s24
        %p327 = scmp.lt.s32.totalorder %s23, 1
        %s328 = scalar_select %p327, %s23, 1
        %p329 = scmp.lt.s32.totalorder %s326, 5
        %s330 = scalar_select %p329, %s326, 5
        %s331 = smul.addr %s328, 6
        %s332 = sadd.s32 %s330, %s331
        %s333 = smul.addr %s332, 8
        %s334 = scalar_lea.vmem %s0, %s333
        %s335 = smul.u32 2, %s24
      $region52: #{tpu_custom_call.1} parent=47 // pred_fallthru
        _
      // Predicated region
      $region53: #{tpu_custom_call.1} parent=47 // pred_check
        %p336 = pneg %p78
      $region54: #{tpu_custom_call.1} parent=47 // pred_check_branch
        %338 = sbr.rel (%p336) target = $region56
      $region55: #{tpu_custom_call.1} parent=47 // pred_region
        %p339 = scmp.lt.s32.totalorder %s23, 1
        %s340 = scalar_select %p339, %s23, 1
        %p341 = scmp.lt.s32.totalorder %s24, 2
        %s342 = scalar_select %p341, %s24, 2
        %s343 = smul.addr %s340, 3
        %s344 = sadd.s32 %s342, %s343
        %s345 = smul.addr %s344, 4
        %s346 = scalar_lea.vmem %s1, %s345
      $region56: #{tpu_custom_call.1} parent=47 // pred_fallthru
        _
    $region48: #{tpu_custom_call.1} parent=5 // pred_fallthru
      _
    %p347 = scmp.le.s32.totalorder 1, %s16
    %p348 = scmp.lt.s32.totalorder %s16, 7
    %p349 = pnand %p347, %p348
    %p350 = pneg %p349
    // Predicated region
    $region57: #{tpu_custom_call.1} parent=5 // pred_check
      _
    $region58: #{tpu_custom_call.1} parent=5 // pred_check_branch
      %352 = sbr.rel (%p349) target = $region60
    $region59: #{tpu_custom_call.1} parent=5 // pred_region
      %s353 = ssub.s32 %s16, 1
      %s354 = smul.u32 2, %s26
      %p355 = scmp.lt.s32.totalorder %s25, 1
      %s356 = scalar_select %p355, %s25, 1
      %p357 = scmp.lt.s32.totalorder %s354, 5
      %s358 = scalar_select %p357, %s354, 5
      %s359 = smul.addr %s356, 6
      %s360 = sadd.s32 %s358, %s359
      %s361 = smul.addr %s360, 8
      %s362 = scalar_lea.vmem %s0, %s361
      %p363 = pneg %p56
      %p364 = pneg %p53
      %p365 = scmp.lt.s32.totalorder %s25, 1
      %s366 = scalar_select %p365, %s25, 1
      %p367 = scmp.lt.s32.totalorder %s26, 2
      %s368 = scalar_select %p367, %s26, 2
      %s369 = smul.addr %s366, 3
      %s370 = sadd.s32 %s368, %s369
      %s371 = smul.addr %s370, 4
      %s372 = scalar_lea.vmem %s1, %s371
      %p373 = pneg %p84
      %p374 = pneg %p81
      %p375 = pneg %p105
      %p376 = pneg %p102
      %p377 = pneg %p126
      %p378 = pneg %p123
      %p379 = pneg %p147
      %p380 = pneg %p144
      %p381 = pneg %p168
      %p382 = pneg %p165
      %p383 = pneg %p189
      %p384 = pneg %p186
      %p385 = pneg %p210
      %p386 = pneg %p207
      %p387 = pneg %p231
      %p388 = pneg %p228
      %p389 = pneg %p252
      %p390 = pneg %p249
      %p391 = pneg %p280
      %p392 = pneg %p277
      %s393 = smul.u32 2, %s26
      %p394 = scmp.lt.s32.totalorder %s25, 1
      %s395 = scalar_select %p394, %s25, 1
      %p396 = scmp.lt.s32.totalorder %s393, 5
      %s397 = scalar_select %p396, %s393, 5
      %s398 = smul.addr %s395, 6
      %s399 = sadd.s32 %s397, %s398
      %s400 = smul.addr %s399, 8
      %s401 = scalar_lea.vmem %s10, %s400
      %s402 = smul.u32 2, %s26
      %p403 = scmp.lt.s32.totalorder %s25, 1
      %s404 = scalar_select %p403, %s25, 1
      %p405 = scmp.lt.s32.totalorder %s402, 5
      %s406 = scalar_select %p405, %s402, 5
      %s407 = smul.addr %s404, 6
      %s408 = sadd.s32 %s406, %s407
      %s409 = smul.addr %s408, 8
      %s410 = scalar_lea.vmem %s0, %s409
      %s411 = smul.u32 2, %s26
      %p412 = scmp.lt.s32.totalorder %s25, 1
      %s413 = scalar_select %p412, %s25, 1
      %p414 = scmp.lt.s32.totalorder %s26, 2
      %s415 = scalar_select %p414, %s26, 2
      %s416 = smul.addr %s413, 3
      %s417 = sadd.s32 %s415, %s416
      %s418 = smul.addr %s417, 4
      %s419 = scalar_lea.vmem %s1, %s418
      %s420 = smul.u32 2, %s26
      %p421 = scmp.lt.s32.totalorder %s25, 1
      %s422 = scalar_select %p421, %s25, 1
      %p423 = scmp.lt.s32.totalorder %s420, 5
      %s424 = scalar_select %p423, %s420, 5
      %s425 = smul.addr %s422, 6
      %s426 = sadd.s32 %s424, %s425
      %s427 = smul.addr %s426, 8
      %s428 = scalar_lea.vmem %s10, %s427
      %s429 = smul.u32 2, %s26
      %s431 = smul.u32 %s26, 16
      %v432 = vld [vmem:[%s410] sm:$0xff]
      %v433 = vld [vmem:[%s410 + $0x8] sm:$0xff]
      %v434 = vld [vmem:[%s419] sm:$0xf]
      %vm437 = vcmask 1041408
      %v438 = vrot.slane %v432, 6
      %v439 = vrot.slane %v433, 6
      %v440 = vsel %vm437, %v438, %v439
      %v444 = vsel %vm437, %v434, %v438
      %v445 = vsel %vm437, %v439, %v434
      %vm446 = vcmask 261120
      %v447 = vsel %vm446, %v444, 0.0
      %448 = vadd.xlane.f32.xlu0 %v447
      %v449 = vpop.xlane.xlu0 %448
      %v450 = vsel %vm446, %v440, 0.0
      %451 = vadd.xlane.f32.xlu0 %v450
      %v452 = vpop.xlane.xlu0 %451
      %vm453 = vcmask 257024
      %v454 = vsel %vm453, %v445, 0.0
      %455 = vadd.xlane.f32.xlu0 %v454
      %v456 = vpop.xlane.xlu0 %455
      %v457 = vrcp.pop 32.0
      %v458 = vmul.f32 %v449, %v457
      %v459 = vmul.f32 %v452, %v457
      %v460 = vmul.f32 %v456, %v457
      %v461 = vsub.f32 %v444, %v458
      %v462 = vsub.f32 %v440, %v459
      %v463 = vsub.f32 %v445, %v460
      %v464 = vmul.f32 %v461, %v461
      %v465 = vmul.f32 %v462, %v462
      %v466 = vmul.f32 %v463, %v463
      %v467 = vsel %vm446, %v464, 0.0
      %468 = vadd.xlane.f32.xlu0 %v467
      %v469 = vpop.xlane.xlu0 %468
      %v470 = vsel %vm446, %v465, 0.0
      %471 = vadd.xlane.f32.xlu0 %v470
      %v472 = vpop.xlane.xlu0 %471
      %v473 = vsel %vm453, %v466, 0.0
      %474 = vadd.xlane.f32.xlu0 %v473
      %v475 = vpop.xlane.xlu0 %474
      %v476 = vmul.f32 %v469, %v457
      %v477 = vmul.f32 %v472, %v457
      %v478 = vmul.f32 %v475, %v457
      %v479 = vadd.f32 %v476, 1e-05
      %v480 = vadd.f32 %v477, 1e-05
      %v481 = vadd.f32 %v478, 1e-05
      %v482 = vrsqrt.pop %v479
      %v483 = vrsqrt.pop %v480
      %v484 = vrsqrt.pop %v481
      %v485 = vmul.f32 %v461, %v482
      %v486 = vmul.f32 %v462, %v483
      %v487 = vmul.f32 %v463, %v484
      %v488 = vld [vmem:[%s2] sm:$0x1]
      %v490 = vlaneseq
      %v491 = vshrl.u32 %v490, 7
      %v492 = vsub.s32 0, %v491
      %v493 = vrot.slane %v488, %v492
      %v495 = vmul.f32 %v485, %v493
      %v496 = vmul.f32 %v486, %v493
      %v497 = vmul.f32 %v487, %v493
      %v498 = vld [vmem:[%s3] sm:$0x1]
      %v500 = vlaneseq
      %v501 = vshrl.u32 %v500, 7
      %v502 = vsub.s32 0, %v501
      %v503 = vrot.slane %v498, %v502
      %v505 = vadd.f32 %v495, %v503
      %v506 = vadd.f32 %v496, %v503
      %v507 = vadd.f32 %v497, %v503
      %v508 = vpack.c.bf16 %v506, %v505
      %v509 = vpack.c.bf16 %v507, %v507
      %v510 = vld [vmem:[%s4] sm:$0xf]
      %v511 = vld [vmem:[%s4 + $0x4] sm:$0xf]
      %v512 = vld [vmem:[%s4 + $0x8] sm:$0xf]
      %v513 = vld [vmem:[%s4 + $0xc] sm:$0xf]
      %v514 = vld [vmem:[%s5] sm:$0x1]
      %v516 = vlaneseq
      %v517 = vshrl.u32 %v516, 7
      %v518 = vsub.s32 0, %v517
      %v519 = vrot.slane %v514, %v518
      %v525 = vunpack.c.l.b16 %v510
      %v526 = vunpack.c.l.b16 %v511
      %v527 = vunpack.c.l.b16 %v512
      %v528 = vunpack.c.l.b16 %v513
      %v529 = vpack.c.b16 %v526, %v525
      %v530 = vpack.c.b16 %v528, %v527
      %v534 = vsel %vm446, %v508, 0
      %v537 = vsel %vm446, %v509, 0
      %539 = vmatprep.subr.bf16.mxu0 0
      %540 = vmatpush1.bf16.msra.mxu0 %v529
      %541 = vmatprep.subr.bf16.mxu0 0
      %542 = vmatpush1.bf16.msra.mxu0 %v530
      %543 = vmatprep.subr.bf16.mxu0 0
      %544 = vmatpush1.bf16.msra.mxu0 0
      %545 = vmatprep.subr.bf16.mxu0 0
      %546 = vmatpush1.bf16.msra.mxu0 0
      %547 = vmatprep.subr.bf16.mxu0 0
      %548 = vmatpush1.bf16.msra.mxu0 0
      %549 = vmatprep.subr.bf16.mxu0 0
      %550 = vmatpush1.bf16.msra.mxu0 0
      %551 = vmatprep.subr.bf16.mxu0 0
      %552 = vmatpush1.bf16.msra.mxu0 0
      %553 = vmatprep.subr.bf16.mxu0 0
      %554 = vmatpush1.bf16.msra.mxu0 0
      %555 = vmatprep.subr.bf16.mxu0 0
      %556 = vmatpush1.bf16.msra.mxu0 0
      %557 = vmatprep.subr.bf16.mxu0 0
      %558 = vmatpush1.bf16.msra.mxu0 0
      %559 = vmatprep.subr.bf16.mxu0 0
      %560 = vmatpush1.bf16.msra.mxu0 0
      %561 = vmatprep.subr.bf16.mxu0 0
      %562 = vmatpush1.bf16.msra.mxu0 0
      %563 = vmatprep.subr.bf16.mxu0 0
      %564 = vmatpush1.bf16.msra.mxu0 0
      %565 = vmatprep.subr.bf16.mxu0 0
      %566 = vmatpush1.bf16.msra.mxu0 0
      %567 = vmatprep.subr.bf16.mxu0 0
      %568 = vmatpush1.bf16.msra.mxu0 0
      %569 = vmatprep.subr.bf16.mxu0 0
      %570 = vmatpush1.bf16.msra.mxu0 0
      %571 = vmatprep.mubr.bf16.mxu0 0
      %572 = vmatmul.mubr.bf16.gmra.mrb[0].mxu0 %v534
      %v573 = vpop.f32.mrb[0].mxu0
      %v574 = vadd.f32 %v519, %v573
      %v575 = vpop.f32.mrb[0].mxu0
      %v576 = vpop.f32.mrb[0].mxu0
      %v577 = vadd.f32 %v519, %v576
      %v578 = vpop.f32.mrb[0].mxu0
      %579 = vmatprep.mubr.bf16.mxu0 0
      %580 = vmatmul.mubr.bf16.gmra.mrb[0].mxu0 %v537
      %v581 = vpop.f32.mrb[0].mxu0
      %v582 = vadd.f32 %v519, %v581
      %v583 = vpop.f32.mrb[0].mxu0
      %v584 = vpop.f32.mrb[0].mxu0
      %v585 = vpop.f32.mrb[0].mxu0
      %586 = vdwg.mxu0
      %v587 = vxor.u32 %v574, 2147483648
      %v588 = vxor.u32 %v577, 2147483648
      %v589 = vxor.u32 %v582, 2147483648
      %v590 = vmul.f32 %v587, 1.442695
      %v591 = vpow.pop %v590
      %v592 = vmul.f32 %v588, 1.442695
      %v593 = vpow.pop %v592
      %v594 = vmul.f32 %v589, 1.442695
      %v595 = vpow.pop %v594
      %v596 = vadd.f32 %v591, 1.0
      %v597 = vadd.f32 %v593, 1.0
      %v598 = vadd.f32 %v595, 1.0
      %v599 = vrcp.pop %v596
      %v600 = vmul.f32 1.0, %v599
      %v601 = vrcp.pop %v597
      %v602 = vmul.f32 1.0, %v601
      %v603 = vrcp.pop %v598
      %v604 = vmul.f32 1.0, %v603
      %608 = vrot.lane.b32.xlu0 %v600, 64
      %v609 = vpop.permute.xlu0 %608
      %610 = vrot.lane.b32.xlu0 %v602, 64
      %v611 = vpop.permute.xlu0 %610
      %612 = vrot.lane.b32.xlu0 %v604, 64
      %v613 = vpop.permute.xlu0 %612
      %v617 = vmul.f32 %v574, %v609
      %v618 = vmul.f32 %v577, %v611
      %v619 = vmul.f32 %v582, %v613
      %p620 = scmp.lt.s32.totalorder %s431, 2
      %s621 = sadd.s32 %s431, 18
      %p622 = scmp.gt.s32.totalorder %s621, 40
      %p623 = por %p620, %p622
      // Predicated region
      $region61: #{tpu_custom_call.1} parent=59 // pred_check
        %p624 = pneg %p623
      $region62: #{tpu_custom_call.1} parent=59 // pred_check_branch
        %626 = sbr.rel (%p624) target = $region64
      $region63: #{tpu_custom_call.1} parent=59 // pred_region
        %s627 = ssub.s32 %s431, 2
        %v628 = vlaneseq
        %v629 = vshrl.u32 %v628, 7
        %v630 = vadd.s32 %v629, 8
        %v631 = vadd.s32 %v629, 16
        %v632 = vstv %s627
        %v633 = vadd.s32 %v632, %v629
        %v634 = vadd.s32 %v632, %v630
        %v635 = vadd.s32 %v632, %v631
        %vm636 = vcmp.ge.s32.totalorder %v633, 0
        %vm637 = vcmp.ge.s32.totalorder %v634, 0
        %vm638 = vcmp.ge.s32.totalorder %v635, 0
        %vm639 = vcmp.lt.s32.totalorder %v633, 40
        %vm640 = vcmp.lt.s32.totalorder %v634, 40
        %vm641 = vcmp.lt.s32.totalorder %v635, 40
        %vm642 = vmand %vm636, %vm639
        %vm643 = vmand %vm637, %vm640
        %vm644 = vmand %vm638, %vm641
        %v645 = vsel %vm642, 1, 0
        %v646 = vsel %vm643, 1, 0
        %v647 = vsel %vm644, 1, 0
        %vm648 = vcmp.eq.s32.totalorder %v645, 1
        %vm649 = vcmp.eq.s32.totalorder %v646, 1
        %vm650 = vcmp.eq.s32.totalorder %v647, 1
        %v651 = vsel %vm648, %v617, 0.0
        %v652 = vsel %vm649, %v618, 0.0
        %v653 = vsel %vm650, %v619, 0.0
        %vm654 = vcmask 523264
        %655 = vst.msk [vmem:[#allocation2] sm:$0xff] %vm654, %v651
        %656 = vst.msk [vmem:[#allocation2 + $0x8] sm:$0xff] %vm654, %v652
        %vm657 = vcmask 519168
        %658 = vst.msk [vmem:[#allocation2 + $0x10] sm:$0xf] %vm657, %v653
      $region64: #{tpu_custom_call.1} parent=59 // pred_fallthru
        _
      %p659 = pneg %p623
      // Predicated region
      $region65: #{tpu_custom_call.1} parent=59 // pred_check
        _
      $region66: #{tpu_custom_call.1} parent=59 // pred_check_branch
        %661 = sbr.rel (%p623) target = $region68
      $region67: #{tpu_custom_call.1} parent=59 // pred_region
        %vm662 = vcmask 523264
        %663 = vst.msk [vmem:[#allocation2] sm:$0xff] %vm662, %v617
        %664 = vst.msk [vmem:[#allocation2 + $0x8] sm:$0xff] %vm662, %v618
        %vm665 = vcmask 519168
        %666 = vst.msk [vmem:[#allocation2 + $0x10] sm:$0xf] %vm665, %v619
      $region68: #{tpu_custom_call.1} parent=59 // pred_fallthru
        _
      %v667 = vld [vmem:[%s6] sm:$0x1f]
      %v668 = vld [vmem:[#allocation2] sm:$0xff]
      %v669 = vld [vmem:[#allocation2 + $0x8] sm:$0xff]
      %v670 = vlaneseq
      %v671 = vshrl.u32 %v670, 7
      %v672 = vsub.s32 0, %v671
      %v673 = vrot.slane %v667, %v672
      %v674 = vmul.f32 %v668, %v673
      %v675 = vmul.f32 %v669, %v673
      %v676 = vadd.f32 %v674, 0.0
      %v677 = vadd.f32 %v675, 0.0
      %v678 = vld [vmem:[#allocation2 + $0x1] sm:$0xff]
      %v679 = vld [vmem:[#allocation2 + $0x9] sm:$0xff]
      %v680 = vlaneseq
      %v681 = vshrl.u32 %v680, 7
      %v682 = vsub.s32 1, %v681
      %v683 = vrot.slane %v667, %v682
      %v684 = vmul.f32 %v678, %v683
      %v685 = vmul.f32 %v679, %v683
      %v686 = vadd.f32 %v676, %v684
      %v687 = vadd.f32 %v677, %v685
      %v688 = vld [vmem:[#allocation2 + $0x2] sm:$0xff]
      %v689 = vld [vmem:[#allocation2 + $0xa] sm:$0xff]
      %v690 = vlaneseq
      %v691 = vshrl.u32 %v690, 7
      %v692 = vsub.s32 2, %v691
      %v693 = vrot.slane %v667, %v692
      %v694 = vmul.f32 %v688, %v693
      %v695 = vmul.f32 %v689, %v693
      %v696 = vadd.f32 %v686, %v694
      %v697 = vadd.f32 %v687, %v695
      %v698 = vld [vmem:[#allocation2 + $0x3] sm:$0xff]
      %v699 = vld [vmem:[#allocation2 + $0xb] sm:$0xff]
      %v700 = vlaneseq
      %v701 = vshrl.u32 %v700, 7
      %v702 = vsub.s32 3, %v701
      %v703 = vrot.slane %v667, %v702
      %v704 = vmul.f32 %v698, %v703
      %v705 = vmul.f32 %v699, %v703
      %v706 = vadd.f32 %v696, %v704
      %v707 = vadd.f32 %v697, %v705
      %v708 = vld [vmem:[#allocation2 + $0x4] sm:$0xff]
      %v709 = vld [vmem:[#allocation2 + $0xc] sm:$0xff]
      %v710 = vlaneseq
      %v711 = vshrl.u32 %v710, 7
      %v712 = vsub.s32 4, %v711
      %v713 = vrot.slane %v667, %v712
      %v714 = vmul.f32 %v708, %v713
      %v715 = vmul.f32 %v709, %v713
      %v716 = vadd.f32 %v706, %v714
      %v717 = vadd.f32 %v707, %v715
      %v718 = vld [vmem:[%s7] sm:$0x1]
      %v720 = vlaneseq
      %v721 = vshrl.u32 %v720, 7
      %v722 = vsub.s32 0, %v721
      %v723 = vrot.slane %v718, %v722
      %v725 = vadd.f32 %v716, %v723
      %v726 = vadd.f32 %v717, %v723
      %v727 = vxor.u32 %v725, 2147483648
      %v728 = vxor.u32 %v726, 2147483648
      %v729 = vmul.f32 %v727, 1.442695
      %v730 = vpow.pop %v729
      %v731 = vmul.f32 %v728, 1.442695
      %v732 = vpow.pop %v731
      %v733 = vadd.f32 %v730, 1.0
      %v734 = vadd.f32 %v732, 1.0
      %v735 = vrcp.pop %v733
      %v736 = vmul.f32 1.0, %v735
      %v737 = vrcp.pop %v734
      %v738 = vmul.f32 1.0, %v737
      %v739 = vmul.f32 %v725, %v736
      %v740 = vmul.f32 %v726, %v738
      %v741 = vpack.c.bf16 %v740, %v739
      %v742 = vld [vmem:[%s8] sm:$0xf]
      %v743 = vld [vmem:[%s8 + $0x4] sm:$0xf]
      %v744 = vld [vmem:[%s8 + $0x8] sm:$0xf]
      %v745 = vld [vmem:[%s8 + $0xc] sm:$0xf]
      %v746 = vld [vmem:[%s8 + $0x10] sm:$0xf]
      %v747 = vld [vmem:[%s8 + $0x14] sm:$0xf]
      %v748 = vld [vmem:[%s8 + $0x18] sm:$0xf]
      %v749 = vld [vmem:[%s8 + $0x1c] sm:$0xf]
      %v750 = vld [vmem:[%s9] sm:$0x1]
      %v752 = vlaneseq
      %v753 = vshrl.u32 %v752, 7
      %v754 = vsub.s32 0, %v753
      %v755 = vrot.slane %v750, %v754
      %v765 = vunpack.c.l.b16 %v742
      %v766 = vunpack.c.l.b16 %v743
      %v767 = vunpack.c.l.b16 %v744
      %v768 = vunpack.c.l.b16 %v745
      %v769 = vunpack.c.l.b16 %v746
      %v770 = vunpack.c.l.b16 %v747
      %v771 = vunpack.c.l.b16 %v748
      %v772 = vunpack.c.l.b16 %v749
      %v773 = vpack.c.b16 %v766, %v765
      %v774 = vpack.c.b16 %v768, %v767
      %v775 = vpack.c.b16 %v770, %v769
      %v776 = vpack.c.b16 %v772, %v771
      %vm781 = vcmask 523264
      %v783 = vsel %vm781, %v741, 0
      %785 = vmatprep.subr.bf16.mxu0 0
      %786 = vmatpush1.bf16.msra.mxu0 %v773
      %787 = vmatprep.subr.bf16.mxu0 0
      %788 = vmatpush1.bf16.msra.mxu0 %v774
      %789 = vmatprep.subr.bf16.mxu0 0
      %790 = vmatpush1.bf16.msra.mxu0 %v775
      %791 = vmatprep.subr.bf16.mxu0 0
      %792 = vmatpush1.bf16.msra.mxu0 %v776
      %793 = vmatprep.subr.bf16.mxu0 0
      %794 = vmatpush1.bf16.msra.mxu0 0
      %795 = vmatprep.subr.bf16.mxu0 0
      %796 = vmatpush1.bf16.msra.mxu0 0
      %797 = vmatprep.subr.bf16.mxu0 0
      %798 = vmatpush1.bf16.msra.mxu0 0
      %799 = vmatprep.subr.bf16.mxu0 0
      %800 = vmatpush1.bf16.msra.mxu0 0
      %801 = vmatprep.subr.bf16.mxu0 0
      %802 = vmatpush1.bf16.msra.mxu0 0
      %803 = vmatprep.subr.bf16.mxu0 0
      %804 = vmatpush1.bf16.msra.mxu0 0
      %805 = vmatprep.subr.bf16.mxu0 0
      %806 = vmatpush1.bf16.msra.mxu0 0
      %807 = vmatprep.subr.bf16.mxu0 0
      %808 = vmatpush1.bf16.msra.mxu0 0
      %809 = vmatprep.subr.bf16.mxu0 0
      %810 = vmatpush1.bf16.msra.mxu0 0
      %811 = vmatprep.subr.bf16.mxu0 0
      %812 = vmatpush1.bf16.msra.mxu0 0
      %813 = vmatprep.subr.bf16.mxu0 0
      %814 = vmatpush1.bf16.msra.mxu0 0
      %815 = vmatprep.subr.bf16.mxu0 0
      %816 = vmatpush1.bf16.msra.mxu0 0
      %817 = vmatprep.mubr.bf16.mxu0 0
      %818 = vmatmul.mubr.bf16.gmra.mrb[0].mxu0 %v783
      %v819 = vpop.f32.mrb[0].mxu0
      %v820 = vadd.f32 %v755, %v819
      %v821 = vpop.f32.mrb[0].mxu0
      %v822 = vpop.f32.mrb[0].mxu0
      %v823 = vadd.f32 %v755, %v822
      %v824 = vpop.f32.mrb[0].mxu0
      %825 = vdwg.mxu0
      %v826 = vadd.f32 %v432, %v820
      %v827 = vadd.f32 %v433, %v823
      %828 = vst.msk [vmem:[%s428] sm:$0xff] %vm446, %v826
      %829 = vst.msk [vmem:[%s428 + $0x8] sm:$0xff] %vm446, %v827
      %s830 = smul.u32 2, %s26
      %p831 = scmp.lt.s32.totalorder %s25, 1
      %s832 = scalar_select %p831, %s25, 1
      %p833 = scmp.lt.s32.totalorder %s830, 5
      %s834 = scalar_select %p833, %s830, 5
      %s835 = smul.addr %s832, 6
      %s836 = sadd.s32 %s834, %s835
      %s837 = smul.addr %s836, 8
      %s838 = scalar_lea.vmem %s10, %s837
      // Predicated region
      $region69: #{tpu_custom_call.1} parent=59 // pred_check
        %p839 = pneg %p277
      $region70: #{tpu_custom_call.1} parent=59 // pred_check_branch
        %841 = sbr.rel (%p839) target = $region72
      $region71: #{tpu_custom_call.1} parent=59 // pred_region
        %s842 = smul.u32 2, %s26
      $region72: #{tpu_custom_call.1} parent=59 // pred_fallthru
        _
    $region60: #{tpu_custom_call.1} parent=5 // pred_fallthru
      _
    %p843 = scmp.le.s32.totalorder 2, %s16
    // Predicated region
    $region73: #{tpu_custom_call.1} parent=5 // pred_check
      %p844 = pneg %p843
    $region74: #{tpu_custom_call.1} parent=5 // pred_check_branch
      %846 = sbr.rel (%p844) target = $region76
    $region75: #{tpu_custom_call.1} parent=5 // pred_region
      %s847 = ssub.s32 %s16, 2
      // Predicated region
      $region77: #{tpu_custom_call.1} parent=75 // pred_check
        %p848 = pneg %p283
      $region78: #{tpu_custom_call.1} parent=75 // pred_check_branch
        %850 = sbr.rel (%p848) target = $region80
      $region79: #{tpu_custom_call.1} parent=75 // pred_region
        %s851 = smul.u32 2, %s28
        %p852 = scmp.lt.s32.totalorder %s27, 1
        %s853 = scalar_select %p852, %s27, 1
        %p854 = scmp.lt.s32.totalorder %s851, 5
        %s855 = scalar_select %p854, %s851, 5
        %s856 = smul.addr %s853, 6
        %s857 = sadd.s32 %s855, %s856
        %s858 = smul.addr %s857, 8
        %s859 = scalar_lea.vmem %s10, %s858
      $region80: #{tpu_custom_call.1} parent=75 // pred_fallthru
        _
    $region76: #{tpu_custom_call.1} parent=5 // pred_fallthru
      _
  $region6: #{tpu_custom_call.1} parent=0 // loop_footer
    %s20 = sadd.s32 1, %s16
  $region7: #{tpu_custom_call.1} parent=0 // loop_footer_branch
    %15 = sbr.rel target = $region3
  $region8: #{tpu_custom_call.1} parent=0 // loop_exit
    _

// kernel: tpu_custom_call.1
$region0: #{tpu_custom_call.1}
  #allocation0 [shape = 'u32[]', space=smem, size = 0x4, offset = 0x4, fixed_abs, tag = 'smem constant byte address 0x4 - core index']
  #allocation1 [shape = 'u32[144,128]{1,0:T(1,128)}', space=vmem, size = 0x12000, scoped, tag = 'internal scratch']
  #allocation2 [shape = 'f32[24,64]{1,0:T(8,128)}', space=vmem, size = 0x3000, scoped, tag = 'scratch operand']
  %s0 = inlined_call_operand.vmem [shape: f32[2,48,32], index: 0, kind: input, shape index: {}]
  %s1 = inlined_call_operand.vmem [shape: f32[2,3,4,32], index: 1, kind: input, shape index: {}]
  %s2 = inlined_call_operand.vmem [shape: f32[1,32], index: 2, kind: input, shape index: {}]
  %s3 = inlined_call_operand.vmem [shape: f32[1,32], index: 3, kind: input, shape index: {}]
  %s4 = inlined_call_operand.vmem [shape: bf16[32,128], index: 4, kind: input, shape index: {}]
  %s5 = inlined_call_operand.vmem [shape: f32[1,128], index: 5, kind: input, shape index: {}]
  %s6 = inlined_call_operand.vmem [shape: f32[5,64], index: 6, kind: input, shape index: {}]
  %s7 = inlined_call_operand.vmem [shape: f32[1,64], index: 7, kind: input, shape index: {}]
  %s8 = inlined_call_operand.vmem [shape: bf16[64,32], index: 8, kind: input, shape index: {}]
  %s9 = inlined_call_operand.vmem [shape: f32[1,32], index: 9, kind: input, shape index: {}]
  %s10 = inlined_call_operand.vmem [shape: f32[2,48,32], index: 10, kind: output, shape index: {}]
  %s11 = sld [smem:[#allocation0]]
  $region81: #{tpu_custom_call.1} parent=0
    _
  %s13 = ssub.s32 1, %s11
  %s14 = scalar_select 0, %s13, %s11
  loop: start=0, step=1, limit=8
  $region2: #{tpu_custom_call.1} parent=0 // loop_pre_header
    _
  $region3: #{tpu_custom_call.1} parent=0 // loop_header
    %s16 = sphi 0, %s20
    %p17 = scmp.ge.s32.totalorder %s16, 8
    %s23 = sphi 0, %s35
    %s24 = sphi 0, %s31
    %s25 = sphi 0, %s23
    %s26 = sphi 0, %s24
    %s27 = sphi 0, %s25
    %s28 = sphi 0, %s26
    %s40 = sphi 0, %s42
    %s43 = sphi 0, %s40
    %s44 = sphi 0, %s43
    %s60 = sphi 0, %s44
    %s68 = sphi 0, %s70
    %s71 = sphi 0, %s68
    %s72 = sphi 0, %s71
    %s88 = sphi 0, %s72
    %s92 = sphi 0, %s92
    %s94 = sphi 0, %s92
    %s95 = sphi 0, %s94
    %s109 = sphi 0, %s95
    %s113 = sphi 0, %s113
    %s115 = sphi 0, %s113
    %s116 = sphi 0, %s115
    %s130 = sphi 0, %s116
    %s134 = sphi 0, %s134
    %s136 = sphi 0, %s134
    %s137 = sphi 0, %s136
    %s151 = sphi 0, %s137
    %s155 = sphi 0, %s155
    %s157 = sphi 0, %s155
    %s158 = sphi 0, %s157
    %s172 = sphi 0, %s158
    %s176 = sphi 0, %s176
    %s178 = sphi 0, %s176
    %s179 = sphi 0, %s178
    %s193 = sphi 0, %s179
    %s197 = sphi 0, %s197
    %s199 = sphi 0, %s197
    %s200 = sphi 0, %s199
    %s214 = sphi 0, %s200
    %s218 = sphi 0, %s218
    %s220 = sphi 0, %s218
    %s221 = sphi 0, %s220
    %s235 = sphi 0, %s221
    %s239 = sphi 0, %s239
    %s241 = sphi 0, %s239
    %s242 = sphi 0, %s241
    %s256 = sphi 0, %s242
    %s264 = sphi 0, %s266
    %s267 = sphi 0, %s264
    %s268 = sphi 0, %s267
    %s284 = sphi 0, %s268
  $region4: #{tpu_custom_call.1} parent=0 // loop_header_branch
    %19 = sbr.rel (%p17) target = $region8
  $region5: #{tpu_custom_call.1} parent=0 // loop_body
    %s21 = ssub.s32 %s16, 1
    %s22 = ssub.s32 %s16, 2
    %s29 = sadd.s32 1, %s24
    %p30 = scmp.ge.s32.totalorder %s29, 3
    %s31 = scalar_select %p30, 0, %s29
    %s32 = sadd.s32 1, %s23
    %s33 = scalar_select %p30, %s32, %s23
    %p34 = scmp.ge.s32.totalorder %s33, 2
    %s35 = scalar_select %p34, 0, %s33
    %s36 = ssub.s32 %s23, %s35
    %s37 = ssub.s32 %s24, %s31
    %s38 = sor.u32 %s36, %s37
    %p39 = scmp.eq.s32.totalorder %s38, 0
    %s41 = sadd.s32 %s40, 1
    %s42 = scalar_select %p39, %s40, %s41
    %p45 = pneg %p39
    %p46 = scmp.eq.s32.totalorder %s16, 5
    %p47 = por %p45, %p46
    %p48 = scmp.ne.s32.totalorder %s40, %s43
    %p49 = scmp.eq.s32.totalorder %s16, 0
    %p50 = por %p48, %p49
    %p51 = scmp.ne.s32.totalorder %s40, %s43
    %p52 = scmp.eq.s32.totalorder %s21, 5
    %p53 = por %p51, %p52
    %p54 = scmp.ne.s32.totalorder %s43, %s44
    %p55 = scmp.eq.s32.totalorder %s21, 0
    %p56 = por %p54, %p55
    %p57 = scmp.ne.s32.totalorder %s43, %s44
    %p58 = scmp.eq.s32.totalorder %s22, 5
    %p59 = por %p57, %p58
    %p61 = scmp.ne.s32.totalorder %s44, %s60
    %p62 = scmp.eq.s32.totalorder %s22, 0
    %p63 = por %p61, %p62
    %s64 = ssub.s32 %s23, %s35
    %s65 = ssub.s32 %s24, %s31
    %s66 = sor.u32 %s64, %s65
    %p67 = scmp.eq.s32.totalorder %s66, 0
    %s69 = sadd.s32 %s68, 1
    %s70 = scalar_select %p67, %s68, %s69
    %p73 = pneg %p67
    %p74 = scmp.eq.s32.totalorder %s16, 5
    %p75 = por %p73, %p74
    %p76 = scmp.ne.s32.totalorder %s68, %s71
    %p77 = scmp.eq.s32.totalorder %s16, 0
    %p78 = por %p76, %p77
    %p79 = scmp.ne.s32.totalorder %s68, %s71
    %p80 = scmp.eq.s32.totalorder %s21, 5
    %p81 = por %p79, %p80
    %p82 = scmp.ne.s32.totalorder %s71, %s72
    %p83 = scmp.eq.s32.totalorder %s21, 0
    %p84 = por %p82, %p83
    %p85 = scmp.ne.s32.totalorder %s71, %s72
    %p86 = scmp.eq.s32.totalorder %s22, 5
    %p87 = por %p85, %p86
    %p89 = scmp.ne.s32.totalorder %s72, %s88
    %p90 = scmp.eq.s32.totalorder %s22, 0
    %p91 = por %p89, %p90
    %s93 = sadd.s32 %s92, 1
    %p96 = scmp.eq.s32.totalorder %s16, 5
    %p97 = scmp.ne.s32.totalorder %s92, %s94
    %p98 = scmp.eq.s32.totalorder %s16, 0
    %p99 = por %p97, %p98
    %p100 = scmp.ne.s32.totalorder %s92, %s94
    %p101 = scmp.eq.s32.totalorder %s21, 5
    %p102 = por %p100, %p101
    %p103 = scmp.ne.s32.totalorder %s94, %s95
    %p104 = scmp.eq.s32.totalorder %s21, 0
    %p105 = por %p103, %p104
    %p106 = scmp.ne.s32.totalorder %s94, %s95
    %p107 = scmp.eq.s32.totalorder %s22, 5
    %p108 = por %p106, %p107
    %p110 = scmp.ne.s32.totalorder %s95, %s109
    %p111 = scmp.eq.s32.totalorder %s22, 0
    %p112 = por %p110, %p111
    %s114 = sadd.s32 %s113, 1
    %p117 = scmp.eq.s32.totalorder %s16, 5
    %p118 = scmp.ne.s32.totalorder %s113, %s115
    %p119 = scmp.eq.s32.totalorder %s16, 0
    %p120 = por %p118, %p119
    %p121 = scmp.ne.s32.totalorder %s113, %s115
    %p122 = scmp.eq.s32.totalorder %s21, 5
    %p123 = por %p121, %p122
    %p124 = scmp.ne.s32.totalorder %s115, %s116
    %p125 = scmp.eq.s32.totalorder %s21, 0
    %p126 = por %p124, %p125
    %p127 = scmp.ne.s32.totalorder %s115, %s116
    %p128 = scmp.eq.s32.totalorder %s22, 5
    %p129 = por %p127, %p128
    %p131 = scmp.ne.s32.totalorder %s116, %s130
    %p132 = scmp.eq.s32.totalorder %s22, 0
    %p133 = por %p131, %p132
    %s135 = sadd.s32 %s134, 1
    %p138 = scmp.eq.s32.totalorder %s16, 5
    %p139 = scmp.ne.s32.totalorder %s134, %s136
    %p140 = scmp.eq.s32.totalorder %s16, 0
    %p141 = por %p139, %p140
    %p142 = scmp.ne.s32.totalorder %s134, %s136
    %p143 = scmp.eq.s32.totalorder %s21, 5
    %p144 = por %p142, %p143
    %p145 = scmp.ne.s32.totalorder %s136, %s137
    %p146 = scmp.eq.s32.totalorder %s21, 0
    %p147 = por %p145, %p146
    %p148 = scmp.ne.s32.totalorder %s136, %s137
    %p149 = scmp.eq.s32.totalorder %s22, 5
    %p150 = por %p148, %p149
    %p152 = scmp.ne.s32.totalorder %s137, %s151
    %p153 = scmp.eq.s32.totalorder %s22, 0
    %p154 = por %p152, %p153
    %s156 = sadd.s32 %s155, 1
    %p159 = scmp.eq.s32.totalorder %s16, 5
    %p160 = scmp.ne.s32.totalorder %s155, %s157
    %p161 = scmp.eq.s32.totalorder %s16, 0
    %p162 = por %p160, %p161
    %p163 = scmp.ne.s32.totalorder %s155, %s157
    %p164 = scmp.eq.s32.totalorder %s21, 5
    %p165 = por %p163, %p164
    %p166 = scmp.ne.s32.totalorder %s157, %s158
    %p167 = scmp.eq.s32.totalorder %s21, 0
    %p168 = por %p166, %p167
    %p169 = scmp.ne.s32.totalorder %s157, %s158
    %p170 = scmp.eq.s32.totalorder %s22, 5
    %p171 = por %p169, %p170
    %p173 = scmp.ne.s32.totalorder %s158, %s172
    %p174 = scmp.eq.s32.totalorder %s22, 0
    %p175 = por %p173, %p174
    %s177 = sadd.s32 %s176, 1
    %p180 = scmp.eq.s32.totalorder %s16, 5
    %p181 = scmp.ne.s32.totalorder %s176, %s178
    %p182 = scmp.eq.s32.totalorder %s16, 0
    %p183 = por %p181, %p182
    %p184 = scmp.ne.s32.totalorder %s176, %s178
    %p185 = scmp.eq.s32.totalorder %s21, 5
    %p186 = por %p184, %p185
    %p187 = scmp.ne.s32.totalorder %s178, %s179
    %p188 = scmp.eq.s32.totalorder %s21, 0
    %p189 = por %p187, %p188
    %p190 = scmp.ne.s32.totalorder %s178, %s179
    %p191 = scmp.eq.s32.totalorder %s22, 5
    %p192 = por %p190, %p191
    %p194 = scmp.ne.s32.totalorder %s179, %s193
    %p195 = scmp.eq.s32.totalorder %s22, 0
    %p196 = por %p194, %p195
    %s198 = sadd.s32 %s197, 1
    %p201 = scmp.eq.s32.totalorder %s16, 5
    %p202 = scmp.ne.s32.totalorder %s197, %s199
    %p203 = scmp.eq.s32.totalorder %s16, 0
    %p204 = por %p202, %p203
    %p205 = scmp.ne.s32.totalorder %s197, %s199
    %p206 = scmp.eq.s32.totalorder %s21, 5
    %p207 = por %p205, %p206
    %p208 = scmp.ne.s32.totalorder %s199, %s200
    %p209 = scmp.eq.s32.totalorder %s21, 0
    %p210 = por %p208, %p209
    %p211 = scmp.ne.s32.totalorder %s199, %s200
    %p212 = scmp.eq.s32.totalorder %s22, 5
    %p213 = por %p211, %p212
    %p215 = scmp.ne.s32.totalorder %s200, %s214
    %p216 = scmp.eq.s32.totalorder %s22, 0
    %p217 = por %p215, %p216
    %s219 = sadd.s32 %s218, 1
    %p222 = scmp.eq.s32.totalorder %s16, 5
    %p223 = scmp.ne.s32.totalorder %s218, %s220
    %p224 = scmp.eq.s32.totalorder %s16, 0
    %p225 = por %p223, %p224
    %p226 = scmp.ne.s32.totalorder %s218, %s220
    %p227 = scmp.eq.s32.totalorder %s21, 5
    %p228 = por %p226, %p227
    %p229 = scmp.ne.s32.totalorder %s220, %s221
    %p230 = scmp.eq.s32.totalorder %s21, 0
    %p231 = por %p229, %p230
    %p232 = scmp.ne.s32.totalorder %s220, %s221
    %p233 = scmp.eq.s32.totalorder %s22, 5
    %p234 = por %p232, %p233
    %p236 = scmp.ne.s32.totalorder %s221, %s235
    %p237 = scmp.eq.s32.totalorder %s22, 0
    %p238 = por %p236, %p237
    %s240 = sadd.s32 %s239, 1
    %p243 = scmp.eq.s32.totalorder %s16, 5
    %p244 = scmp.ne.s32.totalorder %s239, %s241
    %p245 = scmp.eq.s32.totalorder %s16, 0
    %p246 = por %p244, %p245
    %p247 = scmp.ne.s32.totalorder %s239, %s241
    %p248 = scmp.eq.s32.totalorder %s21, 5
    %p249 = por %p247, %p248
    %p250 = scmp.ne.s32.totalorder %s241, %s242
    %p251 = scmp.eq.s32.totalorder %s21, 0
    %p252 = por %p250, %p251
    %p253 = scmp.ne.s32.totalorder %s241, %s242
    %p254 = scmp.eq.s32.totalorder %s22, 5
    %p255 = por %p253, %p254
    %p257 = scmp.ne.s32.totalorder %s242, %s256
    %p258 = scmp.eq.s32.totalorder %s22, 0
    %p259 = por %p257, %p258
    %s260 = ssub.s32 %s23, %s35
    %s261 = ssub.s32 %s24, %s31
    %s262 = sor.u32 %s260, %s261
    %p263 = scmp.eq.s32.totalorder %s262, 0
    %s265 = sadd.s32 %s264, 1
    %s266 = scalar_select %p263, %s264, %s265
    %p269 = pneg %p263
    %p270 = scmp.eq.s32.totalorder %s16, 5
    %p271 = por %p269, %p270
    %p272 = scmp.ne.s32.totalorder %s264, %s267
    %p273 = scmp.eq.s32.totalorder %s16, 0
    %p274 = por %p272, %p273
    %p275 = scmp.ne.s32.totalorder %s264, %s267
    %p276 = scmp.eq.s32.totalorder %s21, 5
    %p277 = por %p275, %p276
    %p278 = scmp.ne.s32.totalorder %s267, %s268
    %p279 = scmp.eq.s32.totalorder %s21, 0
    %p280 = por %p278, %p279
    %p281 = scmp.ne.s32.totalorder %s267, %s268
    %p282 = scmp.eq.s32.totalorder %s22, 5
    %p283 = por %p281, %p282
    %p285 = scmp.ne.s32.totalorder %s268, %s284
    %p286 = scmp.eq.s32.totalorder %s22, 0
    %p287 = por %p285, %p286
    %p288 = scmp.le.s32.totalorder 1, %s16
    %p289 = scmp.lt.s32.totalorder %s16, 7
    %p290 = pnand %p288, %p289
    %p291 = pneg %p290
    // Predicated region
    $region9: #{tpu_custom_call.1} parent=5 // pred_check
      _
    $region10: #{tpu_custom_call.1} parent=5 // pred_check_branch
      %293 = sbr.rel (%p290) target = $region12
    $region11: #{tpu_custom_call.1} parent=5 // pred_region
      %s294 = ssub.s32 %s16, 1
      // Predicated region
      $region13: #{tpu_custom_call.1} parent=11 // pred_check
        %p295 = pneg %p105
      $region14: #{tpu_custom_call.1} parent=11 // pred_check_branch
        %297 = sbr.rel (%p295) target = $region16
      $region15: #{tpu_custom_call.1} parent=11 // pred_region
        _
      $region16: #{tpu_custom_call.1} parent=11 // pred_fallthru
        _
      // Predicated region
      $region17: #{tpu_custom_call.1} parent=11 // pred_check
        %p298 = pneg %p126
      $region18: #{tpu_custom_call.1} parent=11 // pred_check_branch
        %300 = sbr.rel (%p298) target = $region20
      $region19: #{tpu_custom_call.1} parent=11 // pred_region
        _
      $region20: #{tpu_custom_call.1} parent=11 // pred_fallthru
        _
      // Predicated region
      $region21: #{tpu_custom_call.1} parent=11 // pred_check
        %p301 = pneg %p147
      $region22: #{tpu_custom_call.1} parent=11 // pred_check_branch
        %303 = sbr.rel (%p301) target = $region24
      $region23: #{tpu_custom_call.1} parent=11 // pred_region
        _
      $region24: #{tpu_custom_call.1} parent=11 // pred_fallthru
        _
      // Predicated region
      $region25: #{tpu_custom_call.1} parent=11 // pred_check
        %p304 = pneg %p168
      $region26: #{tpu_custom_call.1} parent=11 // pred_check_branch
        %306 = sbr.rel (%p304) target = $region28
      $region27: #{tpu_custom_call.1} parent=11 // pred_region
        _
      $region28: #{tpu_custom_call.1} parent=11 // pred_fallthru
        _
      // Predicated region
      $region29: #{tpu_custom_call.1} parent=11 // pred_check
        %p307 = pneg %p189
      $region30: #{tpu_custom_call.1} parent=11 // pred_check_branch
        %309 = sbr.rel (%p307) target = $region32
      $region31: #{tpu_custom_call.1} parent=11 // pred_region
        _
      $region32: #{tpu_custom_call.1} parent=11 // pred_fallthru
        _
      // Predicated region
      $region33: #{tpu_custom_call.1} parent=11 // pred_check
        %p310 = pneg %p210
      $region34: #{tpu_custom_call.1} parent=11 // pred_check_branch
        %312 = sbr.rel (%p310) target = $region36
      $region35: #{tpu_custom_call.1} parent=11 // pred_region
        _
      $region36: #{tpu_custom_call.1} parent=11 // pred_fallthru
        _
      // Predicated region
      $region37: #{tpu_custom_call.1} parent=11 // pred_check
        %p313 = pneg %p231
      $region38: #{tpu_custom_call.1} parent=11 // pred_check_branch
        %315 = sbr.rel (%p313) target = $region40
      $region39: #{tpu_custom_call.1} parent=11 // pred_region
        _
      $region40: #{tpu_custom_call.1} parent=11 // pred_fallthru
        _
      // Predicated region
      $region41: #{tpu_custom_call.1} parent=11 // pred_check
        %p316 = pneg %p252
      $region42: #{tpu_custom_call.1} parent=11 // pred_check_branch
        %318 = sbr.rel (%p316) target = $region44
      $region43: #{tpu_custom_call.1} parent=11 // pred_region
        _
      $region44: #{tpu_custom_call.1} parent=11 // pred_fallthru
        _
    $region12: #{tpu_custom_call.1} parent=5 // pred_fallthru
      _
    %p319 = scmp.lt.s32.totalorder %s16, 6
    // Predicated region
    $region45: #{tpu_custom_call.1} parent=5 // pred_check
      %p320 = pneg %p319
    $region46: #{tpu_custom_call.1} parent=5 // pred_check_branch
      %322 = sbr.rel (%p320) target = $region48
    $region47: #{tpu_custom_call.1} parent=5 // pred_region
      // Predicated region
      $region49: #{tpu_custom_call.1} parent=47 // pred_check
        %p323 = pneg %p50
      $region50: #{tpu_custom_call.1} parent=47 // pred_check_branch
        %325 = sbr.rel (%p323) target = $region52
      $region51: #{tpu_custom_call.1} parent=47 // pred_region
        %s326 = smul.u32 2, %s24
        %p327 = scmp.lt.s32.totalorder %s23, 1
        %s328 = scalar_select %p327, %s23, 1
        %p329 = scmp.lt.s32.totalorder %s326, 5
        %s330 = scalar_select %p329, %s326, 5
        %s331 = smul.addr %s328, 6
        %s332 = sadd.s32 %s330, %s331
        %s333 = smul.addr %s332, 8
        %s334 = scalar_lea.vmem %s0, %s333
        %s335 = smul.u32 2, %s24
      $region52: #{tpu_custom_call.1} parent=47 // pred_fallthru
        _
      // Predicated region
      $region53: #{tpu_custom_call.1} parent=47 // pred_check
        %p336 = pneg %p78
      $region54: #{tpu_custom_call.1} parent=47 // pred_check_branch
        %338 = sbr.rel (%p336) target = $region56
      $region55: #{tpu_custom_call.1} parent=47 // pred_region
        %p339 = scmp.lt.s32.totalorder %s23, 1
        %s340 = scalar_select %p339, %s23, 1
        %p341 = scmp.lt.s32.totalorder %s24, 2
        %s342 = scalar_select %p341, %s24, 2
        %s343 = smul.addr %s340, 3
        %s344 = sadd.s32 %s342, %s343
        %s345 = smul.addr %s344, 4
        %s346 = scalar_lea.vmem %s1, %s345
      $region56: #{tpu_custom_call.1} parent=47 // pred_fallthru
        _
    $region48: #{tpu_custom_call.1} parent=5 // pred_fallthru
      _
    %p347 = scmp.le.s32.totalorder 1, %s16
    %p348 = scmp.lt.s32.totalorder %s16, 7
    %p349 = pnand %p347, %p348
    %p350 = pneg %p349
    // Predicated region
    $region57: #{tpu_custom_call.1} parent=5 // pred_check
      _
    $region58: #{tpu_custom_call.1} parent=5 // pred_check_branch
      %352 = sbr.rel (%p349) target = $region60
    $region59: #{tpu_custom_call.1} parent=5 // pred_region
      %s353 = ssub.s32 %s16, 1
      %s354 = smul.u32 2, %s26
      %p355 = scmp.lt.s32.totalorder %s25, 1
      %s356 = scalar_select %p355, %s25, 1
      %p357 = scmp.lt.s32.totalorder %s354, 5
      %s358 = scalar_select %p357, %s354, 5
      %s359 = smul.addr %s356, 6
      %s360 = sadd.s32 %s358, %s359
      %s361 = smul.addr %s360, 8
      %s362 = scalar_lea.vmem %s0, %s361
      %p363 = pneg %p56
      %p364 = pneg %p53
      %p365 = scmp.lt.s32.totalorder %s25, 1
      %s366 = scalar_select %p365, %s25, 1
      %p367 = scmp.lt.s32.totalorder %s26, 2
      %s368 = scalar_select %p367, %s26, 2
      %s369 = smul.addr %s366, 3
      %s370 = sadd.s32 %s368, %s369
      %s371 = smul.addr %s370, 4
      %s372 = scalar_lea.vmem %s1, %s371
      %p373 = pneg %p84
      %p374 = pneg %p81
      %p375 = pneg %p105
      %p376 = pneg %p102
      %p377 = pneg %p126
      %p378 = pneg %p123
      %p379 = pneg %p147
      %p380 = pneg %p144
      %p381 = pneg %p168
      %p382 = pneg %p165
      %p383 = pneg %p189
      %p384 = pneg %p186
      %p385 = pneg %p210
      %p386 = pneg %p207
      %p387 = pneg %p231
      %p388 = pneg %p228
      %p389 = pneg %p252
      %p390 = pneg %p249
      %p391 = pneg %p280
      %p392 = pneg %p277
      %s393 = smul.u32 2, %s26
      %p394 = scmp.lt.s32.totalorder %s25, 1
      %s395 = scalar_select %p394, %s25, 1
      %p396 = scmp.lt.s32.totalorder %s393, 5
      %s397 = scalar_select %p396, %s393, 5
      %s398 = smul.addr %s395, 6
      %s399 = sadd.s32 %s397, %s398
      %s400 = smul.addr %s399, 8
      %s401 = scalar_lea.vmem %s10, %s400
      %s402 = smul.u32 2, %s26
      %p403 = scmp.lt.s32.totalorder %s25, 1
      %s404 = scalar_select %p403, %s25, 1
      %p405 = scmp.lt.s32.totalorder %s402, 5
      %s406 = scalar_select %p405, %s402, 5
      %s407 = smul.addr %s404, 6
      %s408 = sadd.s32 %s406, %s407
      %s409 = smul.addr %s408, 8
      %s410 = scalar_lea.vmem %s0, %s409
      %s411 = smul.u32 2, %s26
      %p412 = scmp.lt.s32.totalorder %s25, 1
      %s413 = scalar_select %p412, %s25, 1
      %p414 = scmp.lt.s32.totalorder %s26, 2
      %s415 = scalar_select %p414, %s26, 2
      %s416 = smul.addr %s413, 3
      %s417 = sadd.s32 %s415, %s416
      %s418 = smul.addr %s417, 4
      %s419 = scalar_lea.vmem %s1, %s418
      %s420 = smul.u32 2, %s26
      %p421 = scmp.lt.s32.totalorder %s25, 1
      %s422 = scalar_select %p421, %s25, 1
      %p423 = scmp.lt.s32.totalorder %s420, 5
      %s424 = scalar_select %p423, %s420, 5
      %s425 = smul.addr %s422, 6
      %s426 = sadd.s32 %s424, %s425
      %s427 = smul.addr %s426, 8
      %s428 = scalar_lea.vmem %s10, %s427
      %s429 = smul.u32 2, %s26
      %s431 = smul.u32 %s26, 16
      %v432 = vld [vmem:[%s410] sm:$0xff]
      %v433 = vld [vmem:[%s410 + $0x8] sm:$0xff]
      %v434 = vld [vmem:[%s419] sm:$0xf]
      %vm437 = vcmask 1041408
      %v438 = vrot.slane %v432, 6
      %v439 = vrot.slane %v433, 6
      %v440 = vsel %vm437, %v438, %v439
      %v444 = vsel %vm437, %v434, %v438
      %v445 = vsel %vm437, %v439, %v434
      %vm446 = vcmask 261120
      %v447 = vsel %vm446, %v444, 0.0
      %448 = vadd.xlane.f32.xlu0 %v447
      %v449 = vpop.xlane.xlu0 %448
      %v450 = vsel %vm446, %v440, 0.0
      %451 = vadd.xlane.f32.xlu0 %v450
      %v452 = vpop.xlane.xlu0 %451
      %vm453 = vcmask 257024
      %v454 = vsel %vm453, %v445, 0.0
      %455 = vadd.xlane.f32.xlu0 %v454
      %v456 = vpop.xlane.xlu0 %455
      %v457 = vrcp.pop 32.0
      %v458 = vmul.f32 %v449, %v457
      %v459 = vmul.f32 %v452, %v457
      %v460 = vmul.f32 %v456, %v457
      %v461 = vsub.f32 %v444, %v458
      %v462 = vsub.f32 %v440, %v459
      %v463 = vsub.f32 %v445, %v460
      %v464 = vmul.f32 %v461, %v461
      %v465 = vmul.f32 %v462, %v462
      %v466 = vmul.f32 %v463, %v463
      %v467 = vsel %vm446, %v464, 0.0
      %468 = vadd.xlane.f32.xlu0 %v467
      %v469 = vpop.xlane.xlu0 %468
      %v470 = vsel %vm446, %v465, 0.0
      %471 = vadd.xlane.f32.xlu0 %v470
      %v472 = vpop.xlane.xlu0 %471
      %v473 = vsel %vm453, %v466, 0.0
      %474 = vadd.xlane.f32.xlu0 %v473
      %v475 = vpop.xlane.xlu0 %474
      %v476 = vmul.f32 %v469, %v457
      %v477 = vmul.f32 %v472, %v457
      %v478 = vmul.f32 %v475, %v457
      %v479 = vadd.f32 %v476, 1e-05
      %v480 = vadd.f32 %v477, 1e-05
      %v481 = vadd.f32 %v478, 1e-05
      %v482 = vrsqrt.pop %v479
      %v483 = vrsqrt.pop %v480
      %v484 = vrsqrt.pop %v481
      %v485 = vmul.f32 %v461, %v482
      %v486 = vmul.f32 %v462, %v483
      %v487 = vmul.f32 %v463, %v484
      %v488 = vld [vmem:[%s2] sm:$0x1]
      %v490 = vlaneseq
      %v491 = vshrl.u32 %v490, 7
      %v492 = vsub.s32 0, %v491
      %v493 = vrot.slane %v488, %v492
      %v495 = vmul.f32 %v485, %v493
      %v496 = vmul.f32 %v486, %v493
      %v497 = vmul.f32 %v487, %v493
      %v498 = vld [vmem:[%s3] sm:$0x1]
      %v500 = vlaneseq
      %v501 = vshrl.u32 %v500, 7
      %v502 = vsub.s32 0, %v501
      %v503 = vrot.slane %v498, %v502
      %v505 = vadd.f32 %v495, %v503
      %v506 = vadd.f32 %v496, %v503
      %v507 = vadd.f32 %v497, %v503
      %v508 = vpack.c.bf16 %v506, %v505
      %v509 = vpack.c.bf16 %v507, %v507
      %v510 = vld [vmem:[%s4] sm:$0xf]
      %v511 = vld [vmem:[%s4 + $0x4] sm:$0xf]
      %v512 = vld [vmem:[%s4 + $0x8] sm:$0xf]
      %v513 = vld [vmem:[%s4 + $0xc] sm:$0xf]
      %v514 = vld [vmem:[%s5] sm:$0x1]
      %v516 = vlaneseq
      %v517 = vshrl.u32 %v516, 7
      %v518 = vsub.s32 0, %v517
      %v519 = vrot.slane %v514, %v518
      %v525 = vunpack.c.l.b16 %v510
      %v526 = vunpack.c.l.b16 %v511
      %v527 = vunpack.c.l.b16 %v512
      %v528 = vunpack.c.l.b16 %v513
      %v529 = vpack.c.b16 %v526, %v525
      %v530 = vpack.c.b16 %v528, %v527
      %v534 = vsel %vm446, %v508, 0
      %v537 = vsel %vm446, %v509, 0
      %539 = vmatprep.subr.bf16.mxu0 0
      %540 = vmatpush1.bf16.msra.mxu0 %v529
      %541 = vmatprep.subr.bf16.mxu0 0
      %542 = vmatpush1.bf16.msra.mxu0 %v530
      %543 = vmatprep.subr.bf16.mxu0 0
      %544 = vmatpush1.bf16.msra.mxu0 0
      %545 = vmatprep.subr.bf16.mxu0 0
      %546 = vmatpush1.bf16.msra.mxu0 0
      %547 = vmatprep.subr.bf16.mxu0 0
      %548 = vmatpush1.bf16.msra.mxu0 0
      %549 = vmatprep.subr.bf16.mxu0 0
      %550 = vmatpush1.bf16.msra.mxu0 0
      %551 = vmatprep.subr.bf16.mxu0 0
      %552 = vmatpush1.bf16.msra.mxu0 0
      %553 = vmatprep.subr.bf16.mxu0 0
      %554 = vmatpush1.bf16.msra.mxu0 0
      %555 = vmatprep.subr.bf16.mxu0 0
      %556 = vmatpush1.bf16.msra.mxu0 0
      %557 = vmatprep.subr.bf16.mxu0 0
      %558 = vmatpush1.bf16.msra.mxu0 0
      %559 = vmatprep.subr.bf16.mxu0 0
      %560 = vmatpush1.bf16.msra.mxu0 0
      %561 = vmatprep.subr.bf16.mxu0 0
      %562 = vmatpush1.bf16.msra.mxu0 0
      %563 = vmatprep.subr.bf16.mxu0 0
      %564 = vmatpush1.bf16.msra.mxu0 0
      %565 = vmatprep.subr.bf16.mxu0 0
      %566 = vmatpush1.bf16.msra.mxu0 0
      %567 = vmatprep.subr.bf16.mxu0 0
      %568 = vmatpush1.bf16.msra.mxu0 0
      %569 = vmatprep.subr.bf16.mxu0 0
      %570 = vmatpush1.bf16.msra.mxu0 0
      %571 = vmatprep.mubr.bf16.mxu0 0
      %572 = vmatmul.mubr.bf16.gmra.mrb[0].mxu0 %v534
      %v573 = vpop.f32.mrb[0].mxu0
      %v574 = vadd.f32 %v519, %v573
      %v575 = vpop.f32.mrb[0].mxu0
      %v576 = vpop.f32.mrb[0].mxu0
      %v577 = vadd.f32 %v519, %v576
      %v578 = vpop.f32.mrb[0].mxu0
      %579 = vmatprep.mubr.bf16.mxu0 0
      %580 = vmatmul.mubr.bf16.gmra.mrb[0].mxu0 %v537
      %v581 = vpop.f32.mrb[0].mxu0
      %v582 = vadd.f32 %v519, %v581
      %v583 = vpop.f32.mrb[0].mxu0
      %v584 = vpop.f32.mrb[0].mxu0
      %v585 = vpop.f32.mrb[0].mxu0
      %586 = vdwg.mxu0
      %v587 = vxor.u32 %v574, 2147483648
      %v588 = vxor.u32 %v577, 2147483648
      %v589 = vxor.u32 %v582, 2147483648
      %v590 = vmul.f32 %v587, 1.442695
      %v591 = vpow.pop %v590
      %v592 = vmul.f32 %v588, 1.442695
      %v593 = vpow.pop %v592
      %v594 = vmul.f32 %v589, 1.442695
      %v595 = vpow.pop %v594
      %v596 = vadd.f32 %v591, 1.0
      %v597 = vadd.f32 %v593, 1.0
      %v598 = vadd.f32 %v595, 1.0
      %v599 = vrcp.pop %v596
      %v600 = vmul.f32 1.0, %v599
      %v601 = vrcp.pop %v597
      %v602 = vmul.f32 1.0, %v601
      %v603 = vrcp.pop %v598
      %v604 = vmul.f32 1.0, %v603
      %608 = vrot.lane.b32.xlu0 %v600, 64
      %v609 = vpop.permute.xlu0 %608
      %610 = vrot.lane.b32.xlu0 %v602, 64
      %v611 = vpop.permute.xlu0 %610
      %612 = vrot.lane.b32.xlu0 %v604, 64
      %v613 = vpop.permute.xlu0 %612
      %v617 = vmul.f32 %v574, %v609
      %v618 = vmul.f32 %v577, %v611
      %v619 = vmul.f32 %v582, %v613
      %p620 = scmp.lt.s32.totalorder %s431, 2
      %s621 = sadd.s32 %s431, 18
      %p622 = scmp.gt.s32.totalorder %s621, 40
      %p623 = por %p620, %p622
      // Predicated region
      $region61: #{tpu_custom_call.1} parent=59 // pred_check
        %p624 = pneg %p623
      $region62: #{tpu_custom_call.1} parent=59 // pred_check_branch
        %626 = sbr.rel (%p624) target = $region64
      $region63: #{tpu_custom_call.1} parent=59 // pred_region
        %s627 = ssub.s32 %s431, 2
        %v628 = vlaneseq
        %v629 = vshrl.u32 %v628, 7
        %v630 = vadd.s32 %v629, 8
        %v631 = vadd.s32 %v629, 16
        %v632 = vstv %s627
        %v633 = vadd.s32 %v632, %v629
        %v634 = vadd.s32 %v632, %v630
        %v635 = vadd.s32 %v632, %v631
        %vm636 = vcmp.ge.s32.totalorder %v633, 0
        %vm637 = vcmp.ge.s32.totalorder %v634, 0
        %vm638 = vcmp.ge.s32.totalorder %v635, 0
        %vm639 = vcmp.lt.s32.totalorder %v633, 40
        %vm640 = vcmp.lt.s32.totalorder %v634, 40
        %vm641 = vcmp.lt.s32.totalorder %v635, 40
        %vm642 = vmand %vm636, %vm639
        %vm643 = vmand %vm637, %vm640
        %vm644 = vmand %vm638, %vm641
        %v645 = vsel %vm642, 1, 0
        %v646 = vsel %vm643, 1, 0
        %v647 = vsel %vm644, 1, 0
        %vm648 = vcmp.eq.s32.totalorder %v645, 1
        %vm649 = vcmp.eq.s32.totalorder %v646, 1
        %vm650 = vcmp.eq.s32.totalorder %v647, 1
        %v651 = vsel %vm648, %v617, 0.0
        %v652 = vsel %vm649, %v618, 0.0
        %v653 = vsel %vm650, %v619, 0.0
        %vm654 = vcmask 523264
        %655 = vst.msk [vmem:[#allocation2] sm:$0xff] %vm654, %v651
        %656 = vst.msk [vmem:[#allocation2 + $0x8] sm:$0xff] %vm654, %v652
        %vm657 = vcmask 519168
        %658 = vst.msk [vmem:[#allocation2 + $0x10] sm:$0xf] %vm657, %v653
      $region64: #{tpu_custom_call.1} parent=59 // pred_fallthru
        _
      %p659 = pneg %p623
      // Predicated region
      $region65: #{tpu_custom_call.1} parent=59 // pred_check
        _
      $region66: #{tpu_custom_call.1} parent=59 // pred_check_branch
        %661 = sbr.rel (%p623) target = $region68
      $region67: #{tpu_custom_call.1} parent=59 // pred_region
        %vm662 = vcmask 523264
        %663 = vst.msk [vmem:[#allocation2] sm:$0xff] %vm662, %v617
        %664 = vst.msk [vmem:[#allocation2 + $0x8] sm:$0xff] %vm662, %v618
        %vm665 = vcmask 519168
        %666 = vst.msk [vmem:[#allocation2 + $0x10] sm:$0xf] %vm665, %v619
      $region68: #{tpu_custom_call.1} parent=59 // pred_fallthru
        _
      %v667 = vld [vmem:[%s6] sm:$0x1f]
      %v668 = vld [vmem:[#allocation2] sm:$0xff]
      %v669 = vld [vmem:[#allocation2 + $0x8] sm:$0xff]
      %v670 = vlaneseq
      %v671 = vshrl.u32 %v670, 7
      %v672 = vsub.s32 0, %v671
      %v673 = vrot.slane %v667, %v672
      %v674 = vmul.f32 %v668, %v673
      %v675 = vmul.f32 %v669, %v673
      %v676 = vadd.f32 %v674, 0.0
      %v677 = vadd.f32 %v675, 0.0
      %v678 = vld [vmem:[#allocation2 + $0x1] sm:$0xff]
      %v679 = vld [vmem:[#allocation2 + $0x9] sm:$0xff]
      %v680 = vlaneseq
      %v681 = vshrl.u32 %v680, 7
      %v682 = vsub.s32 1, %v681
      %v683 = vrot.slane %v667, %v682
      %v684 = vmul.f32 %v678, %v683
      %v685 = vmul.f32 %v679, %v683
      %v686 = vadd.f32 %v676, %v684
      %v687 = vadd.f32 %v677, %v685
      %v688 = vld [vmem:[#allocation2 + $0x2] sm:$0xff]
      %v689 = vld [vmem:[#allocation2 + $0xa] sm:$0xff]
      %v690 = vlaneseq
      %v691 = vshrl.u32 %v690, 7
      %v692 = vsub.s32 2, %v691
      %v693 = vrot.slane %v667, %v692
      %v694 = vmul.f32 %v688, %v693
      %v695 = vmul.f32 %v689, %v693
      %v696 = vadd.f32 %v686, %v694
      %v697 = vadd.f32 %v687, %v695
      %v698 = vld [vmem:[#allocation2 + $0x3] sm:$0xff]
      %v699 = vld [vmem:[#allocation2 + $0xb] sm:$0xff]
      %v700 = vlaneseq
      %v701 = vshrl.u32 %v700, 7
      %v702 = vsub.s32 3, %v701
      %v703 = vrot.slane %v667, %v702
      %v704 = vmul.f32 %v698, %v703
      %v705 = vmul.f32 %v699, %v703
      %v706 = vadd.f32 %v696, %v704
      %v707 = vadd.f32 %v697, %v705
      %v708 = vld [vmem:[#allocation2 + $0x4] sm:$0xff]
      %v709 = vld [vmem:[#allocation2 + $0xc] sm:$0xff]
      %v710 = vlaneseq
      %v711 = vshrl.u32 %v710, 7
      %v712 = vsub.s32 4, %v711
      %v713 = vrot.slane %v667, %v712
      %v714 = vmul.f32 %v708, %v713
      %v715 = vmul.f32 %v709, %v713
      %v716 = vadd.f32 %v706, %v714
      %v717 = vadd.f32 %v707, %v715
      %v718 = vld [vmem:[%s7] sm:$0x1]
      %v720 = vlaneseq
      %v721 = vshrl.u32 %v720, 7
      %v722 = vsub.s32 0, %v721
      %v723 = vrot.slane %v718, %v722
      %v725 = vadd.f32 %v716, %v723
      %v726 = vadd.f32 %v717, %v723
      %v727 = vxor.u32 %v725, 2147483648
      %v728 = vxor.u32 %v726, 2147483648
      %v729 = vmul.f32 %v727, 1.442695
      %v730 = vpow.pop %v729
      %v731 = vmul.f32 %v728, 1.442695
      %v732 = vpow.pop %v731
      %v733 = vadd.f32 %v730, 1.0
      %v734 = vadd.f32 %v732, 1.0
      %v735 = vrcp.pop %v733
      %v736 = vmul.f32 1.0, %v735
      %v737 = vrcp.pop %v734
      %v738 = vmul.f32 1.0, %v737
      %v739 = vmul.f32 %v725, %v736
      %v740 = vmul.f32 %v726, %v738
      %v741 = vpack.c.bf16 %v740, %v739
      %v742 = vld [vmem:[%s8] sm:$0xf]
      %v743 = vld [vmem:[%s8 + $0x4] sm:$0xf]
      %v744 = vld [vmem:[%s8 + $0x8] sm:$0xf]
      %v745 = vld [vmem:[%s8 + $0xc] sm:$0xf]
      %v746 = vld [vmem:[%s8 + $0x10] sm:$0xf]
      %v747 = vld [vmem:[%s8 + $0x14] sm:$0xf]
      %v748 = vld [vmem:[%s8 + $0x18] sm:$0xf]
      %v749 = vld [vmem:[%s8 + $0x1c] sm:$0xf]
      %v750 = vld [vmem:[%s9] sm:$0x1]
      %v752 = vlaneseq
      %v753 = vshrl.u32 %v752, 7
      %v754 = vsub.s32 0, %v753
      %v755 = vrot.slane %v750, %v754
      %v765 = vunpack.c.l.b16 %v742
      %v766 = vunpack.c.l.b16 %v743
      %v767 = vunpack.c.l.b16 %v744
      %v768 = vunpack.c.l.b16 %v745
      %v769 = vunpack.c.l.b16 %v746
      %v770 = vunpack.c.l.b16 %v747
      %v771 = vunpack.c.l.b16 %v748
      %v772 = vunpack.c.l.b16 %v749
      %v773 = vpack.c.b16 %v766, %v765
      %v774 = vpack.c.b16 %v768, %v767
      %v775 = vpack.c.b16 %v770, %v769
      %v776 = vpack.c.b16 %v772, %v771
      %vm781 = vcmask 523264
      %v783 = vsel %vm781, %v741, 0
      %785 = vmatprep.subr.bf16.mxu0 0
      %786 = vmatpush1.bf16.msra.mxu0 %v773
      %787 = vmatprep.subr.bf16.mxu0 0
      %788 = vmatpush1.bf16.msra.mxu0 %v774
      %789 = vmatprep.subr.bf16.mxu0 0
      %790 = vmatpush1.bf16.msra.mxu0 %v775
      %791 = vmatprep.subr.bf16.mxu0 0
      %792 = vmatpush1.bf16.msra.mxu0 %v776
      %793 = vmatprep.subr.bf16.mxu0 0
      %794 = vmatpush1.bf16.msra.mxu0 0
      %795 = vmatprep.subr.bf16.mxu0 0
      %796 = vmatpush1.bf16.msra.mxu0 0
      %797 = vmatprep.subr.bf16.mxu0 0
      %798 = vmatpush1.bf16.msra.mxu0 0
      %799 = vmatprep.subr.bf16.mxu0 0
      %800 = vmatpush1.bf16.msra.mxu0 0
      %801 = vmatprep.subr.bf16.mxu0 0
      %802 = vmatpush1.bf16.msra.mxu0 0
      %803 = vmatprep.subr.bf16.mxu0 0
      %804 = vmatpush1.bf16.msra.mxu0 0
      %805 = vmatprep.subr.bf16.mxu0 0
      %806 = vmatpush1.bf16.msra.mxu0 0
      %807 = vmatprep.subr.bf16.mxu0 0
      %808 = vmatpush1.bf16.msra.mxu0 0
      %809 = vmatprep.subr.bf16.mxu0 0
      %810 = vmatpush1.bf16.msra.mxu0 0
      %811 = vmatprep.subr.bf16.mxu0 0
      %812 = vmatpush1.bf16.msra.mxu0 0
      %813 = vmatprep.subr.bf16.mxu0 0
      %814 = vmatpush1.bf16.msra.mxu0 0
      %815 = vmatprep.subr.bf16.mxu0 0
      %816 = vmatpush1.bf16.msra.mxu0 0
      %817 = vmatprep.mubr.bf16.mxu0 0
      %818 = vmatmul.mubr.bf16.gmra.mrb[0].mxu0 %v783
      %v819 = vpop.f32.mrb[0].mxu0
      %v820 = vadd.f32 %v755, %v819
      %v821 = vpop.f32.mrb[0].mxu0
      %v822 = vpop.f32.mrb[0].mxu0
      %v823 = vadd.f32 %v755, %v822
      %v824 = vpop.f32.mrb[0].mxu0
      %825 = vdwg.mxu0
      %v826 = vadd.f32 %v432, %v820
      %v827 = vadd.f32 %v433, %v823
      %828 = vst.msk [vmem:[%s428] sm:$0xff] %vm446, %v826
      %829 = vst.msk [vmem:[%s428 + $0x8] sm:$0xff] %vm446, %v827
      %s830 = smul.u32 2, %s26
      %p831 = scmp.lt.s32.totalorder %s25, 1
      %s832 = scalar_select %p831, %s25, 1
      %p833 = scmp.lt.s32.totalorder %s830, 5
      %s834 = scalar_select %p833, %s830, 5
      %s835 = smul.addr %s832, 6
      %s836 = sadd.s32 %s834, %s835
      %s837 = smul.addr %s836, 8
      %s838 = scalar_lea.vmem %s10, %s837
      // Predicated region
      $region69: #{tpu_custom_call.1} parent=59 // pred_check
        %p839 = pneg %p277
      $region70: #{tpu_custom_call.1} parent=59 // pred_check_branch
        %841 = sbr.rel (%p839) target = $region72
      $region71: #{tpu_custom_call.1} parent=59 // pred_region
        %s842 = smul.u32 2, %s26
      $region72: #{tpu_custom_call.1} parent=59 // pred_fallthru
        _
    $region60: #{tpu_custom_call.1} parent=5 // pred_fallthru
      _
    %p843 = scmp.le.s32.totalorder 2, %s16
    // Predicated region
    $region73: #{tpu_custom_call.1} parent=5 // pred_check
      %p844 = pneg %p843
    $region74: #{tpu_custom_call.1} parent=5 // pred_check_branch
      %846 = sbr.rel (%p844) target = $region76
    $region75: #{tpu_custom_call.1} parent=5 // pred_region
      %s847 = ssub.s32 %s16, 2
      // Predicated region
      $region77: #{tpu_custom_call.1} parent=75 // pred_check
        %p848 = pneg %p283
      $region78: #{tpu_custom_call.1} parent=75 // pred_check_branch
        %850 = sbr.rel (%p848) target = $region80
      $region79: #{tpu_custom_call.1} parent=75 // pred_region
        %s851 = smul.u32 2, %s28
        %p852 = scmp.lt.s32.totalorder %s27, 1
        %s853 = scalar_select %p852, %s27, 1
        %p854 = scmp.lt.s32.totalorder %s851, 5
        %s855 = scalar_select %p854, %s851, 5
        %s856 = smul.addr %s853, 6
        %s857 = sadd.s32 %s855, %s856
        %s858 = smul.addr %s857, 8
        %s859 = scalar_lea.vmem %s10, %s858
      $region80: #{tpu_custom_call.1} parent=75 // pred_fallthru
        _
    $region76: #{tpu_custom_call.1} parent=5 // pred_fallthru
      _
  $region6: #{tpu_custom_call.1} parent=0 // loop_footer
    %s20 = sadd.s32 1, %s16
  $region7: #{tpu_custom_call.1} parent=0 // loop_footer_branch
    %15 = sbr.rel target = $region3
  $region8: #{tpu_custom_call.1} parent=0 // loop_exit
    _

</llo_original>
